<compile_context>
chip_gen: v5e
topology: v5e:2x2
jax: 0.10.0
libtpu: 0.0.40
codegen_flags: <defaults>
</compile_context>

<pallas_src>
import functools

import jax
import jax.numpy as jnp
from jax.experimental import pallas as pl
from jax.experimental.pallas import tpu as pltpu


def _dwconv3x3_kernel(x_ref, w_ref, o_ref, xpad_ref, *, H, W, pad_l):
    # x_ref   : (1, H, W, CT)           unpadded input tile (NHWC)
    # w_ref   : (3, 3, CT)              per-channel 3x3 filters
    # o_ref   : (1, H, W, CT)           output tile
    # xpad_ref: (H + 2, W_PAD, CT)      VMEM scratch; interior lives at
    #                                   rows [1:H+1], cols [pad_l:pad_l+W]
    ct = o_ref.shape[-1]
    csub = 128 if ct % 128 == 0 else ct

    # Build the zero-padded tile entirely in VMEM (no XLA pad / extra HBM pass).
    xpad_ref[...] = jnp.zeros_like(xpad_ref)

    for c0 in range(0, ct, csub):
        # Interior store: column offset pad_l is a multiple of 8 -> sublane-group
        # aligned masked store (no sublane shift needed).
        xpad_ref[1:H + 1, pad_l:pad_l + W, c0:c0 + csub] = (
            x_ref[0, :, :, c0:c0 + csub]
        )

        # 9-tap depthwise MAC for this 128-lane channel chunk. Taps at column
        # offsets pad_l-1 / pad_l / pad_l+1 (one aligned, two shifted loads).
        acc = None
        for di in range(3):
            for dj in range(3):
                col0 = pad_l - 1 + dj
                tap = xpad_ref[di:di + H, col0:col0 + W, c0:c0 + csub]
                wv = w_ref[di, dj, c0:c0 + csub]
                term = tap * wv
                acc = term if acc is None else acc + term
        o_ref[0, :, :, c0:c0 + csub] = acc.astype(o_ref.dtype)


def _pick_c_tile(C):
    # Prefer large channel tiles (fewer grid steps, bigger DMAs) while keeping
    # >= 2 channel steps so v7x megacore can shard the channel axis.
    for ct in (384, 256, 128):
        if C % ct == 0 and C // ct >= 2:
            return ct
    for ct in (384, 256, 128):
        if C % ct == 0:
            return ct
    return C


def depthwise_conv3x3_nhwc(x_nhwc, w_33c, *, c_tile=None):
    """Depthwise 3x3, stride 1, padding 1, no bias.  NHWC in / NHWC out.

    x_nhwc: (N, H, W, C)
    w_33c : (3, 3, C)
    """
    N, H, W, C = x_nhwc.shape
    if c_tile is None:
        c_tile = _pick_c_tile(C)
    assert C % c_tile == 0, "C must be a multiple of the channel tile"

    pad_l = 8                                   # sublane-aligned interior offset
    w_pad = pad_l + W + 1
    w_pad = ((w_pad + 7) // 8) * 8              # round scratch width to x8

    itemsize = jnp.dtype(x_nhwc.dtype).itemsize
    cost = pl.CostEstimate(
        flops=18 * N * H * W * C,               # 9 taps x (mul + add)
        transcendentals=0,
        bytes_accessed=(2 * N * H * W * C + 9 * C) * itemsize,
    )

    grid = (N, C // c_tile)
    return pl.pallas_call(
        functools.partial(_dwconv3x3_kernel, H=H, W=W, pad_l=pad_l),
        out_shape=jax.ShapeDtypeStruct((N, H, W, C), x_nhwc.dtype),
        grid_spec=pltpu.PrefetchScalarGridSpec(
            num_scalar_prefetch=0,
            grid=grid,
            in_specs=[
                pl.BlockSpec((1, H, W, c_tile), lambda n, c: (n, 0, 0, c)),
                pl.BlockSpec((3, 3, c_tile), lambda n, c: (0, 0, c)),
            ],
            out_specs=pl.BlockSpec((1, H, W, c_tile), lambda n, c: (n, 0, 0, c)),
            scratch_shapes=[pltpu.VMEM((H + 2, w_pad, c_tile), x_nhwc.dtype)],
        ),
        compiler_params=pltpu.CompilerParams(
            dimension_semantics=("parallel", "parallel")
        ),
        cost_estimate=cost,
    )(x_nhwc, w_33c)


def depthwise_conv3x3(x_nchw, w_c33, *, c_tile=None):
    """NCHW wrapper for parity with the PyTorch module.

    The transposes here are pure layout glue; for best performance keep the
    activations NHWC end-to-end and call depthwise_conv3x3_nhwc directly.
    """
    x_nhwc = jnp.transpose(x_nchw, (0, 2, 3, 1))
    w_33c = jnp.transpose(w_c33, (1, 2, 0))
    out_nhwc = depthwise_conv3x3_nhwc(x_nhwc, w_33c, c_tile=c_tile)
    return jnp.transpose(out_nhwc, (0, 3, 1, 2))


if __name__ == "__main__":
    # Shapes from the module's forward: x278 ~ (1, 1152, 14, 14)
    N, C, H, W = 1, 1152, 14, 14

    key = jax.random.PRNGKey(0)
    kx, kw = jax.random.split(key)
    x = jax.random.normal(kx, (N, C, H, W), dtype=jnp.float32)
    # Conv2d weight (C, 1, 3, 3) squeezed to (C, 3, 3)
    w = jax.random.normal(kw, (C, 3, 3), dtype=jnp.float32) * 0.1

    fn = jax.jit(depthwise_conv3x3)
    out = jax.block_until_ready(fn(x, w))

    # Reference: depthwise conv via lax (feature_group_count=C).
    ref = jax.lax.conv_general_dilated(
        x,
        w.reshape(C, 1, 3, 3),
        window_strides=(1, 1),
        padding=((1, 1), (1, 1)),
        dimension_numbers=("NCHW", "OIHW", "NCHW"),
        feature_group_count=C,
    )
    assert out.shape == (N, C, H, W)
    assert jnp.allclose(out, ref, rtol=1e-4, atol=1e-4), "mismatch vs reference"

    print("KERNEL_OK")
</pallas_src>

<mosaic_0001>
module attributes {stable_mosaic.version = 11 : i64} {
  func.func @_dwconv3x3_kernel(%arg0: i32, %arg1: i32, %arg2: memref<1x14x14x384xf32, #tpu.memory_space<vmem>>, %arg3: memref<3x3x384xf32, #tpu.memory_space<vmem>>, %arg4: memref<1x14x14x384xf32, #tpu.memory_space<vmem>>, %arg5: memref<16x24x384xf32, #tpu.memory_space<vmem>>) attributes {dimension_semantics = [#tpu.dimension_semantics<parallel>, #tpu.dimension_semantics<parallel>], iteration_bounds = array<i64: 1, 3>, scalar_prefetch = 0 : i64, scratch_operands = 1 : i64, tpu.core_type = #tpu.core_type<tc>, window_params = [{transform_indices = @transform_0, window_bounds = array<i64: 1, 14, 14, 384>}, {transform_indices = @transform_1, window_bounds = array<i64: 3, 3, 384>}, {transform_indices = @transform_2, window_bounds = array<i64: 1, 14, 14, 384>}]} {
    %cst = arith.constant 0.000000e+00 : f32
    %0 = vector.broadcast %cst : f32 to vector<16x24x384xf32>
    %c0 = arith.constant 0 : index
    %c0_0 = arith.constant 0 : index
    %c0_1 = arith.constant 0 : index
    %1 = vector.load %arg5[%c0, %c0_0, %c0_1] : memref<16x24x384xf32, #tpu.memory_space<vmem>>, vector<16x24x384xf32>
    tpu.vector_store %arg5[%c0, %c0_0, %c0_1], %0 {strides = array<i32>} : memref<16x24x384xf32, #tpu.memory_space<vmem>>, vector<16x24x384xf32>,
    %c0_2 = arith.constant 0 : index
    %c0_3 = arith.constant 0 : index
    %c0_4 = arith.constant 0 : index
    %c0_5 = arith.constant 0 : index
    %2 = vector.load %arg2[%c0_2, %c0_3, %c0_4, %c0_5] : memref<1x14x14x384xf32, #tpu.memory_space<vmem>>, vector<1x14x14x128xf32>
    %3 = vector.shape_cast %2 : vector<1x14x14x128xf32> to vector<14x14x128xf32>
    %c1 = arith.constant 1 : index
    %c8 = arith.constant 8 : index
    %c0_6 = arith.constant 0 : index
    %4 = vector.load %arg5[%c1, %c8, %c0_6] : memref<16x24x384xf32, #tpu.memory_space<vmem>>, vector<14x14x128xf32>
    tpu.vector_store %arg5[%c1, %c8, %c0_6], %3 {strides = array<i32>} : memref<16x24x384xf32, #tpu.memory_space<vmem>>, vector<14x14x128xf32>,
    %c0_7 = arith.constant 0 : index
    %c7 = arith.constant 7 : index
    %c0_8 = arith.constant 0 : index
    %5 = vector.load %arg5[%c0_7, %c7, %c0_8] : memref<16x24x384xf32, #tpu.memory_space<vmem>>, vector<14x14x128xf32>
    %c0_9 = arith.constant 0 : index
    %c0_10 = arith.constant 0 : index
    %c0_11 = arith.constant 0 : index
    %6 = vector.load %arg3[%c0_9, %c0_10, %c0_11] : memref<3x3x384xf32, #tpu.memory_space<vmem>>, vector<1x1x128xf32>
    %7 = vector.shape_cast %6 : vector<1x1x128xf32> to vector<128xf32>
    %8 = vector.shape_cast %7 : vector<128xf32> to vector<1x1x128xf32>
    %9 = vector.broadcast %8 : vector<1x1x128xf32> to vector<14x14x128xf32>
    %10 = arith.mulf %5, %9 : vector<14x14x128xf32>
    %c0_12 = arith.constant 0 : index
    %c8_13 = arith.constant 8 : index
    %c0_14 = arith.constant 0 : index
    %11 = vector.load %arg5[%c0_12, %c8_13, %c0_14] : memref<16x24x384xf32, #tpu.memory_space<vmem>>, vector<14x14x128xf32>
    %c0_15 = arith.constant 0 : index
    %c1_16 = arith.constant 1 : index
    %c0_17 = arith.constant 0 : index
    %12 = vector.load %arg3[%c0_15, %c1_16, %c0_17] : memref<3x3x384xf32, #tpu.memory_space<vmem>>, vector<1x1x128xf32>
    %13 = vector.shape_cast %12 : vector<1x1x128xf32> to vector<128xf32>
    %14 = vector.shape_cast %13 : vector<128xf32> to vector<1x1x128xf32>
    %15 = vector.broadcast %14 : vector<1x1x128xf32> to vector<14x14x128xf32>
    %16 = arith.mulf %11, %15 : vector<14x14x128xf32>
    %17 = arith.addf %10, %16 : vector<14x14x128xf32>
    %c0_18 = arith.constant 0 : index
    %c9 = arith.constant 9 : index
    %c0_19 = arith.constant 0 : index
    %18 = vector.load %arg5[%c0_18, %c9, %c0_19] : memref<16x24x384xf32, #tpu.memory_space<vmem>>, vector<14x14x128xf32>
    %c0_20 = arith.constant 0 : index
    %c2 = arith.constant 2 : index
    %c0_21 = arith.constant 0 : index
    %19 = vector.load %arg3[%c0_20, %c2, %c0_21] : memref<3x3x384xf32, #tpu.memory_space<vmem>>, vector<1x1x128xf32>
    %20 = vector.shape_cast %19 : vector<1x1x128xf32> to vector<128xf32>
    %21 = vector.shape_cast %20 : vector<128xf32> to vector<1x1x128xf32>
    %22 = vector.broadcast %21 : vector<1x1x128xf32> to vector<14x14x128xf32>
    %23 = arith.mulf %18, %22 : vector<14x14x128xf32>
    %24 = arith.addf %17, %23 : vector<14x14x128xf32>
    %c1_22 = arith.constant 1 : index
    %c7_23 = arith.constant 7 : index
    %c0_24 = arith.constant 0 : index
    %25 = vector.load %arg5[%c1_22, %c7_23, %c0_24] : memref<16x24x384xf32, #tpu.memory_space<vmem>>, vector<14x14x128xf32>
    %c1_25 = arith.constant 1 : index
    %c0_26 = arith.constant 0 : index
    %c0_27 = arith.constant 0 : index
    %26 = vector.load %arg3[%c1_25, %c0_26, %c0_27] : memref<3x3x384xf32, #tpu.memory_space<vmem>>, vector<1x1x128xf32>
    %27 = vector.shape_cast %26 : vector<1x1x128xf32> to vector<128xf32>
    %28 = vector.shape_cast %27 : vector<128xf32> to vector<1x1x128xf32>
    %29 = vector.broadcast %28 : vector<1x1x128xf32> to vector<14x14x128xf32>
    %30 = arith.mulf %25, %29 : vector<14x14x128xf32>
    %31 = arith.addf %24, %30 : vector<14x14x128xf32>
    %c1_28 = arith.constant 1 : index
    %c8_29 = arith.constant 8 : index
    %c0_30 = arith.constant 0 : index
    %32 = vector.load %arg5[%c1_28, %c8_29, %c0_30] : memref<16x24x384xf32, #tpu.memory_space<vmem>>, vector<14x14x128xf32>
    %c1_31 = arith.constant 1 : index
    %c1_32 = arith.constant 1 : index
    %c0_33 = arith.constant 0 : index
    %33 = vector.load %arg3[%c1_31, %c1_32, %c0_33] : memref<3x3x384xf32, #tpu.memory_space<vmem>>, vector<1x1x128xf32>
    %34 = vector.shape_cast %33 : vector<1x1x128xf32> to vector<128xf32>
    %35 = vector.shape_cast %34 : vector<128xf32> to vector<1x1x128xf32>
    %36 = vector.broadcast %35 : vector<1x1x128xf32> to vector<14x14x128xf32>
    %37 = arith.mulf %32, %36 : vector<14x14x128xf32>
    %38 = arith.addf %31, %37 : vector<14x14x128xf32>
    %c1_34 = arith.constant 1 : index
    %c9_35 = arith.constant 9 : index
    %c0_36 = arith.constant 0 : index
    %39 = vector.load %arg5[%c1_34, %c9_35, %c0_36] : memref<16x24x384xf32, #tpu.memory_space<vmem>>, vector<14x14x128xf32>
    %c1_37 = arith.constant 1 : index
    %c2_38 = arith.constant 2 : index
    %c0_39 = arith.constant 0 : index
    %40 = vector.load %arg3[%c1_37, %c2_38, %c0_39] : memref<3x3x384xf32, #tpu.memory_space<vmem>>, vector<1x1x128xf32>
    %41 = vector.shape_cast %40 : vector<1x1x128xf32> to vector<128xf32>
    %42 = vector.shape_cast %41 : vector<128xf32> to vector<1x1x128xf32>
    %43 = vector.broadcast %42 : vector<1x1x128xf32> to vector<14x14x128xf32>
    %44 = arith.mulf %39, %43 : vector<14x14x128xf32>
    %45 = arith.addf %38, %44 : vector<14x14x128xf32>
    %c2_40 = arith.constant 2 : index
    %c7_41 = arith.constant 7 : index
    %c0_42 = arith.constant 0 : index
    %46 = vector.load %arg5[%c2_40, %c7_41, %c0_42] : memref<16x24x384xf32, #tpu.memory_space<vmem>>, vector<14x14x128xf32>
    %c2_43 = arith.constant 2 : index
    %c0_44 = arith.constant 0 : index
    %c0_45 = arith.constant 0 : index
    %47 = vector.load %arg3[%c2_43, %c0_44, %c0_45] : memref<3x3x384xf32, #tpu.memory_space<vmem>>, vector<1x1x128xf32>
    %48 = vector.shape_cast %47 : vector<1x1x128xf32> to vector<128xf32>
    %49 = vector.shape_cast %48 : vector<128xf32> to vector<1x1x128xf32>
    %50 = vector.broadcast %49 : vector<1x1x128xf32> to vector<14x14x128xf32>
    %51 = arith.mulf %46, %50 : vector<14x14x128xf32>
    %52 = arith.addf %45, %51 : vector<14x14x128xf32>
    %c2_46 = arith.constant 2 : index
    %c8_47 = arith.constant 8 : index
    %c0_48 = arith.constant 0 : index
    %53 = vector.load %arg5[%c2_46, %c8_47, %c0_48] : memref<16x24x384xf32, #tpu.memory_space<vmem>>, vector<14x14x128xf32>
    %c2_49 = arith.constant 2 : index
    %c1_50 = arith.constant 1 : index
    %c0_51 = arith.constant 0 : index
    %54 = vector.load %arg3[%c2_49, %c1_50, %c0_51] : memref<3x3x384xf32, #tpu.memory_space<vmem>>, vector<1x1x128xf32>
    %55 = vector.shape_cast %54 : vector<1x1x128xf32> to vector<128xf32>
    %56 = vector.shape_cast %55 : vector<128xf32> to vector<1x1x128xf32>
    %57 = vector.broadcast %56 : vector<1x1x128xf32> to vector<14x14x128xf32>
    %58 = arith.mulf %53, %57 : vector<14x14x128xf32>
    %59 = arith.addf %52, %58 : vector<14x14x128xf32>
    %c2_52 = arith.constant 2 : index
    %c9_53 = arith.constant 9 : index
    %c0_54 = arith.constant 0 : index
    %60 = vector.load %arg5[%c2_52, %c9_53, %c0_54] : memref<16x24x384xf32, #tpu.memory_space<vmem>>, vector<14x14x128xf32>
    %c2_55 = arith.constant 2 : index
    %c2_56 = arith.constant 2 : index
    %c0_57 = arith.constant 0 : index
    %61 = vector.load %arg3[%c2_55, %c2_56, %c0_57] : memref<3x3x384xf32, #tpu.memory_space<vmem>>, vector<1x1x128xf32>
    %62 = vector.shape_cast %61 : vector<1x1x128xf32> to vector<128xf32>
    %63 = vector.shape_cast %62 : vector<128xf32> to vector<1x1x128xf32>
    %64 = vector.broadcast %63 : vector<1x1x128xf32> to vector<14x14x128xf32>
    %65 = arith.mulf %60, %64 : vector<14x14x128xf32>
    %66 = arith.addf %59, %65 : vector<14x14x128xf32>
    %c0_58 = arith.constant 0 : index
    %c0_59 = arith.constant 0 : index
    %c0_60 = arith.constant 0 : index
    %c0_61 = arith.constant 0 : index
    %67 = vector.load %arg4[%c0_58, %c0_59, %c0_60, %c0_61] : memref<1x14x14x384xf32, #tpu.memory_space<vmem>>, vector<1x14x14x128xf32>
    %68 = vector.shape_cast %67 : vector<1x14x14x128xf32> to vector<14x14x128xf32>
    %69 = vector.shape_cast %66 : vector<14x14x128xf32> to vector<1x14x14x128xf32>
    tpu.vector_store %arg4[%c0_58, %c0_59, %c0_60, %c0_61], %69 {strides = array<i32>} : memref<1x14x14x384xf32, #tpu.memory_space<vmem>>, vector<1x14x14x128xf32>,
    %c0_62 = arith.constant 0 : index
    %c0_63 = arith.constant 0 : index
    %c0_64 = arith.constant 0 : index
    %c128 = arith.constant 128 : index
    %70 = vector.load %arg2[%c0_62, %c0_63, %c0_64, %c128] : memref<1x14x14x384xf32, #tpu.memory_space<vmem>>, vector<1x14x14x128xf32>
    %71 = vector.shape_cast %70 : vector<1x14x14x128xf32> to vector<14x14x128xf32>
    %c1_65 = arith.constant 1 : index
    %c8_66 = arith.constant 8 : index
    %c128_67 = arith.constant 128 : index
    %72 = vector.load %arg5[%c1_65, %c8_66, %c128_67] : memref<16x24x384xf32, #tpu.memory_space<vmem>>, vector<14x14x128xf32>
    tpu.vector_store %arg5[%c1_65, %c8_66, %c128_67], %71 {strides = array<i32>} : memref<16x24x384xf32, #tpu.memory_space<vmem>>, vector<14x14x128xf32>,
    %c0_68 = arith.constant 0 : index
    %c7_69 = arith.constant 7 : index
    %c128_70 = arith.constant 128 : index
    %73 = vector.load %arg5[%c0_68, %c7_69, %c128_70] : memref<16x24x384xf32, #tpu.memory_space<vmem>>, vector<14x14x128xf32>
    %c0_71 = arith.constant 0 : index
    %c0_72 = arith.constant 0 : index
    %c128_73 = arith.constant 128 : index
    %74 = vector.load %arg3[%c0_71, %c0_72, %c128_73] : memref<3x3x384xf32, #tpu.memory_space<vmem>>, vector<1x1x128xf32>
    %75 = vector.shape_cast %74 : vector<1x1x128xf32> to vector<128xf32>
    %76 = vector.shape_cast %75 : vector<128xf32> to vector<1x1x128xf32>
    %77 = vector.broadcast %76 : vector<1x1x128xf32> to vector<14x14x128xf32>
    %78 = arith.mulf %73, %77 : vector<14x14x128xf32>
    %c0_74 = arith.constant 0 : index
    %c8_75 = arith.constant 8 : index
    %c128_76 = arith.constant 128 : index
    %79 = vector.load %arg5[%c0_74, %c8_75, %c128_76] : memref<16x24x384xf32, #tpu.memory_space<vmem>>, vector<14x14x128xf32>
    %c0_77 = arith.constant 0 : index
    %c1_78 = arith.constant 1 : index
    %c128_79 = arith.constant 128 : index
    %80 = vector.load %arg3[%c0_77, %c1_78, %c128_79] : memref<3x3x384xf32, #tpu.memory_space<vmem>>, vector<1x1x128xf32>
    %81 = vector.shape_cast %80 : vector<1x1x128xf32> to vector<128xf32>
    %82 = vector.shape_cast %81 : vector<128xf32> to vector<1x1x128xf32>
    %83 = vector.broadcast %82 : vector<1x1x128xf32> to vector<14x14x128xf32>
    %84 = arith.mulf %79, %83 : vector<14x14x128xf32>
    %85 = arith.addf %78, %84 : vector<14x14x128xf32>
    %c0_80 = arith.constant 0 : index
    %c9_81 = arith.constant 9 : index
    %c128_82 = arith.constant 128 : index
    %86 = vector.load %arg5[%c0_80, %c9_81, %c128_82] : memref<16x24x384xf32, #tpu.memory_space<vmem>>, vector<14x14x128xf32>
    %c0_83 = arith.constant 0 : index
    %c2_84 = arith.constant 2 : index
    %c128_85 = arith.constant 128 : index
    %87 = vector.load %arg3[%c0_83, %c2_84, %c128_85] : memref<3x3x384xf32, #tpu.memory_space<vmem>>, vector<1x1x128xf32>
    %88 = vector.shape_cast %87 : vector<1x1x128xf32> to vector<128xf32>
    %89 = vector.shape_cast %88 : vector<128xf32> to vector<1x1x128xf32>
    %90 = vector.broadcast %89 : vector<1x1x128xf32> to vector<14x14x128xf32>
    %91 = arith.mulf %86, %90 : vector<14x14x128xf32>
    %92 = arith.addf %85, %91 : vector<14x14x128xf32>
    %c1_86 = arith.constant 1 : index
    %c7_87 = arith.constant 7 : index
    %c128_88 = arith.constant 128 : index
    %93 = vector.load %arg5[%c1_86, %c7_87, %c128_88] : memref<16x24x384xf32, #tpu.memory_space<vmem>>, vector<14x14x128xf32>
    %c1_89 = arith.constant 1 : index
    %c0_90 = arith.constant 0 : index
    %c128_91 = arith.constant 128 : index
    %94 = vector.load %arg3[%c1_89, %c0_90, %c128_91] : memref<3x3x384xf32, #tpu.memory_space<vmem>>, vector<1x1x128xf32>
    %95 = vector.shape_cast %94 : vector<1x1x128xf32> to vector<128xf32>
    %96 = vector.shape_cast %95 : vector<128xf32> to vector<1x1x128xf32>
    %97 = vector.broadcast %96 : vector<1x1x128xf32> to vector<14x14x128xf32>
    %98 = arith.mulf %93, %97 : vector<14x14x128xf32>
    %99 = arith.addf %92, %98 : vector<14x14x128xf32>
    %c1_92 = arith.constant 1 : index
    %c8_93 = arith.constant 8 : index
    %c128_94 = arith.constant 128 : index
    %100 = vector.load %arg5[%c1_92, %c8_93, %c128_94] : memref<16x24x384xf32, #tpu.memory_space<vmem>>, vector<14x14x128xf32>
    %c1_95 = arith.constant 1 : index
    %c1_96 = arith.constant 1 : index
    %c128_97 = arith.constant 128 : index
    %101 = vector.load %arg3[%c1_95, %c1_96, %c128_97] : memref<3x3x384xf32, #tpu.memory_space<vmem>>, vector<1x1x128xf32>
    %102 = vector.shape_cast %101 : vector<1x1x128xf32> to vector<128xf32>
    %103 = vector.shape_cast %102 : vector<128xf32> to vector<1x1x128xf32>
    %104 = vector.broadcast %103 : vector<1x1x128xf32> to vector<14x14x128xf32>
    %105 = arith.mulf %100, %104 : vector<14x14x128xf32>
    %106 = arith.addf %99, %105 : vector<14x14x128xf32>
    %c1_98 = arith.constant 1 : index
    %c9_99 = arith.constant 9 : index
    %c128_100 = arith.constant 128 : index
    %107 = vector.load %arg5[%c1_98, %c9_99, %c128_100] : memref<16x24x384xf32, #tpu.memory_space<vmem>>, vector<14x14x128xf32>
    %c1_101 = arith.constant 1 : index
    %c2_102 = arith.constant 2 : index
    %c128_103 = arith.constant 128 : index
    %108 = vector.load %arg3[%c1_101, %c2_102, %c128_103] : memref<3x3x384xf32, #tpu.memory_space<vmem>>, vector<1x1x128xf32>
    %109 = vector.shape_cast %108 : vector<1x1x128xf32> to vector<128xf32>
    %110 = vector.shape_cast %109 : vector<128xf32> to vector<1x1x128xf32>
    %111 = vector.broadcast %110 : vector<1x1x128xf32> to vector<14x14x128xf32>
    %112 = arith.mulf %107, %111 : vector<14x14x128xf32>
    %113 = arith.addf %106, %112 : vector<14x14x128xf32>
    %c2_104 = arith.constant 2 : index
    %c7_105 = arith.constant 7 : index
    %c128_106 = arith.constant 128 : index
    %114 = vector.load %arg5[%c2_104, %c7_105, %c128_106] : memref<16x24x384xf32, #tpu.memory_space<vmem>>, vector<14x14x128xf32>
    %c2_107 = arith.constant 2 : index
    %c0_108 = arith.constant 0 : index
    %c128_109 = arith.constant 128 : index
    %115 = vector.load %arg3[%c2_107, %c0_108, %c128_109] : memref<3x3x384xf32, #tpu.memory_space<vmem>>, vector<1x1x128xf32>
    %116 = vector.shape_cast %115 : vector<1x1x128xf32> to vector<128xf32>
    %117 = vector.shape_cast %116 : vector<128xf32> to vector<1x1x128xf32>
    %118 = vector.broadcast %117 : vector<1x1x128xf32> to vector<14x14x128xf32>
    %119 = arith.mulf %114, %118 : vector<14x14x128xf32>
    %120 = arith.addf %113, %119 : vector<14x14x128xf32>
    %c2_110 = arith.constant 2 : index
    %c8_111 = arith.constant 8 : index
    %c128_112 = arith.constant 128 : index
    %121 = vector.load %arg5[%c2_110, %c8_111, %c128_112] : memref<16x24x384xf32, #tpu.memory_space<vmem>>, vector<14x14x128xf32>
    %c2_113 = arith.constant 2 : index
    %c1_114 = arith.constant 1 : index
    %c128_115 = arith.constant 128 : index
    %122 = vector.load %arg3[%c2_113, %c1_114, %c128_115] : memref<3x3x384xf32, #tpu.memory_space<vmem>>, vector<1x1x128xf32>
    %123 = vector.shape_cast %122 : vector<1x1x128xf32> to vector<128xf32>
    %124 = vector.shape_cast %123 : vector<128xf32> to vector<1x1x128xf32>
    %125 = vector.broadcast %124 : vector<1x1x128xf32> to vector<14x14x128xf32>
    %126 = arith.mulf %121, %125 : vector<14x14x128xf32>
    %127 = arith.addf %120, %126 : vector<14x14x128xf32>
    %c2_116 = arith.constant 2 : index
    %c9_117 = arith.constant 9 : index
    %c128_118 = arith.constant 128 : index
    %128 = vector.load %arg5[%c2_116, %c9_117, %c128_118] : memref<16x24x384xf32, #tpu.memory_space<vmem>>, vector<14x14x128xf32>
    %c2_119 = arith.constant 2 : index
    %c2_120 = arith.constant 2 : index
    %c128_121 = arith.constant 128 : index
    %129 = vector.load %arg3[%c2_119, %c2_120, %c128_121] : memref<3x3x384xf32, #tpu.memory_space<vmem>>, vector<1x1x128xf32>
    %130 = vector.shape_cast %129 : vector<1x1x128xf32> to vector<128xf32>
    %131 = vector.shape_cast %130 : vector<128xf32> to vector<1x1x128xf32>
    %132 = vector.broadcast %131 : vector<1x1x128xf32> to vector<14x14x128xf32>
    %133 = arith.mulf %128, %132 : vector<14x14x128xf32>
    %134 = arith.addf %127, %133 : vector<14x14x128xf32>
    %c0_122 = arith.constant 0 : index
    %c0_123 = arith.constant 0 : index
    %c0_124 = arith.constant 0 : index
    %c128_125 = arith.constant 128 : index
    %135 = vector.load %arg4[%c0_122, %c0_123, %c0_124, %c128_125] : memref<1x14x14x384xf32, #tpu.memory_space<vmem>>, vector<1x14x14x128xf32>
    %136 = vector.shape_cast %135 : vector<1x14x14x128xf32> to vector<14x14x128xf32>
    %137 = vector.shape_cast %134 : vector<14x14x128xf32> to vector<1x14x14x128xf32>
    tpu.vector_store %arg4[%c0_122, %c0_123, %c0_124, %c128_125], %137 {strides = array<i32>} : memref<1x14x14x384xf32, #tpu.memory_space<vmem>>, vector<1x14x14x128xf32>,
    %c0_126 = arith.constant 0 : index
    %c0_127 = arith.constant 0 : index
    %c0_128 = arith.constant 0 : index
    %c256 = arith.constant 256 : index
    %138 = vector.load %arg2[%c0_126, %c0_127, %c0_128, %c256] : memref<1x14x14x384xf32, #tpu.memory_space<vmem>>, vector<1x14x14x128xf32>
    %139 = vector.shape_cast %138 : vector<1x14x14x128xf32> to vector<14x14x128xf32>
    %c1_129 = arith.constant 1 : index
    %c8_130 = arith.constant 8 : index
    %c256_131 = arith.constant 256 : index
    %140 = vector.load %arg5[%c1_129, %c8_130, %c256_131] : memref<16x24x384xf32, #tpu.memory_space<vmem>>, vector<14x14x128xf32>
    tpu.vector_store %arg5[%c1_129, %c8_130, %c256_131], %139 {strides = array<i32>} : memref<16x24x384xf32, #tpu.memory_space<vmem>>, vector<14x14x128xf32>,
    %c0_132 = arith.constant 0 : index
    %c7_133 = arith.constant 7 : index
    %c256_134 = arith.constant 256 : index
    %141 = vector.load %arg5[%c0_132, %c7_133, %c256_134] : memref<16x24x384xf32, #tpu.memory_space<vmem>>, vector<14x14x128xf32>
    %c0_135 = arith.constant 0 : index
    %c0_136 = arith.constant 0 : index
    %c256_137 = arith.constant 256 : index
    %142 = vector.load %arg3[%c0_135, %c0_136, %c256_137] : memref<3x3x384xf32, #tpu.memory_space<vmem>>, vector<1x1x128xf32>
    %143 = vector.shape_cast %142 : vector<1x1x128xf32> to vector<128xf32>
    %144 = vector.shape_cast %143 : vector<128xf32> to vector<1x1x128xf32>
    %145 = vector.broadcast %144 : vector<1x1x128xf32> to vector<14x14x128xf32>
    %146 = arith.mulf %141, %145 : vector<14x14x128xf32>
    %c0_138 = arith.constant 0 : index
    %c8_139 = arith.constant 8 : index
    %c256_140 = arith.constant 256 : index
    %147 = vector.load %arg5[%c0_138, %c8_139, %c256_140] : memref<16x24x384xf32, #tpu.memory_space<vmem>>, vector<14x14x128xf32>
    %c0_141 = arith.constant 0 : index
    %c1_142 = arith.constant 1 : index
    %c256_143 = arith.constant 256 : index
    %148 = vector.load %arg3[%c0_141, %c1_142, %c256_143] : memref<3x3x384xf32, #tpu.memory_space<vmem>>, vector<1x1x128xf32>
    %149 = vector.shape_cast %148 : vector<1x1x128xf32> to vector<128xf32>
    %150 = vector.shape_cast %149 : vector<128xf32> to vector<1x1x128xf32>
    %151 = vector.broadcast %150 : vector<1x1x128xf32> to vector<14x14x128xf32>
    %152 = arith.mulf %147, %151 : vector<14x14x128xf32>
    %153 = arith.addf %146, %152 : vector<14x14x128xf32>
    %c0_144 = arith.constant 0 : index
    %c9_145 = arith.constant 9 : index
    %c256_146 = arith.constant 256 : index
    %154 = vector.load %arg5[%c0_144, %c9_145, %c256_146] : memref<16x24x384xf32, #tpu.memory_space<vmem>>, vector<14x14x128xf32>
    %c0_147 = arith.constant 0 : index
    %c2_148 = arith.constant 2 : index
    %c256_149 = arith.constant 256 : index
    %155 = vector.load %arg3[%c0_147, %c2_148, %c256_149] : memref<3x3x384xf32, #tpu.memory_space<vmem>>, vector<1x1x128xf32>
    %156 = vector.shape_cast %155 : vector<1x1x128xf32> to vector<128xf32>
    %157 = vector.shape_cast %156 : vector<128xf32> to vector<1x1x128xf32>
    %158 = vector.broadcast %157 : vector<1x1x128xf32> to vector<14x14x128xf32>
    %159 = arith.mulf %154, %158 : vector<14x14x128xf32>
    %160 = arith.addf %153, %159 : vector<14x14x128xf32>
    %c1_150 = arith.constant 1 : index
    %c7_151 = arith.constant 7 : index
    %c256_152 = arith.constant 256 : index
    %161 = vector.load %arg5[%c1_150, %c7_151, %c256_152] : memref<16x24x384xf32, #tpu.memory_space<vmem>>, vector<14x14x128xf32>
    %c1_153 = arith.constant 1 : index
    %c0_154 = arith.constant 0 : index
    %c256_155 = arith.constant 256 : index
    %162 = vector.load %arg3[%c1_153, %c0_154, %c256_155] : memref<3x3x384xf32, #tpu.memory_space<vmem>>, vector<1x1x128xf32>
    %163 = vector.shape_cast %162 : vector<1x1x128xf32> to vector<128xf32>
    %164 = vector.shape_cast %163 : vector<128xf32> to vector<1x1x128xf32>
    %165 = vector.broadcast %164 : vector<1x1x128xf32> to vector<14x14x128xf32>
    %166 = arith.mulf %161, %165 : vector<14x14x128xf32>
    %167 = arith.addf %160, %166 : vector<14x14x128xf32>
    %c1_156 = arith.constant 1 : index
    %c8_157 = arith.constant 8 : index
    %c256_158 = arith.constant 256 : index
    %168 = vector.load %arg5[%c1_156, %c8_157, %c256_158] : memref<16x24x384xf32, #tpu.memory_space<vmem>>, vector<14x14x128xf32>
    %c1_159 = arith.constant 1 : index
    %c1_160 = arith.constant 1 : index
    %c256_161 = arith.constant 256 : index
    %169 = vector.load %arg3[%c1_159, %c1_160, %c256_161] : memref<3x3x384xf32, #tpu.memory_space<vmem>>, vector<1x1x128xf32>
    %170 = vector.shape_cast %169 : vector<1x1x128xf32> to vector<128xf32>
    %171 = vector.shape_cast %170 : vector<128xf32> to vector<1x1x128xf32>
    %172 = vector.broadcast %171 : vector<1x1x128xf32> to vector<14x14x128xf32>
    %173 = arith.mulf %168, %172 : vector<14x14x128xf32>
    %174 = arith.addf %167, %173 : vector<14x14x128xf32>
    %c1_162 = arith.constant 1 : index
    %c9_163 = arith.constant 9 : index
    %c256_164 = arith.constant 256 : index
    %175 = vector.load %arg5[%c1_162, %c9_163, %c256_164] : memref<16x24x384xf32, #tpu.memory_space<vmem>>, vector<14x14x128xf32>
    %c1_165 = arith.constant 1 : index
    %c2_166 = arith.constant 2 : index
    %c256_167 = arith.constant 256 : index
    %176 = vector.load %arg3[%c1_165, %c2_166, %c256_167] : memref<3x3x384xf32, #tpu.memory_space<vmem>>, vector<1x1x128xf32>
    %177 = vector.shape_cast %176 : vector<1x1x128xf32> to vector<128xf32>
    %178 = vector.shape_cast %177 : vector<128xf32> to vector<1x1x128xf32>
    %179 = vector.broadcast %178 : vector<1x1x128xf32> to vector<14x14x128xf32>
    %180 = arith.mulf %175, %179 : vector<14x14x128xf32>
    %181 = arith.addf %174, %180 : vector<14x14x128xf32>
    %c2_168 = arith.constant 2 : index
    %c7_169 = arith.constant 7 : index
    %c256_170 = arith.constant 256 : index
    %182 = vector.load %arg5[%c2_168, %c7_169, %c256_170] : memref<16x24x384xf32, #tpu.memory_space<vmem>>, vector<14x14x128xf32>
    %c2_171 = arith.constant 2 : index
    %c0_172 = arith.constant 0 : index
    %c256_173 = arith.constant 256 : index
    %183 = vector.load %arg3[%c2_171, %c0_172, %c256_173] : memref<3x3x384xf32, #tpu.memory_space<vmem>>, vector<1x1x128xf32>
    %184 = vector.shape_cast %183 : vector<1x1x128xf32> to vector<128xf32>
    %185 = vector.shape_cast %184 : vector<128xf32> to vector<1x1x128xf32>
    %186 = vector.broadcast %185 : vector<1x1x128xf32> to vector<14x14x128xf32>
    %187 = arith.mulf %182, %186 : vector<14x14x128xf32>
    %188 = arith.addf %181, %187 : vector<14x14x128xf32>
    %c2_174 = arith.constant 2 : index
    %c8_175 = arith.constant 8 : index
    %c256_176 = arith.constant 256 : index
    %189 = vector.load %arg5[%c2_174, %c8_175, %c256_176] : memref<16x24x384xf32, #tpu.memory_space<vmem>>, vector<14x14x128xf32>
    %c2_177 = arith.constant 2 : index
    %c1_178 = arith.constant 1 : index
    %c256_179 = arith.constant 256 : index
    %190 = vector.load %arg3[%c2_177, %c1_178, %c256_179] : memref<3x3x384xf32, #tpu.memory_space<vmem>>, vector<1x1x128xf32>
    %191 = vector.shape_cast %190 : vector<1x1x128xf32> to vector<128xf32>
    %192 = vector.shape_cast %191 : vector<128xf32> to vector<1x1x128xf32>
    %193 = vector.broadcast %192 : vector<1x1x128xf32> to vector<14x14x128xf32>
    %194 = arith.mulf %189, %193 : vector<14x14x128xf32>
    %195 = arith.addf %188, %194 : vector<14x14x128xf32>
    %c2_180 = arith.constant 2 : index
    %c9_181 = arith.constant 9 : index
    %c256_182 = arith.constant 256 : index
    %196 = vector.load %arg5[%c2_180, %c9_181, %c256_182] : memref<16x24x384xf32, #tpu.memory_space<vmem>>, vector<14x14x128xf32>
    %c2_183 = arith.constant 2 : index
    %c2_184 = arith.constant 2 : index
    %c256_185 = arith.constant 256 : index
    %197 = vector.load %arg3[%c2_183, %c2_184, %c256_185] : memref<3x3x384xf32, #tpu.memory_space<vmem>>, vector<1x1x128xf32>
    %198 = vector.shape_cast %197 : vector<1x1x128xf32> to vector<128xf32>
    %199 = vector.shape_cast %198 : vector<128xf32> to vector<1x1x128xf32>
    %200 = vector.broadcast %199 : vector<1x1x128xf32> to vector<14x14x128xf32>
    %201 = arith.mulf %196, %200 : vector<14x14x128xf32>
    %202 = arith.addf %195, %201 : vector<14x14x128xf32>
    %c0_186 = arith.constant 0 : index
    %c0_187 = arith.constant 0 : index
    %c0_188 = arith.constant 0 : index
    %c256_189 = arith.constant 256 : index
    %203 = vector.load %arg4[%c0_186, %c0_187, %c0_188, %c256_189] : memref<1x14x14x384xf32, #tpu.memory_space<vmem>>, vector<1x14x14x128xf32>
    %204 = vector.shape_cast %203 : vector<1x14x14x128xf32> to vector<14x14x128xf32>
    %205 = vector.shape_cast %202 : vector<14x14x128xf32> to vector<1x14x14x128xf32>
    tpu.vector_store %arg4[%c0_186, %c0_187, %c0_188, %c256_189], %205 {strides = array<i32>} : memref<1x14x14x384xf32, #tpu.memory_space<vmem>>, vector<1x14x14x128xf32>,
    return
  }
  func.func @transform_0(%arg0: i32, %arg1: i32) -> (i32, i32, i32, i32) {
    %c0_i32 = arith.constant 0 : i32
    %c0_i32_0 = arith.constant 0 : i32
    %c0_i32_1 = arith.constant 0 : i32
    return %arg0, %c0_i32, %c0_i32_0, %arg1 : i32, i32, i32, i32
  }
  func.func @transform_1(%arg0: i32, %arg1: i32) -> (i32, i32, i32) {
    %c0_i32 = arith.constant 0 : i32
    %c0_i32_0 = arith.constant 0 : i32
    %c0_i32_1 = arith.constant 0 : i32
    return %c0_i32, %c0_i32_0, %arg1 : i32, i32, i32
  }
  func.func @transform_2(%arg0: i32, %arg1: i32) -> (i32, i32, i32, i32) {
    %c0_i32 = arith.constant 0 : i32
    %c0_i32_0 = arith.constant 0 : i32
    %c0_i32_1 = arith.constant 0 : i32
    return %arg0, %c0_i32, %c0_i32_0, %arg1 : i32, i32, i32, i32
  }
}

</mosaic_0001>

<llo_original>
// kernel: depthwise_conv3x3.1
$region0: #{depthwise_conv3x3.1}
  #allocation0 [shape = 'u32[]', space=smem, size = 0x4, offset = 0x4, fixed_abs, tag = 'smem constant byte address 0x4 - core index']
  #allocation1 [shape = 'u32[72,128]{1,0:T(1,128)}', space=vmem, size = 0x9000, scoped, tag = 'internal scratch']
  #allocation2 [shape = 'f32[16,24,384]{2,1,0:T(8,128)}', space=vmem, size = 0x90000, scoped, tag = 'scratch operand']
  %s0 = inlined_call_operand.vmem [shape: f32[1,14,14,1152], index: 0, kind: input, shape index: {}]
  %s1 = inlined_call_operand.vmem [shape: f32[3,3,1152], index: 1, kind: input, shape index: {}]
  %s2 = inlined_call_operand.vmem [shape: f32[1,14,14,1152], index: 2, kind: output, shape index: {}]
  %s3 = sld [smem:[#allocation0]]
  $region109: #{depthwise_conv3x3.1} parent=0
    _
  %s5 = ssub.s32 1, %s3
  %s6 = scalar_select 0, %s5, %s3
  $region1: #{depthwise_conv3x3.1} parent=0
    #allocation3 [shape = 'u8[688128]{0}', space=vmem, size = 0xa8000, scoped, tag = 'input window, operand 0']
    #allocation4 [shape = 'u8[36864]{0}', space=vmem, size = 0x9000, scoped, tag = 'input window, operand 1']
    #allocation5 [shape = 'u8[688128]{0}', space=vmem, size = 0xa8000, scoped, tag = 'output window, operand 0']
    loop: start=0, step=1, limit=5
    $region2: #{depthwise_conv3x3.1} parent=1 // loop_pre_header
      _
    $region3: #{depthwise_conv3x3.1} parent=1 // loop_header
      %s8 = sphi 0, %s12
      %p9 = scmp.ge.s32.totalorder %s8, 5
      %s15 = sphi 0, %s27
      %s16 = sphi 0, %s23
      %s17 = sphi 0, %s15
      %s18 = sphi 0, %s16
      %s19 = sphi 0, %s17
      %s20 = sphi 0, %s18
      %s32 = sphi 0, %s34
      %s35 = sphi 0, %s32
      %s36 = sphi 0, %s35
      %s52 = sphi 0, %s36
      %s58 = sphi 0, %s60
      %s61 = sphi 0, %s58
      %s62 = sphi 0, %s61
      %s78 = sphi 0, %s62
      %s86 = sphi 0, %s88
      %s89 = sphi 0, %s86
      %s90 = sphi 0, %s89
      %s106 = sphi 0, %s90
    $region4: #{depthwise_conv3x3.1} parent=1 // loop_header_branch
      %11 = sbr.rel (%p9) target = $region8
    $region5: #{depthwise_conv3x3.1} parent=1 // loop_body
      %s13 = ssub.s32 %s8, 1
      %s14 = ssub.s32 %s8, 2
      %s21 = sadd.s32 1, %s16
      %p22 = scmp.ge.s32.totalorder %s21, 3
      %s23 = scalar_select %p22, 0, %s21
      %s24 = sadd.s32 1, %s15
      %s25 = scalar_select %p22, %s24, %s15
      %p26 = scmp.ge.s32.totalorder %s25, 1
      %s27 = scalar_select %p26, 0, %s25
      %s28 = ssub.s32 %s15, %s27
      %s29 = ssub.s32 %s16, %s23
      %s30 = sor.u32 %s28, %s29
      %p31 = scmp.eq.s32.totalorder %s30, 0
      %s33 = sadd.s32 %s32, 1
      %s34 = scalar_select %p31, %s32, %s33
      %p37 = pneg %p31
      %p38 = scmp.eq.s32.totalorder %s8, 2
      %p39 = por %p37, %p38
      %p40 = scmp.ne.s32.totalorder %s32, %s35
      %p41 = scmp.eq.s32.totalorder %s8, 0
      %p42 = por %p40, %p41
      %p43 = scmp.ne.s32.totalorder %s32, %s35
      %p44 = scmp.eq.s32.totalorder %s13, 2
      %p45 = por %p43, %p44
      %p46 = scmp.ne.s32.totalorder %s35, %s36
      %p47 = scmp.eq.s32.totalorder %s13, 0
      %p48 = por %p46, %p47
      %p49 = scmp.ne.s32.totalorder %s35, %s36
      %p50 = scmp.eq.s32.totalorder %s14, 2
      %p51 = por %p49, %p50
      %p53 = scmp.ne.s32.totalorder %s36, %s52
      %p54 = scmp.eq.s32.totalorder %s14, 0
      %p55 = por %p53, %p54
      %s56 = ssub.s32 %s16, %s23
      %p57 = scmp.eq.s32.totalorder %s56, 0
      %s59 = sadd.s32 %s58, 1
      %s60 = scalar_select %p57, %s58, %s59
      %p63 = pneg %p57
      %p64 = scmp.eq.s32.totalorder %s8, 2
      %p65 = por %p63, %p64
      %p66 = scmp.ne.s32.totalorder %s58, %s61
      %p67 = scmp.eq.s32.totalorder %s8, 0
      %p68 = por %p66, %p67
      %p69 = scmp.ne.s32.totalorder %s58, %s61
      %p70 = scmp.eq.s32.totalorder %s13, 2
      %p71 = por %p69, %p70
      %p72 = scmp.ne.s32.totalorder %s61, %s62
      %p73 = scmp.eq.s32.totalorder %s13, 0
      %p74 = por %p72, %p73
      %p75 = scmp.ne.s32.totalorder %s61, %s62
      %p76 = scmp.eq.s32.totalorder %s14, 2
      %p77 = por %p75, %p76
      %p79 = scmp.ne.s32.totalorder %s62, %s78
      %p80 = scmp.eq.s32.totalorder %s14, 0
      %p81 = por %p79, %p80
      %s82 = ssub.s32 %s15, %s27
      %s83 = ssub.s32 %s16, %s23
      %s84 = sor.u32 %s82, %s83
      %p85 = scmp.eq.s32.totalorder %s84, 0
      %s87 = sadd.s32 %s86, 1
      %s88 = scalar_select %p85, %s86, %s87
      %p91 = pneg %p85
      %p92 = scmp.eq.s32.totalorder %s8, 2
      %p93 = por %p91, %p92
      %p94 = scmp.ne.s32.totalorder %s86, %s89
      %p95 = scmp.eq.s32.totalorder %s8, 0
      %p96 = por %p94, %p95
      %p97 = scmp.ne.s32.totalorder %s86, %s89
      %p98 = scmp.eq.s32.totalorder %s13, 2
      %p99 = por %p97, %p98
      %p100 = scmp.ne.s32.totalorder %s89, %s90
      %p101 = scmp.eq.s32.totalorder %s13, 0
      %p102 = por %p100, %p101
      %p103 = scmp.ne.s32.totalorder %s89, %s90
      %p104 = scmp.eq.s32.totalorder %s14, 2
      %p105 = por %p103, %p104
      %p107 = scmp.ne.s32.totalorder %s90, %s106
      %p108 = scmp.eq.s32.totalorder %s14, 0
      %p109 = por %p107, %p108
      %p110 = scmp.le.s32.totalorder 1, %s8
      %p111 = scmp.lt.s32.totalorder %s8, 4
      %p112 = pnand %p110, %p111
      %p113 = pneg %p112
      // Predicated region
      $region9: #{depthwise_conv3x3.1} parent=5 // pred_check
        _
      $region10: #{depthwise_conv3x3.1} parent=5 // pred_check_branch
        %115 = sbr.rel (%p112) target = $region12
      $region11: #{depthwise_conv3x3.1} parent=5 // pred_region
        %s116 = ssub.s32 %s8, 1
      $region12: #{depthwise_conv3x3.1} parent=5 // pred_fallthru
        _
      %p117 = scmp.lt.s32.totalorder %s8, 3
      // Predicated region
      $region13: #{depthwise_conv3x3.1} parent=5 // pred_check
        %p118 = pneg %p117
      $region14: #{depthwise_conv3x3.1} parent=5 // pred_check_branch
        %120 = sbr.rel (%p118) target = $region16
      $region15: #{depthwise_conv3x3.1} parent=5 // pred_region
        // Predicated region
        $region17: #{depthwise_conv3x3.1} parent=15 // pred_check
          %p121 = pneg %p42
        $region18: #{depthwise_conv3x3.1} parent=15 // pred_check_branch
          %123 = sbr.rel (%p121) target = $region20
        $region19: #{depthwise_conv3x3.1} parent=15 // pred_region
          %s124 = sand.u32 %s32, 1
          %s125 = sand.u32 %s32, 1
          %s126 = smul.addr %s125, 672
          %s127 = scalar_lea.vmem [#allocation3], %s126
          %s128 = smul.u32 3, %s16
          %s129 = smul.addr %s15, 252
          %s130 = sadd.s32 %s128, %s129
          %s131 = smul.addr %s130, 8
          %s132 = scalar_lea.vmem %s0, %s131
          // Predicated region
          $region21: #{depthwise_conv3x3.1} parent=19 // pred_check
            _
          $region22: #{depthwise_conv3x3.1} parent=19 // pred_check_branch
            %134 = sbr.rel (0) target = $region24
          $region23: #{depthwise_conv3x3.1} parent=19 // pred_region
            // Predicated region
            $region25: #{depthwise_conv3x3.1} parent=23 // pred_check
              _
            $region26: #{depthwise_conv3x3.1} parent=23 // pred_check_branch
              %136 = sbr.rel (0) target = $region28
            $region27: #{depthwise_conv3x3.1} parent=23 // pred_region
              loop: start=0, step=1, limit=1
              $region29: #{depthwise_conv3x3.1} parent=27 // loop_pre_header
                _
              $region30: #{depthwise_conv3x3.1} parent=27 // loop_header
                %s138 = sphi 0, %s142
                %p139 = scmp.ge.s32.totalorder %s138, 1
                %s143 = sphi %s132, %s132
                %s144 = sphi %s127, %s127
              $region31: #{depthwise_conv3x3.1} parent=27 // loop_header_branch
                %141 = sbr.rel (%p139) target = $region35
              $region32: #{depthwise_conv3x3.1} parent=27 // loop_body
                %v145 = vld [vmem:[%s143] sm:$0xff]
                %146 = vst [vmem:[%s144] sm:$0xff] %v145
                %v147 = vld [vmem:[%s143 + $0x8] sm:$0xff]
                %148 = vst [vmem:[%s144 + $0x8] sm:$0xff] %v147
                %v149 = vld [vmem:[%s143 + $0x10] sm:$0xff]
                %150 = vst [vmem:[%s144 + $0x10] sm:$0xff] %v149
                %v151 = vld [vmem:[%s143 + $0x48] sm:$0xff]
                %152 = vst [vmem:[%s144 + $0x18] sm:$0xff] %v151
                %v153 = vld [vmem:[%s143 + $0x50] sm:$0xff]
                %154 = vst [vmem:[%s144 + $0x20] sm:$0xff] %v153
                %v155 = vld [vmem:[%s143 + $0x58] sm:$0xff]
                %156 = vst [vmem:[%s144 + $0x28] sm:$0xff] %v155
                %v157 = vld [vmem:[%s143 + $0x90] sm:$0xff]
                %158 = vst [vmem:[%s144 + $0x30] sm:$0xff] %v157
                %v159 = vld [vmem:[%s143 + $0x98] sm:$0xff]
                %160 = vst [vmem:[%s144 + $0x38] sm:$0xff] %v159
                %v161 = vld [vmem:[%s143 + $0xa0] sm:$0xff]
                %162 = vst [vmem:[%s144 + $0x40] sm:$0xff] %v161
                %v163 = vld [vmem:[%s143 + $0xd8] sm:$0xff]
                %164 = vst [vmem:[%s144 + $0x48] sm:$0xff] %v163
                %v165 = vld [vmem:[%s143 + $0xe0] sm:$0xff]
                %166 = vst [vmem:[%s144 + $0x50] sm:$0xff] %v165
                %v167 = vld [vmem:[%s143 + $0xe8] sm:$0xff]
                %168 = vst [vmem:[%s144 + $0x58] sm:$0xff] %v167
                %v169 = vld [vmem:[%s143 + $0x120] sm:$0xff]
                %170 = vst [vmem:[%s144 + $0x60] sm:$0xff] %v169
                %v171 = vld [vmem:[%s143 + $0x128] sm:$0xff]
                %172 = vst [vmem:[%s144 + $0x68] sm:$0xff] %v171
                %v173 = vld [vmem:[%s143 + $0x130] sm:$0xff]
                %174 = vst [vmem:[%s144 + $0x70] sm:$0xff] %v173
                %v175 = vld [vmem:[%s143 + $0x168] sm:$0xff]
                %176 = vst [vmem:[%s144 + $0x78] sm:$0xff] %v175
                %v177 = vld [vmem:[%s143 + $0x170] sm:$0xff]
                %178 = vst [vmem:[%s144 + $0x80] sm:$0xff] %v177
                %v179 = vld [vmem:[%s143 + $0x178] sm:$0xff]
                %180 = vst [vmem:[%s144 + $0x88] sm:$0xff] %v179
                %v181 = vld [vmem:[%s143 + $0x1b0] sm:$0xff]
                %182 = vst [vmem:[%s144 + $0x90] sm:$0xff] %v181
                %v183 = vld [vmem:[%s143 + $0x1b8] sm:$0xff]
                %184 = vst [vmem:[%s144 + $0x98] sm:$0xff] %v183
                %v185 = vld [vmem:[%s143 + $0x1c0] sm:$0xff]
                %186 = vst [vmem:[%s144 + $0xa0] sm:$0xff] %v185
                %v187 = vld [vmem:[%s143 + $0x1f8] sm:$0xff]
                %188 = vst [vmem:[%s144 + $0xa8] sm:$0xff] %v187
                %v189 = vld [vmem:[%s143 + $0x200] sm:$0xff]
                %190 = vst [vmem:[%s144 + $0xb0] sm:$0xff] %v189
                %v191 = vld [vmem:[%s143 + $0x208] sm:$0xff]
                %192 = vst [vmem:[%s144 + $0xb8] sm:$0xff] %v191
                %v193 = vld [vmem:[%s143 + $0x240] sm:$0xff]
                %194 = vst [vmem:[%s144 + $0xc0] sm:$0xff] %v193
                %v195 = vld [vmem:[%s143 + $0x248] sm:$0xff]
                %196 = vst [vmem:[%s144 + $0xc8] sm:$0xff] %v195
                %v197 = vld [vmem:[%s143 + $0x250] sm:$0xff]
                %198 = vst [vmem:[%s144 + $0xd0] sm:$0xff] %v197
                %v199 = vld [vmem:[%s143 + $0x288] sm:$0xff]
                %200 = vst [vmem:[%s144 + $0xd8] sm:$0xff] %v199
                %v201 = vld [vmem:[%s143 + $0x290] sm:$0xff]
                %202 = vst [vmem:[%s144 + $0xe0] sm:$0xff] %v201
                %v203 = vld [vmem:[%s143 + $0x298] sm:$0xff]
                %204 = vst [vmem:[%s144 + $0xe8] sm:$0xff] %v203
                %v205 = vld [vmem:[%s143 + $0x2d0] sm:$0xff]
                %206 = vst [vmem:[%s144 + $0xf0] sm:$0xff] %v205
                %v207 = vld [vmem:[%s143 + $0x2d8] sm:$0xff]
                %208 = vst [vmem:[%s144 + $0xf8] sm:$0xff] %v207
                %v209 = vld [vmem:[%s143 + $0x2e0] sm:$0xff]
                %210 = vst [vmem:[%s144 + $0x100] sm:$0xff] %v209
                %v211 = vld [vmem:[%s143 + $0x318] sm:$0xff]
                %212 = vst [vmem:[%s144 + $0x108] sm:$0xff] %v211
                %v213 = vld [vmem:[%s143 + $0x320] sm:$0xff]
                %214 = vst [vmem:[%s144 + $0x110] sm:$0xff] %v213
                %v215 = vld [vmem:[%s143 + $0x328] sm:$0xff]
                %216 = vst [vmem:[%s144 + $0x118] sm:$0xff] %v215
                %v217 = vld [vmem:[%s143 + $0x360] sm:$0xff]
                %218 = vst [vmem:[%s144 + $0x120] sm:$0xff] %v217
                %v219 = vld [vmem:[%s143 + $0x368] sm:$0xff]
                %220 = vst [vmem:[%s144 + $0x128] sm:$0xff] %v219
                %v221 = vld [vmem:[%s143 + $0x370] sm:$0xff]
                %222 = vst [vmem:[%s144 + $0x130] sm:$0xff] %v221
                %v223 = vld [vmem:[%s143 + $0x3a8] sm:$0xff]
                %224 = vst [vmem:[%s144 + $0x138] sm:$0xff] %v223
                %v225 = vld [vmem:[%s143 + $0x3b0] sm:$0xff]
                %226 = vst [vmem:[%s144 + $0x140] sm:$0xff] %v225
                %v227 = vld [vmem:[%s143 + $0x3b8] sm:$0xff]
                %228 = vst [vmem:[%s144 + $0x148] sm:$0xff] %v227
                %v229 = vld [vmem:[%s143 + $0x3f0] sm:$0xff]
                %230 = vst [vmem:[%s144 + $0x150] sm:$0xff] %v229
                %v231 = vld [vmem:[%s143 + $0x3f8] sm:$0xff]
                %232 = vst [vmem:[%s144 + $0x158] sm:$0xff] %v231
                %v233 = vld [vmem:[%s143 + $0x400] sm:$0xff]
                %234 = vst [vmem:[%s144 + $0x160] sm:$0xff] %v233
                %v235 = vld [vmem:[%s143 + $0x438] sm:$0xff]
                %236 = vst [vmem:[%s144 + $0x168] sm:$0xff] %v235
                %v237 = vld [vmem:[%s143 + $0x440] sm:$0xff]
                %238 = vst [vmem:[%s144 + $0x170] sm:$0xff] %v237
                %v239 = vld [vmem:[%s143 + $0x448] sm:$0xff]
                %240 = vst [vmem:[%s144 + $0x178] sm:$0xff] %v239
                %v241 = vld [vmem:[%s143 + $0x480] sm:$0xff]
                %242 = vst [vmem:[%s144 + $0x180] sm:$0xff] %v241
                %v243 = vld [vmem:[%s143 + $0x488] sm:$0xff]
                %244 = vst [vmem:[%s144 + $0x188] sm:$0xff] %v243
                %v245 = vld [vmem:[%s143 + $0x490] sm:$0xff]
                %246 = vst [vmem:[%s144 + $0x190] sm:$0xff] %v245
                %v247 = vld [vmem:[%s143 + $0x4c8] sm:$0xff]
                %248 = vst [vmem:[%s144 + $0x198] sm:$0xff] %v247
                %v249 = vld [vmem:[%s143 + $0x4d0] sm:$0xff]
                %250 = vst [vmem:[%s144 + $0x1a0] sm:$0xff] %v249
                %v251 = vld [vmem:[%s143 + $0x4d8] sm:$0xff]
                %252 = vst [vmem:[%s144 + $0x1a8] sm:$0xff] %v251
                %v253 = vld [vmem:[%s143 + $0x510] sm:$0xff]
                %254 = vst [vmem:[%s144 + $0x1b0] sm:$0xff] %v253
                %v255 = vld [vmem:[%s143 + $0x518] sm:$0xff]
                %256 = vst [vmem:[%s144 + $0x1b8] sm:$0xff] %v255
                %v257 = vld [vmem:[%s143 + $0x520] sm:$0xff]
                %258 = vst [vmem:[%s144 + $0x1c0] sm:$0xff] %v257
                %v259 = vld [vmem:[%s143 + $0x558] sm:$0xff]
                %260 = vst [vmem:[%s144 + $0x1c8] sm:$0xff] %v259
                %v261 = vld [vmem:[%s143 + $0x560] sm:$0xff]
                %262 = vst [vmem:[%s144 + $0x1d0] sm:$0xff] %v261
                %v263 = vld [vmem:[%s143 + $0x568] sm:$0xff]
                %264 = vst [vmem:[%s144 + $0x1d8] sm:$0xff] %v263
                %v265 = vld [vmem:[%s143 + $0x5a0] sm:$0xff]
                %266 = vst [vmem:[%s144 + $0x1e0] sm:$0xff] %v265
                %v267 = vld [vmem:[%s143 + $0x5a8] sm:$0xff]
                %268 = vst [vmem:[%s144 + $0x1e8] sm:$0xff] %v267
                %v269 = vld [vmem:[%s143 + $0x5b0] sm:$0xff]
                %270 = vst [vmem:[%s144 + $0x1f0] sm:$0xff] %v269
                %v271 = vld [vmem:[%s143 + $0x5e8] sm:$0xff]
                %272 = vst [vmem:[%s144 + $0x1f8] sm:$0xff] %v271
                %v273 = vld [vmem:[%s143 + $0x5f0] sm:$0xff]
                %274 = vst [vmem:[%s144 + $0x200] sm:$0xff] %v273
                %v275 = vld [vmem:[%s143 + $0x5f8] sm:$0xff]
                %276 = vst [vmem:[%s144 + $0x208] sm:$0xff] %v275
                %v277 = vld [vmem:[%s143 + $0x630] sm:$0xff]
                %278 = vst [vmem:[%s144 + $0x210] sm:$0xff] %v277
                %v279 = vld [vmem:[%s143 + $0x638] sm:$0xff]
                %280 = vst [vmem:[%s144 + $0x218] sm:$0xff] %v279
                %v281 = vld [vmem:[%s143 + $0x640] sm:$0xff]
                %282 = vst [vmem:[%s144 + $0x220] sm:$0xff] %v281
                %v283 = vld [vmem:[%s143 + $0x678] sm:$0xff]
                %284 = vst [vmem:[%s144 + $0x228] sm:$0xff] %v283
                %v285 = vld [vmem:[%s143 + $0x680] sm:$0xff]
                %286 = vst [vmem:[%s144 + $0x230] sm:$0xff] %v285
                %v287 = vld [vmem:[%s143 + $0x688] sm:$0xff]
                %288 = vst [vmem:[%s144 + $0x238] sm:$0xff] %v287
                %v289 = vld [vmem:[%s143 + $0x6c0] sm:$0xff]
                %290 = vst [vmem:[%s144 + $0x240] sm:$0xff] %v289
                %v291 = vld [vmem:[%s143 + $0x6c8] sm:$0xff]
                %292 = vst [vmem:[%s144 + $0x248] sm:$0xff] %v291
                %v293 = vld [vmem:[%s143 + $0x6d0] sm:$0xff]
                %294 = vst [vmem:[%s144 + $0x250] sm:$0xff] %v293
                %v295 = vld [vmem:[%s143 + $0x708] sm:$0xff]
                %296 = vst [vmem:[%s144 + $0x258] sm:$0xff] %v295
                %v297 = vld [vmem:[%s143 + $0x710] sm:$0xff]
                %298 = vst [vmem:[%s144 + $0x260] sm:$0xff] %v297
                %v299 = vld [vmem:[%s143 + $0x718] sm:$0xff]
                %300 = vst [vmem:[%s144 + $0x268] sm:$0xff] %v299
                %v301 = vld [vmem:[%s143 + $0x750] sm:$0xff]
                %302 = vst [vmem:[%s144 + $0x270] sm:$0xff] %v301
                %v303 = vld [vmem:[%s143 + $0x758] sm:$0xff]
                %304 = vst [vmem:[%s144 + $0x278] sm:$0xff] %v303
                %v305 = vld [vmem:[%s143 + $0x760] sm:$0xff]
                %306 = vst [vmem:[%s144 + $0x280] sm:$0xff] %v305
                %v307 = vld [vmem:[%s143 + $0x798] sm:$0xff]
                %308 = vst [vmem:[%s144 + $0x288] sm:$0xff] %v307
                %v309 = vld [vmem:[%s143 + $0x7a0] sm:$0xff]
                %310 = vst [vmem:[%s144 + $0x290] sm:$0xff] %v309
                %v311 = vld [vmem:[%s143 + $0x7a8] sm:$0xff]
                %312 = vst [vmem:[%s144 + $0x298] sm:$0xff] %v311
              $region33: #{depthwise_conv3x3.1} parent=27 // loop_footer
                %s142 = sadd.s32 1, %s138
              $region34: #{depthwise_conv3x3.1} parent=27 // loop_footer_branch
                %137 = sbr.rel target = $region30
              $region35: #{depthwise_conv3x3.1} parent=27 // loop_exit
                _
            $region28: #{depthwise_conv3x3.1} parent=23 // pred_fallthru
              _
            // Predicated region
            $region36: #{depthwise_conv3x3.1} parent=23 // pred_check
              _
            $region37: #{depthwise_conv3x3.1} parent=23 // pred_check_branch
              %314 = sbr.rel target = $region39
            $region38: #{depthwise_conv3x3.1} parent=23 // pred_region
              _
            $region39: #{depthwise_conv3x3.1} parent=23 // pred_fallthru
              _
          $region24: #{depthwise_conv3x3.1} parent=19 // pred_fallthru
            _
          %315 = vnop
        $region20: #{depthwise_conv3x3.1} parent=15 // pred_fallthru
          _
        // Predicated region
        $region40: #{depthwise_conv3x3.1} parent=15 // pred_check
          %p316 = pneg %p68
        $region41: #{depthwise_conv3x3.1} parent=15 // pred_check_branch
          %318 = sbr.rel (%p316) target = $region43
        $region42: #{depthwise_conv3x3.1} parent=15 // pred_region
          %s319 = sand.u32 %s58, 1
          %s320 = sand.u32 %s58, 1
          %s321 = smul.addr %s320, 36
          %s322 = scalar_lea.vmem [#allocation4], %s321
          %s323 = smul.u32 3, %s16
          %s324 = smul.addr %s323, 4
          %s325 = scalar_lea.vmem %s1, %s324
          // Predicated region
          $region44: #{depthwise_conv3x3.1} parent=42 // pred_check
            _
          $region45: #{depthwise_conv3x3.1} parent=42 // pred_check_branch
            %327 = sbr.rel (0) target = $region47
          $region46: #{depthwise_conv3x3.1} parent=42 // pred_region
            // Predicated region
            $region48: #{depthwise_conv3x3.1} parent=46 // pred_check
              _
            $region49: #{depthwise_conv3x3.1} parent=46 // pred_check_branch
              %329 = sbr.rel (0) target = $region51
            $region50: #{depthwise_conv3x3.1} parent=46 // pred_region
              %s330 = scalar_lea.vmem %s325, 8
              %s331 = scalar_lea.vmem %s322, 8 [#allocation4]
              loop: start=0, step=1, limit=1
              $region52: #{depthwise_conv3x3.1} parent=50 // loop_pre_header
                _
              $region53: #{depthwise_conv3x3.1} parent=50 // loop_header
                %s333 = sphi 0, %s337
                %p334 = scmp.ge.s32.totalorder %s333, 1
                %s338 = sphi %s325, %s325
                %s339 = sphi %s322, %s322
              $region54: #{depthwise_conv3x3.1} parent=50 // loop_header_branch
                %336 = sbr.rel (%p334) target = $region58
              $region55: #{depthwise_conv3x3.1} parent=50 // loop_body
                %v340 = vld [vmem:[%s338] sm:$0xff]
                %341 = vst [vmem:[%s339] sm:$0xff] %v340
                %v342 = vld [vmem:[%s338 + $0x24] sm:$0xff]
                %343 = vst [vmem:[%s339 + $0xc] sm:$0xff] %v342
                %v344 = vld [vmem:[%s338 + $0x48] sm:$0xff]
                %345 = vst [vmem:[%s339 + $0x18] sm:$0xff] %v344
              $region56: #{depthwise_conv3x3.1} parent=50 // loop_footer
                %s337 = sadd.s32 1, %s333
              $region57: #{depthwise_conv3x3.1} parent=50 // loop_footer_branch
                %332 = sbr.rel target = $region53
              $region58: #{depthwise_conv3x3.1} parent=50 // loop_exit
                _
              %s347 = ssub.s32 16, 1
              loop: start=0, step=1, limit=1
              $region59: #{depthwise_conv3x3.1} parent=50 // loop_pre_header
                _
              $region60: #{depthwise_conv3x3.1} parent=50 // loop_header
                %s349 = sphi 0, %s353
                %p350 = scmp.ge.s32.totalorder %s349, 1
                %s354 = sphi %s330, %s330
                %s355 = sphi %s331, %s331
              $region61: #{depthwise_conv3x3.1} parent=50 // loop_header_branch
                %352 = sbr.rel (%p350) target = $region65
              $region62: #{depthwise_conv3x3.1} parent=50 // loop_body
                %v356 = vld [vmem:[%s354] sm:%s347]
                %357 = vst [vmem:[%s355] sm:%s347] %v356
                %v358 = vld [vmem:[%s354 + $0x24] sm:%s347]
                %359 = vst [vmem:[%s355 + $0xc] sm:%s347] %v358
                %v360 = vld [vmem:[%s354 + $0x48] sm:%s347]
                %361 = vst [vmem:[%s355 + $0x18] sm:%s347] %v360
              $region63: #{depthwise_conv3x3.1} parent=50 // loop_footer
                %s353 = sadd.s32 1, %s349
              $region64: #{depthwise_conv3x3.1} parent=50 // loop_footer_branch
                %348 = sbr.rel target = $region60
              $region65: #{depthwise_conv3x3.1} parent=50 // loop_exit
                _
            $region51: #{depthwise_conv3x3.1} parent=46 // pred_fallthru
              _
          $region47: #{depthwise_conv3x3.1} parent=42 // pred_fallthru
            _
          %362 = vnop
        $region43: #{depthwise_conv3x3.1} parent=15 // pred_fallthru
          _
      $region16: #{depthwise_conv3x3.1} parent=5 // pred_fallthru
        _
      %p363 = scmp.le.s32.totalorder 1, %s8
      %p364 = scmp.lt.s32.totalorder %s8, 4
      %p365 = pnand %p363, %p364
      %p366 = pneg %p365
      // Predicated region
      $region66: #{depthwise_conv3x3.1} parent=5 // pred_check
        _
      $region67: #{depthwise_conv3x3.1} parent=5 // pred_check_branch
        %368 = sbr.rel (%p365) target = $region69
      $region68: #{depthwise_conv3x3.1} parent=5 // pred_region
        %s369 = ssub.s32 %s8, 1
        %s370 = sand.u32 %s35, 1
        %s371 = sand.u32 %s35, 1
        %s372 = smul.addr %s371, 672
        %s373 = scalar_lea.vmem [#allocation3], %s372
        // Predicated region
        $region70: #{depthwise_conv3x3.1} parent=68 // pred_check
          %p374 = pneg %p48
        $region71: #{depthwise_conv3x3.1} parent=68 // pred_check_branch
          %376 = sbr.rel (%p374) target = $region73
        $region72: #{depthwise_conv3x3.1} parent=68 // pred_region
          _
        $region73: #{depthwise_conv3x3.1} parent=68 // pred_fallthru
          _
        %s377 = sand.u32 %s61, 1
        %s378 = sand.u32 %s61, 1
        %s379 = smul.addr %s378, 36
        %s380 = scalar_lea.vmem [#allocation4], %s379
        // Predicated region
        $region74: #{depthwise_conv3x3.1} parent=68 // pred_check
          %p381 = pneg %p74
        $region75: #{depthwise_conv3x3.1} parent=68 // pred_check_branch
          %383 = sbr.rel (%p381) target = $region77
        $region76: #{depthwise_conv3x3.1} parent=68 // pred_region
          _
        $region77: #{depthwise_conv3x3.1} parent=68 // pred_fallthru
          _
        %s384 = sand.u32 %s35, 1
        %s385 = sand.u32 %s35, 1
        %s386 = smul.addr %s385, 672
        %s387 = scalar_lea.vmem [#allocation3], %s386
        %p388 = pneg %p48
        %p389 = pneg %p45
        %s390 = sand.u32 %s61, 1
        %s391 = sand.u32 %s61, 1
        %s392 = smul.addr %s391, 36
        %s393 = scalar_lea.vmem [#allocation4], %s392
        %p394 = pneg %p74
        %p395 = pneg %p71
        %p396 = pneg %p102
        %p397 = pneg %p99
        %s398 = sand.u32 %s89, 1
        %s399 = sand.u32 %s89, 1
        %s400 = smul.addr %s399, 672
        %s401 = scalar_lea.vmem [#allocation5], %s400
        %s402 = smul.u32 3, %s18
        %s403 = smul.u32 3, %s18
        %s404 = smul.u32 3, %s18
        %405 = vst [vmem:[#allocation2] sm:$0xff] 0.0
        %406 = vst [vmem:[#allocation2 + $0x8] sm:$0xff] 0.0
        %407 = vst [vmem:[#allocation2 + $0x10] sm:$0xff] 0.0
        %408 = vst [vmem:[#allocation2 + $0x18] sm:$0xff] 0.0
        %409 = vst [vmem:[#allocation2 + $0x20] sm:$0xff] 0.0
        %410 = vst [vmem:[#allocation2 + $0x28] sm:$0xff] 0.0
        %411 = vst [vmem:[#allocation2 + $0x30] sm:$0xff] 0.0
        %412 = vst [vmem:[#allocation2 + $0x38] sm:$0xff] 0.0
        %413 = vst [vmem:[#allocation2 + $0x40] sm:$0xff] 0.0
        %414 = vst [vmem:[#allocation2 + $0x48] sm:$0xff] 0.0
        %415 = vst [vmem:[#allocation2 + $0x50] sm:$0xff] 0.0
        %416 = vst [vmem:[#allocation2 + $0x58] sm:$0xff] 0.0
        %417 = vst [vmem:[#allocation2 + $0x60] sm:$0xff] 0.0
        %418 = vst [vmem:[#allocation2 + $0x68] sm:$0xff] 0.0
        %419 = vst [vmem:[#allocation2 + $0x70] sm:$0xff] 0.0
        %420 = vst [vmem:[#allocation2 + $0x78] sm:$0xff] 0.0
        %421 = vst [vmem:[#allocation2 + $0x80] sm:$0xff] 0.0
        %422 = vst [vmem:[#allocation2 + $0x88] sm:$0xff] 0.0
        %423 = vst [vmem:[#allocation2 + $0x90] sm:$0xff] 0.0
        %424 = vst [vmem:[#allocation2 + $0x98] sm:$0xff] 0.0
        %425 = vst [vmem:[#allocation2 + $0xa0] sm:$0xff] 0.0
        %426 = vst [vmem:[#allocation2 + $0xa8] sm:$0xff] 0.0
        %427 = vst [vmem:[#allocation2 + $0xb0] sm:$0xff] 0.0
        %428 = vst [vmem:[#allocation2 + $0xb8] sm:$0xff] 0.0
        %429 = vst [vmem:[#allocation2 + $0xc0] sm:$0xff] 0.0
        %430 = vst [vmem:[#allocation2 + $0xc8] sm:$0xff] 0.0
        %431 = vst [vmem:[#allocation2 + $0xd0] sm:$0xff] 0.0
        %432 = vst [vmem:[#allocation2 + $0xd8] sm:$0xff] 0.0
        %433 = vst [vmem:[#allocation2 + $0xe0] sm:$0xff] 0.0
        %434 = vst [vmem:[#allocation2 + $0xe8] sm:$0xff] 0.0
        %435 = vst [vmem:[#allocation2 + $0xf0] sm:$0xff] 0.0
        %436 = vst [vmem:[#allocation2 + $0xf8] sm:$0xff] 0.0
        %437 = vst [vmem:[#allocation2 + $0x100] sm:$0xff] 0.0
        %438 = vst [vmem:[#allocation2 + $0x108] sm:$0xff] 0.0
        %439 = vst [vmem:[#allocation2 + $0x110] sm:$0xff] 0.0
        %440 = vst [vmem:[#allocation2 + $0x118] sm:$0xff] 0.0
        %441 = vst [vmem:[#allocation2 + $0x120] sm:$0xff] 0.0
        %442 = vst [vmem:[#allocation2 + $0x128] sm:$0xff] 0.0
        %443 = vst [vmem:[#allocation2 + $0x130] sm:$0xff] 0.0
        %444 = vst [vmem:[#allocation2 + $0x138] sm:$0xff] 0.0
        %445 = vst [vmem:[#allocation2 + $0x140] sm:$0xff] 0.0
        %446 = vst [vmem:[#allocation2 + $0x148] sm:$0xff] 0.0
        %447 = vst [vmem:[#allocation2 + $0x150] sm:$0xff] 0.0
        %448 = vst [vmem:[#allocation2 + $0x158] sm:$0xff] 0.0
        %449 = vst [vmem:[#allocation2 + $0x160] sm:$0xff] 0.0
        %450 = vst [vmem:[#allocation2 + $0x168] sm:$0xff] 0.0
        %451 = vst [vmem:[#allocation2 + $0x170] sm:$0xff] 0.0
        %452 = vst [vmem:[#allocation2 + $0x178] sm:$0xff] 0.0
        %453 = vst [vmem:[#allocation2 + $0x180] sm:$0xff] 0.0
        %454 = vst [vmem:[#allocation2 + $0x188] sm:$0xff] 0.0
        %455 = vst [vmem:[#allocation2 + $0x190] sm:$0xff] 0.0
        %456 = vst [vmem:[#allocation2 + $0x198] sm:$0xff] 0.0
        %457 = vst [vmem:[#allocation2 + $0x1a0] sm:$0xff] 0.0
        %458 = vst [vmem:[#allocation2 + $0x1a8] sm:$0xff] 0.0
        %459 = vst [vmem:[#allocation2 + $0x1b0] sm:$0xff] 0.0
        %460 = vst [vmem:[#allocation2 + $0x1b8] sm:$0xff] 0.0
        %461 = vst [vmem:[#allocation2 + $0x1c0] sm:$0xff] 0.0
        %462 = vst [vmem:[#allocation2 + $0x1c8] sm:$0xff] 0.0
        %463 = vst [vmem:[#allocation2 + $0x1d0] sm:$0xff] 0.0
        %464 = vst [vmem:[#allocation2 + $0x1d8] sm:$0xff] 0.0
        %465 = vst [vmem:[#allocation2 + $0x1e0] sm:$0xff] 0.0
        %466 = vst [vmem:[#allocation2 + $0x1e8] sm:$0xff] 0.0
        %467 = vst [vmem:[#allocation2 + $0x1f0] sm:$0xff] 0.0
        %468 = vst [vmem:[#allocation2 + $0x1f8] sm:$0xff] 0.0
        %469 = vst [vmem:[#allocation2 + $0x200] sm:$0xff] 0.0
        %470 = vst [vmem:[#allocation2 + $0x208] sm:$0xff] 0.0
        %471 = vst [vmem:[#allocation2 + $0x210] sm:$0xff] 0.0
        %472 = vst [vmem:[#allocation2 + $0x218] sm:$0xff] 0.0
        %473 = vst [vmem:[#allocation2 + $0x220] sm:$0xff] 0.0
        %474 = vst [vmem:[#allocation2 + $0x228] sm:$0xff] 0.0
        %475 = vst [vmem:[#allocation2 + $0x230] sm:$0xff] 0.0
        %476 = vst [vmem:[#allocation2 + $0x238] sm:$0xff] 0.0
        %477 = vst [vmem:[#allocation2 + $0x240] sm:$0xff] 0.0
        %478 = vst [vmem:[#allocation2 + $0x248] sm:$0xff] 0.0
        %479 = vst [vmem:[#allocation2 + $0x250] sm:$0xff] 0.0
        %480 = vst [vmem:[#allocation2 + $0x258] sm:$0xff] 0.0
        %481 = vst [vmem:[#allocation2 + $0x260] sm:$0xff] 0.0
        %482 = vst [vmem:[#allocation2 + $0x268] sm:$0xff] 0.0
        %483 = vst [vmem:[#allocation2 + $0x270] sm:$0xff] 0.0
        %484 = vst [vmem:[#allocation2 + $0x278] sm:$0xff] 0.0
        %485 = vst [vmem:[#allocation2 + $0x280] sm:$0xff] 0.0
        %486 = vst [vmem:[#allocation2 + $0x288] sm:$0xff] 0.0
        %487 = vst [vmem:[#allocation2 + $0x290] sm:$0xff] 0.0
        %488 = vst [vmem:[#allocation2 + $0x298] sm:$0xff] 0.0
        %489 = vst [vmem:[#allocation2 + $0x2a0] sm:$0xff] 0.0
        %490 = vst [vmem:[#allocation2 + $0x2a8] sm:$0xff] 0.0
        %491 = vst [vmem:[#allocation2 + $0x2b0] sm:$0xff] 0.0
        %492 = vst [vmem:[#allocation2 + $0x2b8] sm:$0xff] 0.0
        %493 = vst [vmem:[#allocation2 + $0x2c0] sm:$0xff] 0.0
        %494 = vst [vmem:[#allocation2 + $0x2c8] sm:$0xff] 0.0
        %495 = vst [vmem:[#allocation2 + $0x2d0] sm:$0xff] 0.0
        %496 = vst [vmem:[#allocation2 + $0x2d8] sm:$0xff] 0.0
        %497 = vst [vmem:[#allocation2 + $0x2e0] sm:$0xff] 0.0
        %498 = vst [vmem:[#allocation2 + $0x2e8] sm:$0xff] 0.0
        %499 = vst [vmem:[#allocation2 + $0x2f0] sm:$0xff] 0.0
        %500 = vst [vmem:[#allocation2 + $0x2f8] sm:$0xff] 0.0
        %501 = vst [vmem:[#allocation2 + $0x300] sm:$0xff] 0.0
        %502 = vst [vmem:[#allocation2 + $0x308] sm:$0xff] 0.0
        %503 = vst [vmem:[#allocation2 + $0x310] sm:$0xff] 0.0
        %504 = vst [vmem:[#allocation2 + $0x318] sm:$0xff] 0.0
        %505 = vst [vmem:[#allocation2 + $0x320] sm:$0xff] 0.0
        %506 = vst [vmem:[#allocation2 + $0x328] sm:$0xff] 0.0
        %507 = vst [vmem:[#allocation2 + $0x330] sm:$0xff] 0.0
        %508 = vst [vmem:[#allocation2 + $0x338] sm:$0xff] 0.0
        %509 = vst [vmem:[#allocation2 + $0x340] sm:$0xff] 0.0
        %510 = vst [vmem:[#allocation2 + $0x348] sm:$0xff] 0.0
        %511 = vst [vmem:[#allocation2 + $0x350] sm:$0xff] 0.0
        %512 = vst [vmem:[#allocation2 + $0x358] sm:$0xff] 0.0
        %513 = vst [vmem:[#allocation2 + $0x360] sm:$0xff] 0.0
        %514 = vst [vmem:[#allocation2 + $0x368] sm:$0xff] 0.0
        %515 = vst [vmem:[#allocation2 + $0x370] sm:$0xff] 0.0
        %516 = vst [vmem:[#allocation2 + $0x378] sm:$0xff] 0.0
        %517 = vst [vmem:[#allocation2 + $0x380] sm:$0xff] 0.0
        %518 = vst [vmem:[#allocation2 + $0x388] sm:$0xff] 0.0
        %519 = vst [vmem:[#allocation2 + $0x390] sm:$0xff] 0.0
        %520 = vst [vmem:[#allocation2 + $0x398] sm:$0xff] 0.0
        %521 = vst [vmem:[#allocation2 + $0x3a0] sm:$0xff] 0.0
        %522 = vst [vmem:[#allocation2 + $0x3a8] sm:$0xff] 0.0
        %523 = vst [vmem:[#allocation2 + $0x3b0] sm:$0xff] 0.0
        %524 = vst [vmem:[#allocation2 + $0x3b8] sm:$0xff] 0.0
        %525 = vst [vmem:[#allocation2 + $0x3c0] sm:$0xff] 0.0
        %526 = vst [vmem:[#allocation2 + $0x3c8] sm:$0xff] 0.0
        %527 = vst [vmem:[#allocation2 + $0x3d0] sm:$0xff] 0.0
        %528 = vst [vmem:[#allocation2 + $0x3d8] sm:$0xff] 0.0
        %529 = vst [vmem:[#allocation2 + $0x3e0] sm:$0xff] 0.0
        %530 = vst [vmem:[#allocation2 + $0x3e8] sm:$0xff] 0.0
        %531 = vst [vmem:[#allocation2 + $0x3f0] sm:$0xff] 0.0
        %532 = vst [vmem:[#allocation2 + $0x3f8] sm:$0xff] 0.0
        %533 = vst [vmem:[#allocation2 + $0x400] sm:$0xff] 0.0
        %534 = vst [vmem:[#allocation2 + $0x408] sm:$0xff] 0.0
        %535 = vst [vmem:[#allocation2 + $0x410] sm:$0xff] 0.0
        %536 = vst [vmem:[#allocation2 + $0x418] sm:$0xff] 0.0
        %537 = vst [vmem:[#allocation2 + $0x420] sm:$0xff] 0.0
        %538 = vst [vmem:[#allocation2 + $0x428] sm:$0xff] 0.0
        %539 = vst [vmem:[#allocation2 + $0x430] sm:$0xff] 0.0
        %540 = vst [vmem:[#allocation2 + $0x438] sm:$0xff] 0.0
        %541 = vst [vmem:[#allocation2 + $0x440] sm:$0xff] 0.0
        %542 = vst [vmem:[#allocation2 + $0x448] sm:$0xff] 0.0
        %543 = vst [vmem:[#allocation2 + $0x450] sm:$0xff] 0.0
        %544 = vst [vmem:[#allocation2 + $0x458] sm:$0xff] 0.0
        %545 = vst [vmem:[#allocation2 + $0x460] sm:$0xff] 0.0
        %546 = vst [vmem:[#allocation2 + $0x468] sm:$0xff] 0.0
        %547 = vst [vmem:[#allocation2 + $0x470] sm:$0xff] 0.0
        %548 = vst [vmem:[#allocation2 + $0x478] sm:$0xff] 0.0
        %v549 = vld [vmem:[%s373] sm:$0xff]
        %v550 = vld [vmem:[%s373 + $0x18] sm:$0x3f]
        %v551 = vld [vmem:[%s373 + $0x30] sm:$0xff]
        %v552 = vld [vmem:[%s373 + $0x48] sm:$0x3f]
        %v553 = vld [vmem:[%s373 + $0x60] sm:$0xff]
        %v554 = vld [vmem:[%s373 + $0x78] sm:$0x3f]
        %v555 = vld [vmem:[%s373 + $0x90] sm:$0xff]
        %v556 = vld [vmem:[%s373 + $0xa8] sm:$0x3f]
        %v557 = vld [vmem:[%s373 + $0xc0] sm:$0xff]
        %v558 = vld [vmem:[%s373 + $0xd8] sm:$0x3f]
        %v559 = vld [vmem:[%s373 + $0xf0] sm:$0xff]
        %v560 = vld [vmem:[%s373 + $0x108] sm:$0x3f]
        %v561 = vld [vmem:[%s373 + $0x120] sm:$0xff]
        %v562 = vld [vmem:[%s373 + $0x138] sm:$0x3f]
        %v563 = vld [vmem:[%s373 + $0x150] sm:$0xff]
        %v564 = vld [vmem:[%s373 + $0x168] sm:$0x3f]
        %v565 = vld [vmem:[%s373 + $0x180] sm:$0xff]
        %v566 = vld [vmem:[%s373 + $0x198] sm:$0x3f]
        %v567 = vld [vmem:[%s373 + $0x1b0] sm:$0xff]
        %v568 = vld [vmem:[%s373 + $0x1c8] sm:$0x3f]
        %v569 = vld [vmem:[%s373 + $0x1e0] sm:$0xff]
        %v570 = vld [vmem:[%s373 + $0x1f8] sm:$0x3f]
        %v571 = vld [vmem:[%s373 + $0x210] sm:$0xff]
        %v572 = vld [vmem:[%s373 + $0x228] sm:$0x3f]
        %v573 = vld [vmem:[%s373 + $0x240] sm:$0xff]
        %v574 = vld [vmem:[%s373 + $0x258] sm:$0x3f]
        %v575 = vld [vmem:[%s373 + $0x270] sm:$0xff]
        %v576 = vld [vmem:[%s373 + $0x288] sm:$0x3f]
        %s577 = scalar_lea.vmem [#allocation2], 72
        %578 = vst [vmem:[%s577 + $0x18] sm:$0xff] %v549
        %579 = vst [vmem:[%s577 + $0x30] sm:$0x3f] %v550
        %580 = vst [vmem:[%s577 + $0x60] sm:$0xff] %v551
        %581 = vst [vmem:[%s577 + $0x78] sm:$0x3f] %v552
        %582 = vst [vmem:[%s577 + $0xa8] sm:$0xff] %v553
        %583 = vst [vmem:[%s577 + $0xc0] sm:$0x3f] %v554
        %584 = vst [vmem:[%s577 + $0xf0] sm:$0xff] %v555
        %585 = vst [vmem:[%s577 + $0x108] sm:$0x3f] %v556
        %586 = vst [vmem:[%s577 + $0x138] sm:$0xff] %v557
        %587 = vst [vmem:[%s577 + $0x150] sm:$0x3f] %v558
        %588 = vst [vmem:[%s577 + $0x180] sm:$0xff] %v559
        %589 = vst [vmem:[%s577 + $0x198] sm:$0x3f] %v560
        %590 = vst [vmem:[%s577 + $0x1c8] sm:$0xff] %v561
        %591 = vst [vmem:[%s577 + $0x1e0] sm:$0x3f] %v562
        %592 = vst [vmem:[%s577 + $0x210] sm:$0xff] %v563
        %593 = vst [vmem:[%s577 + $0x228] sm:$0x3f] %v564
        %594 = vst [vmem:[%s577 + $0x258] sm:$0xff] %v565
        %595 = vst [vmem:[%s577 + $0x270] sm:$0x3f] %v566
        %596 = vst [vmem:[%s577 + $0x2a0] sm:$0xff] %v567
        %597 = vst [vmem:[%s577 + $0x2b8] sm:$0x3f] %v568
        %598 = vst [vmem:[%s577 + $0x2e8] sm:$0xff] %v569
        %599 = vst [vmem:[%s577 + $0x300] sm:$0x3f] %v570
        %600 = vst [vmem:[%s577 + $0x330] sm:$0xff] %v571
        %601 = vst [vmem:[%s577 + $0x348] sm:$0x3f] %v572
        %602 = vst [vmem:[%s577 + $0x378] sm:$0xff] %v573
        %603 = vst [vmem:[%s577 + $0x390] sm:$0x3f] %v574
        %604 = vst [vmem:[%s577 + $0x3c0] sm:$0xff] %v575
        %605 = vst [vmem:[%s577 + $0x3d8] sm:$0x3f] %v576
        %v606 = vld [vmem:[#allocation2] sm:$0x80]
        %v607 = vld [vmem:[#allocation2 + $0x18] sm:$0xff]
        %v608 = vld [vmem:[#allocation2 + $0x30] sm:$0x1f]
        %v609 = vld [vmem:[#allocation2 + $0x48] sm:$0x80]
        %v610 = vld [vmem:[#allocation2 + $0x60] sm:$0xff]
        %v611 = vld [vmem:[#allocation2 + $0x78] sm:$0x1f]
        %v612 = vld [vmem:[#allocation2 + $0x90] sm:$0x80]
        %v613 = vld [vmem:[#allocation2 + $0xa8] sm:$0xff]
        %v614 = vld [vmem:[#allocation2 + $0xc0] sm:$0x1f]
        %v615 = vld [vmem:[#allocation2 + $0xd8] sm:$0x80]
        %v616 = vld [vmem:[#allocation2 + $0xf0] sm:$0xff]
        %v617 = vld [vmem:[#allocation2 + $0x108] sm:$0x1f]
        %v618 = vld [vmem:[#allocation2 + $0x120] sm:$0x80]
        %v619 = vld [vmem:[#allocation2 + $0x138] sm:$0xff]
        %v620 = vld [vmem:[#allocation2 + $0x150] sm:$0x1f]
        %v621 = vld [vmem:[#allocation2 + $0x168] sm:$0x80]
        %v622 = vld [vmem:[#allocation2 + $0x180] sm:$0xff]
        %v623 = vld [vmem:[#allocation2 + $0x198] sm:$0x1f]
        %v624 = vld [vmem:[#allocation2 + $0x1b0] sm:$0x80]
        %v625 = vld [vmem:[#allocation2 + $0x1c8] sm:$0xff]
        %v626 = vld [vmem:[#allocation2 + $0x1e0] sm:$0x1f]
        %v627 = vld [vmem:[#allocation2 + $0x1f8] sm:$0x80]
        %v628 = vld [vmem:[#allocation2 + $0x210] sm:$0xff]
        %v629 = vld [vmem:[#allocation2 + $0x228] sm:$0x1f]
        %v630 = vld [vmem:[#allocation2 + $0x240] sm:$0x80]
        %v631 = vld [vmem:[#allocation2 + $0x258] sm:$0xff]
        %v632 = vld [vmem:[#allocation2 + $0x270] sm:$0x1f]
        %v633 = vld [vmem:[#allocation2 + $0x288] sm:$0x80]
        %v634 = vld [vmem:[#allocation2 + $0x2a0] sm:$0xff]
        %v635 = vld [vmem:[#allocation2 + $0x2b8] sm:$0x1f]
        %v636 = vld [vmem:[#allocation2 + $0x2d0] sm:$0x80]
        %v637 = vld [vmem:[#allocation2 + $0x2e8] sm:$0xff]
        %v638 = vld [vmem:[#allocation2 + $0x300] sm:$0x1f]
        %v639 = vld [vmem:[#allocation2 + $0x318] sm:$0x80]
        %v640 = vld [vmem:[#allocation2 + $0x330] sm:$0xff]
        %v641 = vld [vmem:[#allocation2 + $0x348] sm:$0x1f]
        %v642 = vld [vmem:[#allocation2 + $0x360] sm:$0x80]
        %v643 = vld [vmem:[#allocation2 + $0x378] sm:$0xff]
        %v644 = vld [vmem:[#allocation2 + $0x390] sm:$0x1f]
        %v645 = vld [vmem:[#allocation2 + $0x3a8] sm:$0x80]
        %v646 = vld [vmem:[#allocation2 + $0x3c0] sm:$0xff]
        %v647 = vld [vmem:[#allocation2 + $0x3d8] sm:$0x1f]
        %v648 = vld [vmem:[%s380] sm:$0x1]
        %v649 = vperm.slane %v648, 0
        %v650 = vmul.f32 %v606, %v649
        %v651 = vmul.f32 %v607, %v649
        %v652 = vmul.f32 %v608, %v649
        %v653 = vmul.f32 %v609, %v649
        %v654 = vmul.f32 %v610, %v649
        %v655 = vmul.f32 %v611, %v649
        %v656 = vmul.f32 %v612, %v649
        %v657 = vmul.f32 %v613, %v649
        %v658 = vmul.f32 %v614, %v649
        %v659 = vmul.f32 %v615, %v649
        %v660 = vmul.f32 %v616, %v649
        %v661 = vmul.f32 %v617, %v649
        %v662 = vmul.f32 %v618, %v649
        %v663 = vmul.f32 %v619, %v649
        %v664 = vmul.f32 %v620, %v649
        %v665 = vmul.f32 %v621, %v649
        %v666 = vmul.f32 %v622, %v649
        %v667 = vmul.f32 %v623, %v649
        %v668 = vmul.f32 %v624, %v649
        %v669 = vmul.f32 %v625, %v649
        %v670 = vmul.f32 %v626, %v649
        %v671 = vmul.f32 %v627, %v649
        %v672 = vmul.f32 %v628, %v649
        %v673 = vmul.f32 %v629, %v649
        %v674 = vmul.f32 %v630, %v649
        %v675 = vmul.f32 %v631, %v649
        %v676 = vmul.f32 %v632, %v649
        %v677 = vmul.f32 %v633, %v649
        %v678 = vmul.f32 %v634, %v649
        %v679 = vmul.f32 %v635, %v649
        %v680 = vmul.f32 %v636, %v649
        %v681 = vmul.f32 %v637, %v649
        %v682 = vmul.f32 %v638, %v649
        %v683 = vmul.f32 %v639, %v649
        %v684 = vmul.f32 %v640, %v649
        %v685 = vmul.f32 %v641, %v649
        %v686 = vmul.f32 %v642, %v649
        %v687 = vmul.f32 %v643, %v649
        %v688 = vmul.f32 %v644, %v649
        %v689 = vmul.f32 %v645, %v649
        %v690 = vmul.f32 %v646, %v649
        %v691 = vmul.f32 %v647, %v649
        %v692 = vld [vmem:[#allocation2 + $0x30] sm:$0x3f]
        %v693 = vld [vmem:[#allocation2 + $0x78] sm:$0x3f]
        %v694 = vld [vmem:[#allocation2 + $0xc0] sm:$0x3f]
        %v695 = vld [vmem:[#allocation2 + $0x108] sm:$0x3f]
        %v696 = vld [vmem:[#allocation2 + $0x150] sm:$0x3f]
        %v697 = vld [vmem:[#allocation2 + $0x198] sm:$0x3f]
        %v698 = vld [vmem:[#allocation2 + $0x1e0] sm:$0x3f]
        %v699 = vld [vmem:[#allocation2 + $0x228] sm:$0x3f]
        %v700 = vld [vmem:[#allocation2 + $0x270] sm:$0x3f]
        %v701 = vld [vmem:[#allocation2 + $0x2b8] sm:$0x3f]
        %v702 = vld [vmem:[#allocation2 + $0x300] sm:$0x3f]
        %v703 = vld [vmem:[#allocation2 + $0x348] sm:$0x3f]
        %v704 = vld [vmem:[#allocation2 + $0x390] sm:$0x3f]
        %v705 = vld [vmem:[#allocation2 + $0x3d8] sm:$0x3f]
        %v706 = vld [vmem:[%s380 + $0x1] sm:$0x1]
        %v707 = vperm.slane %v706, 0
        %v708 = vmul.f32 %v607, %v707
        %v709 = vmul.f32 %v692, %v707
        %v710 = vmul.f32 %v610, %v707
        %v711 = vmul.f32 %v693, %v707
        %v712 = vmul.f32 %v613, %v707
        %v713 = vmul.f32 %v694, %v707
        %v714 = vmul.f32 %v616, %v707
        %v715 = vmul.f32 %v695, %v707
        %v716 = vmul.f32 %v619, %v707
        %v717 = vmul.f32 %v696, %v707
        %v718 = vmul.f32 %v622, %v707
        %v719 = vmul.f32 %v697, %v707
        %v720 = vmul.f32 %v625, %v707
        %v721 = vmul.f32 %v698, %v707
        %v722 = vmul.f32 %v628, %v707
        %v723 = vmul.f32 %v699, %v707
        %v724 = vmul.f32 %v631, %v707
        %v725 = vmul.f32 %v700, %v707
        %v726 = vmul.f32 %v634, %v707
        %v727 = vmul.f32 %v701, %v707
        %v728 = vmul.f32 %v637, %v707
        %v729 = vmul.f32 %v702, %v707
        %v730 = vmul.f32 %v640, %v707
        %v731 = vmul.f32 %v703, %v707
        %v732 = vmul.f32 %v643, %v707
        %v733 = vmul.f32 %v704, %v707
        %v734 = vmul.f32 %v646, %v707
        %v735 = vmul.f32 %v705, %v707
        %vm764 = vcmask 1046528
        %v765 = vrot.slane %v708, 1
        %v766 = vrot.slane %v709, 1
        %v767 = vsel %vm764, %v765, %v766
        %v768 = vrot.slane %v710, 1
        %v769 = vrot.slane %v711, 1
        %v770 = vsel %vm764, %v768, %v769
        %v771 = vrot.slane %v712, 1
        %v772 = vrot.slane %v713, 1
        %v773 = vsel %vm764, %v771, %v772
        %v774 = vrot.slane %v714, 1
        %v775 = vrot.slane %v715, 1
        %v776 = vsel %vm764, %v774, %v775
        %v777 = vrot.slane %v716, 1
        %v778 = vrot.slane %v717, 1
        %v779 = vsel %vm764, %v777, %v778
        %v780 = vrot.slane %v718, 1
        %v781 = vrot.slane %v719, 1
        %v782 = vsel %vm764, %v780, %v781
        %v783 = vrot.slane %v720, 1
        %v784 = vrot.slane %v721, 1
        %v785 = vsel %vm764, %v783, %v784
        %v786 = vrot.slane %v722, 1
        %v787 = vrot.slane %v723, 1
        %v788 = vsel %vm764, %v786, %v787
        %v789 = vrot.slane %v724, 1
        %v790 = vrot.slane %v725, 1
        %v791 = vsel %vm764, %v789, %v790
        %v792 = vrot.slane %v726, 1
        %v793 = vrot.slane %v727, 1
        %v794 = vsel %vm764, %v792, %v793
        %v795 = vrot.slane %v728, 1
        %v796 = vrot.slane %v729, 1
        %v797 = vsel %vm764, %v795, %v796
        %v798 = vrot.slane %v730, 1
        %v799 = vrot.slane %v731, 1
        %v800 = vsel %vm764, %v798, %v799
        %v801 = vrot.slane %v732, 1
        %v802 = vrot.slane %v733, 1
        %v803 = vsel %vm764, %v801, %v802
        %v804 = vrot.slane %v734, 1
        %v805 = vrot.slane %v735, 1
        %v806 = vsel %vm764, %v804, %v805
        %v849 = vadd.f32 %v650, %v765
        %v850 = vadd.f32 %v651, %v767
        %v851 = vadd.f32 %v652, %v766
        %v852 = vadd.f32 %v653, %v768
        %v853 = vadd.f32 %v654, %v770
        %v854 = vadd.f32 %v655, %v769
        %v855 = vadd.f32 %v656, %v771
        %v856 = vadd.f32 %v657, %v773
        %v857 = vadd.f32 %v658, %v772
        %v858 = vadd.f32 %v659, %v774
        %v859 = vadd.f32 %v660, %v776
        %v860 = vadd.f32 %v661, %v775
        %v861 = vadd.f32 %v662, %v777
        %v862 = vadd.f32 %v663, %v779
        %v863 = vadd.f32 %v664, %v778
        %v864 = vadd.f32 %v665, %v780
        %v865 = vadd.f32 %v666, %v782
        %v866 = vadd.f32 %v667, %v781
        %v867 = vadd.f32 %v668, %v783
        %v868 = vadd.f32 %v669, %v785
        %v869 = vadd.f32 %v670, %v784
        %v870 = vadd.f32 %v671, %v786
        %v871 = vadd.f32 %v672, %v788
        %v872 = vadd.f32 %v673, %v787
        %v873 = vadd.f32 %v674, %v789
        %v874 = vadd.f32 %v675, %v791
        %v875 = vadd.f32 %v676, %v790
        %v876 = vadd.f32 %v677, %v792
        %v877 = vadd.f32 %v678, %v794
        %v878 = vadd.f32 %v679, %v793
        %v879 = vadd.f32 %v680, %v795
        %v880 = vadd.f32 %v681, %v797
        %v881 = vadd.f32 %v682, %v796
        %v882 = vadd.f32 %v683, %v798
        %v883 = vadd.f32 %v684, %v800
        %v884 = vadd.f32 %v685, %v799
        %v885 = vadd.f32 %v686, %v801
        %v886 = vadd.f32 %v687, %v803
        %v887 = vadd.f32 %v688, %v802
        %v888 = vadd.f32 %v689, %v804
        %v889 = vadd.f32 %v690, %v806
        %v890 = vadd.f32 %v691, %v805
        %v891 = vld [vmem:[#allocation2 + $0x18] sm:$0xfe]
        %v892 = vld [vmem:[#allocation2 + $0x30] sm:$0x7f]
        %v893 = vld [vmem:[#allocation2 + $0x60] sm:$0xfe]
        %v894 = vld [vmem:[#allocation2 + $0x78] sm:$0x7f]
        %v895 = vld [vmem:[#allocation2 + $0xa8] sm:$0xfe]
        %v896 = vld [vmem:[#allocation2 + $0xc0] sm:$0x7f]
        %v897 = vld [vmem:[#allocation2 + $0xf0] sm:$0xfe]
        %v898 = vld [vmem:[#allocation2 + $0x108] sm:$0x7f]
        %v899 = vld [vmem:[#allocation2 + $0x138] sm:$0xfe]
        %v900 = vld [vmem:[#allocation2 + $0x150] sm:$0x7f]
        %v901 = vld [vmem:[#allocation2 + $0x180] sm:$0xfe]
        %v902 = vld [vmem:[#allocation2 + $0x198] sm:$0x7f]
        %v903 = vld [vmem:[#allocation2 + $0x1c8] sm:$0xfe]
        %v904 = vld [vmem:[#allocation2 + $0x1e0] sm:$0x7f]
        %v905 = vld [vmem:[#allocation2 + $0x210] sm:$0xfe]
        %v906 = vld [vmem:[#allocation2 + $0x228] sm:$0x7f]
        %v907 = vld [vmem:[#allocation2 + $0x258] sm:$0xfe]
        %v908 = vld [vmem:[#allocation2 + $0x270] sm:$0x7f]
        %v909 = vld [vmem:[#allocation2 + $0x2a0] sm:$0xfe]
        %v910 = vld [vmem:[#allocation2 + $0x2b8] sm:$0x7f]
        %v911 = vld [vmem:[#allocation2 + $0x2e8] sm:$0xfe]
        %v912 = vld [vmem:[#allocation2 + $0x300] sm:$0x7f]
        %v913 = vld [vmem:[#allocation2 + $0x330] sm:$0xfe]
        %v914 = vld [vmem:[#allocation2 + $0x348] sm:$0x7f]
        %v915 = vld [vmem:[#allocation2 + $0x378] sm:$0xfe]
        %v916 = vld [vmem:[#allocation2 + $0x390] sm:$0x7f]
        %v917 = vld [vmem:[#allocation2 + $0x3c0] sm:$0xfe]
        %v918 = vld [vmem:[#allocation2 + $0x3d8] sm:$0x7f]
        %v919 = vld [vmem:[%s380 + $0x2] sm:$0x1]
        %v920 = vperm.slane %v919, 0
        %v921 = vmul.f32 %v891, %v920
        %v922 = vmul.f32 %v892, %v920
        %v923 = vmul.f32 %v893, %v920
        %v924 = vmul.f32 %v894, %v920
        %v925 = vmul.f32 %v895, %v920
        %v926 = vmul.f32 %v896, %v920
        %v927 = vmul.f32 %v897, %v920
        %v928 = vmul.f32 %v898, %v920
        %v929 = vmul.f32 %v899, %v920
        %v930 = vmul.f32 %v900, %v920
        %v931 = vmul.f32 %v901, %v920
        %v932 = vmul.f32 %v902, %v920
        %v933 = vmul.f32 %v903, %v920
        %v934 = vmul.f32 %v904, %v920
        %v935 = vmul.f32 %v905, %v920
        %v936 = vmul.f32 %v906, %v920
        %v937 = vmul.f32 %v907, %v920
        %v938 = vmul.f32 %v908, %v920
        %v939 = vmul.f32 %v909, %v920
        %v940 = vmul.f32 %v910, %v920
        %v941 = vmul.f32 %v911, %v920
        %v942 = vmul.f32 %v912, %v920
        %v943 = vmul.f32 %v913, %v920
        %v944 = vmul.f32 %v914, %v920
        %v945 = vmul.f32 %v915, %v920
        %v946 = vmul.f32 %v916, %v920
        %v947 = vmul.f32 %v917, %v920
        %v948 = vmul.f32 %v918, %v920
        %vm977 = vcmask 1045504
        %v978 = vrot.slane %v921, 2
        %v979 = vrot.slane %v922, 2
        %v980 = vsel %vm977, %v978, %v979
        %v981 = vrot.slane %v923, 2
        %v982 = vrot.slane %v924, 2
        %v983 = vsel %vm977, %v981, %v982
        %v984 = vrot.slane %v925, 2
        %v985 = vrot.slane %v926, 2
        %v986 = vsel %vm977, %v984, %v985
        %v987 = vrot.slane %v927, 2
        %v988 = vrot.slane %v928, 2
        %v989 = vsel %vm977, %v987, %v988
        %v990 = vrot.slane %v929, 2
        %v991 = vrot.slane %v930, 2
        %v992 = vsel %vm977, %v990, %v991
        %v993 = vrot.slane %v931, 2
        %v994 = vrot.slane %v932, 2
        %v995 = vsel %vm977, %v993, %v994
        %v996 = vrot.slane %v933, 2
        %v997 = vrot.slane %v934, 2
        %v998 = vsel %vm977, %v996, %v997
        %v999 = vrot.slane %v935, 2
        %v1000 = vrot.slane %v936, 2
        %v1001 = vsel %vm977, %v999, %v1000
        %v1002 = vrot.slane %v937, 2
        %v1003 = vrot.slane %v938, 2
        %v1004 = vsel %vm977, %v1002, %v1003
        %v1005 = vrot.slane %v939, 2
        %v1006 = vrot.slane %v940, 2
        %v1007 = vsel %vm977, %v1005, %v1006
        %v1008 = vrot.slane %v941, 2
        %v1009 = vrot.slane %v942, 2
        %v1010 = vsel %vm977, %v1008, %v1009
        %v1011 = vrot.slane %v943, 2
        %v1012 = vrot.slane %v944, 2
        %v1013 = vsel %vm977, %v1011, %v1012
        %v1014 = vrot.slane %v945, 2
        %v1015 = vrot.slane %v946, 2
        %v1016 = vsel %vm977, %v1014, %v1015
        %v1017 = vrot.slane %v947, 2
        %v1018 = vrot.slane %v948, 2
        %v1019 = vsel %vm977, %v1017, %v1018
        %v1062 = vadd.f32 %v849, %v978
        %v1063 = vadd.f32 %v850, %v980
        %v1064 = vadd.f32 %v851, %v979
        %v1065 = vadd.f32 %v852, %v981
        %v1066 = vadd.f32 %v853, %v983
        %v1067 = vadd.f32 %v854, %v982
        %v1068 = vadd.f32 %v855, %v984
        %v1069 = vadd.f32 %v856, %v986
        %v1070 = vadd.f32 %v857, %v985
        %v1071 = vadd.f32 %v858, %v987
        %v1072 = vadd.f32 %v859, %v989
        %v1073 = vadd.f32 %v860, %v988
        %v1074 = vadd.f32 %v861, %v990
        %v1075 = vadd.f32 %v862, %v992
        %v1076 = vadd.f32 %v863, %v991
        %v1077 = vadd.f32 %v864, %v993
        %v1078 = vadd.f32 %v865, %v995
        %v1079 = vadd.f32 %v866, %v994
        %v1080 = vadd.f32 %v867, %v996
        %v1081 = vadd.f32 %v868, %v998
        %v1082 = vadd.f32 %v869, %v997
        %v1083 = vadd.f32 %v870, %v999
        %v1084 = vadd.f32 %v871, %v1001
        %v1085 = vadd.f32 %v872, %v1000
        %v1086 = vadd.f32 %v873, %v1002
        %v1087 = vadd.f32 %v874, %v1004
        %v1088 = vadd.f32 %v875, %v1003
        %v1089 = vadd.f32 %v876, %v1005
        %v1090 = vadd.f32 %v877, %v1007
        %v1091 = vadd.f32 %v878, %v1006
        %v1092 = vadd.f32 %v879, %v1008
        %v1093 = vadd.f32 %v880, %v1010
        %v1094 = vadd.f32 %v881, %v1009
        %v1095 = vadd.f32 %v882, %v1011
        %v1096 = vadd.f32 %v883, %v1013
        %v1097 = vadd.f32 %v884, %v1012
        %v1098 = vadd.f32 %v885, %v1014
        %v1099 = vadd.f32 %v886, %v1016
        %v1100 = vadd.f32 %v887, %v1015
        %v1101 = vadd.f32 %v888, %v1017
        %v1102 = vadd.f32 %v889, %v1019
        %v1103 = vadd.f32 %v890, %v1018
        %v1104 = vld [vmem:[%s577] sm:$0x80]
        %v1105 = vld [vmem:[%s577 + $0x18] sm:$0xff]
        %v1106 = vld [vmem:[%s577 + $0x30] sm:$0x1f]
        %v1107 = vld [vmem:[%s577 + $0x48] sm:$0x80]
        %v1108 = vld [vmem:[%s577 + $0x60] sm:$0xff]
        %v1109 = vld [vmem:[%s577 + $0x78] sm:$0x1f]
        %v1110 = vld [vmem:[%s577 + $0x90] sm:$0x80]
        %v1111 = vld [vmem:[%s577 + $0xa8] sm:$0xff]
        %v1112 = vld [vmem:[%s577 + $0xc0] sm:$0x1f]
        %v1113 = vld [vmem:[%s577 + $0xd8] sm:$0x80]
        %v1114 = vld [vmem:[%s577 + $0xf0] sm:$0xff]
        %v1115 = vld [vmem:[%s577 + $0x108] sm:$0x1f]
        %v1116 = vld [vmem:[%s577 + $0x120] sm:$0x80]
        %v1117 = vld [vmem:[%s577 + $0x138] sm:$0xff]
        %v1118 = vld [vmem:[%s577 + $0x150] sm:$0x1f]
        %v1119 = vld [vmem:[%s577 + $0x168] sm:$0x80]
        %v1120 = vld [vmem:[%s577 + $0x180] sm:$0xff]
        %v1121 = vld [vmem:[%s577 + $0x198] sm:$0x1f]
        %v1122 = vld [vmem:[%s577 + $0x1b0] sm:$0x80]
        %v1123 = vld [vmem:[%s577 + $0x1c8] sm:$0xff]
        %v1124 = vld [vmem:[%s577 + $0x1e0] sm:$0x1f]
        %v1125 = vld [vmem:[%s577 + $0x1f8] sm:$0x80]
        %v1126 = vld [vmem:[%s577 + $0x210] sm:$0xff]
        %v1127 = vld [vmem:[%s577 + $0x228] sm:$0x1f]
        %v1128 = vld [vmem:[%s577 + $0x240] sm:$0x80]
        %v1129 = vld [vmem:[%s577 + $0x258] sm:$0xff]
        %v1130 = vld [vmem:[%s577 + $0x270] sm:$0x1f]
        %v1131 = vld [vmem:[%s577 + $0x288] sm:$0x80]
        %v1132 = vld [vmem:[%s577 + $0x2a0] sm:$0xff]
        %v1133 = vld [vmem:[%s577 + $0x2b8] sm:$0x1f]
        %v1134 = vld [vmem:[%s577 + $0x2d0] sm:$0x80]
        %v1135 = vld [vmem:[%s577 + $0x2e8] sm:$0xff]
        %v1136 = vld [vmem:[%s577 + $0x300] sm:$0x1f]
        %v1137 = vld [vmem:[%s577 + $0x318] sm:$0x80]
        %v1138 = vld [vmem:[%s577 + $0x330] sm:$0xff]
        %v1139 = vld [vmem:[%s577 + $0x348] sm:$0x1f]
        %v1140 = vld [vmem:[%s577 + $0x360] sm:$0x80]
        %v1141 = vld [vmem:[%s577 + $0x378] sm:$0xff]
        %v1142 = vld [vmem:[%s577 + $0x390] sm:$0x1f]
        %v1143 = vld [vmem:[%s577 + $0x3a8] sm:$0x80]
        %v1144 = vld [vmem:[%s577 + $0x3c0] sm:$0xff]
        %v1145 = vld [vmem:[%s577 + $0x3d8] sm:$0x1f]
        %s1146 = scalar_lea.vmem %s380, 12 [#allocation4]
        %v1147 = vld [vmem:[%s1146] sm:$0x1]
        %v1148 = vperm.slane %v1147, 0
        %v1149 = vmul.f32 %v1104, %v1148
        %v1150 = vmul.f32 %v1105, %v1148
        %v1151 = vmul.f32 %v1106, %v1148
        %v1152 = vmul.f32 %v1107, %v1148
        %v1153 = vmul.f32 %v1108, %v1148
        %v1154 = vmul.f32 %v1109, %v1148
        %v1155 = vmul.f32 %v1110, %v1148
        %v1156 = vmul.f32 %v1111, %v1148
        %v1157 = vmul.f32 %v1112, %v1148
        %v1158 = vmul.f32 %v1113, %v1148
        %v1159 = vmul.f32 %v1114, %v1148
        %v1160 = vmul.f32 %v1115, %v1148
        %v1161 = vmul.f32 %v1116, %v1148
        %v1162 = vmul.f32 %v1117, %v1148
        %v1163 = vmul.f32 %v1118, %v1148
        %v1164 = vmul.f32 %v1119, %v1148
        %v1165 = vmul.f32 %v1120, %v1148
        %v1166 = vmul.f32 %v1121, %v1148
        %v1167 = vmul.f32 %v1122, %v1148
        %v1168 = vmul.f32 %v1123, %v1148
        %v1169 = vmul.f32 %v1124, %v1148
        %v1170 = vmul.f32 %v1125, %v1148
        %v1171 = vmul.f32 %v1126, %v1148
        %v1172 = vmul.f32 %v1127, %v1148
        %v1173 = vmul.f32 %v1128, %v1148
        %v1174 = vmul.f32 %v1129, %v1148
        %v1175 = vmul.f32 %v1130, %v1148
        %v1176 = vmul.f32 %v1131, %v1148
        %v1177 = vmul.f32 %v1132, %v1148
        %v1178 = vmul.f32 %v1133, %v1148
        %v1179 = vmul.f32 %v1134, %v1148
        %v1180 = vmul.f32 %v1135, %v1148
        %v1181 = vmul.f32 %v1136, %v1148
        %v1182 = vmul.f32 %v1137, %v1148
        %v1183 = vmul.f32 %v1138, %v1148
        %v1184 = vmul.f32 %v1139, %v1148
        %v1185 = vmul.f32 %v1140, %v1148
        %v1186 = vmul.f32 %v1141, %v1148
        %v1187 = vmul.f32 %v1142, %v1148
        %v1188 = vmul.f32 %v1143, %v1148
        %v1189 = vmul.f32 %v1144, %v1148
        %v1190 = vmul.f32 %v1145, %v1148
        %v1191 = vadd.f32 %v1062, %v1149
        %v1192 = vadd.f32 %v1063, %v1150
        %v1193 = vadd.f32 %v1064, %v1151
        %v1194 = vadd.f32 %v1065, %v1152
        %v1195 = vadd.f32 %v1066, %v1153
        %v1196 = vadd.f32 %v1067, %v1154
        %v1197 = vadd.f32 %v1068, %v1155
        %v1198 = vadd.f32 %v1069, %v1156
        %v1199 = vadd.f32 %v1070, %v1157
        %v1200 = vadd.f32 %v1071, %v1158
        %v1201 = vadd.f32 %v1072, %v1159
        %v1202 = vadd.f32 %v1073, %v1160
        %v1203 = vadd.f32 %v1074, %v1161
        %v1204 = vadd.f32 %v1075, %v1162
        %v1205 = vadd.f32 %v1076, %v1163
        %v1206 = vadd.f32 %v1077, %v1164
        %v1207 = vadd.f32 %v1078, %v1165
        %v1208 = vadd.f32 %v1079, %v1166
        %v1209 = vadd.f32 %v1080, %v1167
        %v1210 = vadd.f32 %v1081, %v1168
        %v1211 = vadd.f32 %v1082, %v1169
        %v1212 = vadd.f32 %v1083, %v1170
        %v1213 = vadd.f32 %v1084, %v1171
        %v1214 = vadd.f32 %v1085, %v1172
        %v1215 = vadd.f32 %v1086, %v1173
        %v1216 = vadd.f32 %v1087, %v1174
        %v1217 = vadd.f32 %v1088, %v1175
        %v1218 = vadd.f32 %v1089, %v1176
        %v1219 = vadd.f32 %v1090, %v1177
        %v1220 = vadd.f32 %v1091, %v1178
        %v1221 = vadd.f32 %v1092, %v1179
        %v1222 = vadd.f32 %v1093, %v1180
        %v1223 = vadd.f32 %v1094, %v1181
        %v1224 = vadd.f32 %v1095, %v1182
        %v1225 = vadd.f32 %v1096, %v1183
        %v1226 = vadd.f32 %v1097, %v1184
        %v1227 = vadd.f32 %v1098, %v1185
        %v1228 = vadd.f32 %v1099, %v1186
        %v1229 = vadd.f32 %v1100, %v1187
        %v1230 = vadd.f32 %v1101, %v1188
        %v1231 = vadd.f32 %v1102, %v1189
        %v1232 = vadd.f32 %v1103, %v1190
        %v1233 = vld [vmem:[%s577 + $0x30] sm:$0x3f]
        %v1234 = vld [vmem:[%s577 + $0x78] sm:$0x3f]
        %v1235 = vld [vmem:[%s577 + $0xc0] sm:$0x3f]
        %v1236 = vld [vmem:[%s577 + $0x108] sm:$0x3f]
        %v1237 = vld [vmem:[%s577 + $0x150] sm:$0x3f]
        %v1238 = vld [vmem:[%s577 + $0x198] sm:$0x3f]
        %v1239 = vld [vmem:[%s577 + $0x1e0] sm:$0x3f]
        %v1240 = vld [vmem:[%s577 + $0x228] sm:$0x3f]
        %v1241 = vld [vmem:[%s577 + $0x270] sm:$0x3f]
        %v1242 = vld [vmem:[%s577 + $0x2b8] sm:$0x3f]
        %v1243 = vld [vmem:[%s577 + $0x300] sm:$0x3f]
        %v1244 = vld [vmem:[%s577 + $0x348] sm:$0x3f]
        %v1245 = vld [vmem:[%s577 + $0x390] sm:$0x3f]
        %v1246 = vld [vmem:[%s577 + $0x3d8] sm:$0x3f]
        %v1247 = vld [vmem:[%s1146 + $0x1] sm:$0x1]
        %v1248 = vperm.slane %v1247, 0
        %v1249 = vmul.f32 %v1105, %v1248
        %v1250 = vmul.f32 %v1233, %v1248
        %v1251 = vmul.f32 %v1108, %v1248
        %v1252 = vmul.f32 %v1234, %v1248
        %v1253 = vmul.f32 %v1111, %v1248
        %v1254 = vmul.f32 %v1235, %v1248
        %v1255 = vmul.f32 %v1114, %v1248
        %v1256 = vmul.f32 %v1236, %v1248
        %v1257 = vmul.f32 %v1117, %v1248
        %v1258 = vmul.f32 %v1237, %v1248
        %v1259 = vmul.f32 %v1120, %v1248
        %v1260 = vmul.f32 %v1238, %v1248
        %v1261 = vmul.f32 %v1123, %v1248
        %v1262 = vmul.f32 %v1239, %v1248
        %v1263 = vmul.f32 %v1126, %v1248
        %v1264 = vmul.f32 %v1240, %v1248
        %v1265 = vmul.f32 %v1129, %v1248
        %v1266 = vmul.f32 %v1241, %v1248
        %v1267 = vmul.f32 %v1132, %v1248
        %v1268 = vmul.f32 %v1242, %v1248
        %v1269 = vmul.f32 %v1135, %v1248
        %v1270 = vmul.f32 %v1243, %v1248
        %v1271 = vmul.f32 %v1138, %v1248
        %v1272 = vmul.f32 %v1244, %v1248
        %v1273 = vmul.f32 %v1141, %v1248
        %v1274 = vmul.f32 %v1245, %v1248
        %v1275 = vmul.f32 %v1144, %v1248
        %v1276 = vmul.f32 %v1246, %v1248
        %v1305 = vrot.slane %v1249, 1
        %v1306 = vrot.slane %v1250, 1
        %v1307 = vsel %vm764, %v1305, %v1306
        %v1308 = vrot.slane %v1251, 1
        %v1309 = vrot.slane %v1252, 1
        %v1310 = vsel %vm764, %v1308, %v1309
        %v1311 = vrot.slane %v1253, 1
        %v1312 = vrot.slane %v1254, 1
        %v1313 = vsel %vm764, %v1311, %v1312
        %v1314 = vrot.slane %v1255, 1
        %v1315 = vrot.slane %v1256, 1
        %v1316 = vsel %vm764, %v1314, %v1315
        %v1317 = vrot.slane %v1257, 1
        %v1318 = vrot.slane %v1258, 1
        %v1319 = vsel %vm764, %v1317, %v1318
        %v1320 = vrot.slane %v1259, 1
        %v1321 = vrot.slane %v1260, 1
        %v1322 = vsel %vm764, %v1320, %v1321
        %v1323 = vrot.slane %v1261, 1
        %v1324 = vrot.slane %v1262, 1
        %v1325 = vsel %vm764, %v1323, %v1324
        %v1326 = vrot.slane %v1263, 1
        %v1327 = vrot.slane %v1264, 1
        %v1328 = vsel %vm764, %v1326, %v1327
        %v1329 = vrot.slane %v1265, 1
        %v1330 = vrot.slane %v1266, 1
        %v1331 = vsel %vm764, %v1329, %v1330
        %v1332 = vrot.slane %v1267, 1
        %v1333 = vrot.slane %v1268, 1
        %v1334 = vsel %vm764, %v1332, %v1333
        %v1335 = vrot.slane %v1269, 1
        %v1336 = vrot.slane %v1270, 1
        %v1337 = vsel %vm764, %v1335, %v1336
        %v1338 = vrot.slane %v1271, 1
        %v1339 = vrot.slane %v1272, 1
        %v1340 = vsel %vm764, %v1338, %v1339
        %v1341 = vrot.slane %v1273, 1
        %v1342 = vrot.slane %v1274, 1
        %v1343 = vsel %vm764, %v1341, %v1342
        %v1344 = vrot.slane %v1275, 1
        %v1345 = vrot.slane %v1276, 1
        %v1346 = vsel %vm764, %v1344, %v1345
        %v1389 = vadd.f32 %v1191, %v1305
        %v1390 = vadd.f32 %v1192, %v1307
        %v1391 = vadd.f32 %v1193, %v1306
        %v1392 = vadd.f32 %v1194, %v1308
        %v1393 = vadd.f32 %v1195, %v1310
        %v1394 = vadd.f32 %v1196, %v1309
        %v1395 = vadd.f32 %v1197, %v1311
        %v1396 = vadd.f32 %v1198, %v1313
        %v1397 = vadd.f32 %v1199, %v1312
        %v1398 = vadd.f32 %v1200, %v1314
        %v1399 = vadd.f32 %v1201, %v1316
        %v1400 = vadd.f32 %v1202, %v1315
        %v1401 = vadd.f32 %v1203, %v1317
        %v1402 = vadd.f32 %v1204, %v1319
        %v1403 = vadd.f32 %v1205, %v1318
        %v1404 = vadd.f32 %v1206, %v1320
        %v1405 = vadd.f32 %v1207, %v1322
        %v1406 = vadd.f32 %v1208, %v1321
        %v1407 = vadd.f32 %v1209, %v1323
        %v1408 = vadd.f32 %v1210, %v1325
        %v1409 = vadd.f32 %v1211, %v1324
        %v1410 = vadd.f32 %v1212, %v1326
        %v1411 = vadd.f32 %v1213, %v1328
        %v1412 = vadd.f32 %v1214, %v1327
        %v1413 = vadd.f32 %v1215, %v1329
        %v1414 = vadd.f32 %v1216, %v1331
        %v1415 = vadd.f32 %v1217, %v1330
        %v1416 = vadd.f32 %v1218, %v1332
        %v1417 = vadd.f32 %v1219, %v1334
        %v1418 = vadd.f32 %v1220, %v1333
        %v1419 = vadd.f32 %v1221, %v1335
        %v1420 = vadd.f32 %v1222, %v1337
        %v1421 = vadd.f32 %v1223, %v1336
        %v1422 = vadd.f32 %v1224, %v1338
        %v1423 = vadd.f32 %v1225, %v1340
        %v1424 = vadd.f32 %v1226, %v1339
        %v1425 = vadd.f32 %v1227, %v1341
        %v1426 = vadd.f32 %v1228, %v1343
        %v1427 = vadd.f32 %v1229, %v1342
        %v1428 = vadd.f32 %v1230, %v1344
        %v1429 = vadd.f32 %v1231, %v1346
        %v1430 = vadd.f32 %v1232, %v1345
        %v1431 = vld [vmem:[%s577 + $0x18] sm:$0xfe]
        %v1432 = vld [vmem:[%s577 + $0x30] sm:$0x7f]
        %v1433 = vld [vmem:[%s577 + $0x60] sm:$0xfe]
        %v1434 = vld [vmem:[%s577 + $0x78] sm:$0x7f]
        %v1435 = vld [vmem:[%s577 + $0xa8] sm:$0xfe]
        %v1436 = vld [vmem:[%s577 + $0xc0] sm:$0x7f]
        %v1437 = vld [vmem:[%s577 + $0xf0] sm:$0xfe]
        %v1438 = vld [vmem:[%s577 + $0x108] sm:$0x7f]
        %v1439 = vld [vmem:[%s577 + $0x138] sm:$0xfe]
        %v1440 = vld [vmem:[%s577 + $0x150] sm:$0x7f]
        %v1441 = vld [vmem:[%s577 + $0x180] sm:$0xfe]
        %v1442 = vld [vmem:[%s577 + $0x198] sm:$0x7f]
        %v1443 = vld [vmem:[%s577 + $0x1c8] sm:$0xfe]
        %v1444 = vld [vmem:[%s577 + $0x1e0] sm:$0x7f]
        %v1445 = vld [vmem:[%s577 + $0x210] sm:$0xfe]
        %v1446 = vld [vmem:[%s577 + $0x228] sm:$0x7f]
        %v1447 = vld [vmem:[%s577 + $0x258] sm:$0xfe]
        %v1448 = vld [vmem:[%s577 + $0x270] sm:$0x7f]
        %v1449 = vld [vmem:[%s577 + $0x2a0] sm:$0xfe]
        %v1450 = vld [vmem:[%s577 + $0x2b8] sm:$0x7f]
        %v1451 = vld [vmem:[%s577 + $0x2e8] sm:$0xfe]
        %v1452 = vld [vmem:[%s577 + $0x300] sm:$0x7f]
        %v1453 = vld [vmem:[%s577 + $0x330] sm:$0xfe]
        %v1454 = vld [vmem:[%s577 + $0x348] sm:$0x7f]
        %v1455 = vld [vmem:[%s577 + $0x378] sm:$0xfe]
        %v1456 = vld [vmem:[%s577 + $0x390] sm:$0x7f]
        %v1457 = vld [vmem:[%s577 + $0x3c0] sm:$0xfe]
        %v1458 = vld [vmem:[%s577 + $0x3d8] sm:$0x7f]
        %v1459 = vld [vmem:[%s1146 + $0x2] sm:$0x1]
        %v1460 = vperm.slane %v1459, 0
        %v1461 = vmul.f32 %v1431, %v1460
        %v1462 = vmul.f32 %v1432, %v1460
        %v1463 = vmul.f32 %v1433, %v1460
        %v1464 = vmul.f32 %v1434, %v1460
        %v1465 = vmul.f32 %v1435, %v1460
        %v1466 = vmul.f32 %v1436, %v1460
        %v1467 = vmul.f32 %v1437, %v1460
        %v1468 = vmul.f32 %v1438, %v1460
        %v1469 = vmul.f32 %v1439, %v1460
        %v1470 = vmul.f32 %v1440, %v1460
        %v1471 = vmul.f32 %v1441, %v1460
        %v1472 = vmul.f32 %v1442, %v1460
        %v1473 = vmul.f32 %v1443, %v1460
        %v1474 = vmul.f32 %v1444, %v1460
        %v1475 = vmul.f32 %v1445, %v1460
        %v1476 = vmul.f32 %v1446, %v1460
        %v1477 = vmul.f32 %v1447, %v1460
        %v1478 = vmul.f32 %v1448, %v1460
        %v1479 = vmul.f32 %v1449, %v1460
        %v1480 = vmul.f32 %v1450, %v1460
        %v1481 = vmul.f32 %v1451, %v1460
        %v1482 = vmul.f32 %v1452, %v1460
        %v1483 = vmul.f32 %v1453, %v1460
        %v1484 = vmul.f32 %v1454, %v1460
        %v1485 = vmul.f32 %v1455, %v1460
        %v1486 = vmul.f32 %v1456, %v1460
        %v1487 = vmul.f32 %v1457, %v1460
        %v1488 = vmul.f32 %v1458, %v1460
        %v1517 = vrot.slane %v1461, 2
        %v1518 = vrot.slane %v1462, 2
        %v1519 = vsel %vm977, %v1517, %v1518
        %v1520 = vrot.slane %v1463, 2
        %v1521 = vrot.slane %v1464, 2
        %v1522 = vsel %vm977, %v1520, %v1521
        %v1523 = vrot.slane %v1465, 2
        %v1524 = vrot.slane %v1466, 2
        %v1525 = vsel %vm977, %v1523, %v1524
        %v1526 = vrot.slane %v1467, 2
        %v1527 = vrot.slane %v1468, 2
        %v1528 = vsel %vm977, %v1526, %v1527
        %v1529 = vrot.slane %v1469, 2
        %v1530 = vrot.slane %v1470, 2
        %v1531 = vsel %vm977, %v1529, %v1530
        %v1532 = vrot.slane %v1471, 2
        %v1533 = vrot.slane %v1472, 2
        %v1534 = vsel %vm977, %v1532, %v1533
        %v1535 = vrot.slane %v1473, 2
        %v1536 = vrot.slane %v1474, 2
        %v1537 = vsel %vm977, %v1535, %v1536
        %v1538 = vrot.slane %v1475, 2
        %v1539 = vrot.slane %v1476, 2
        %v1540 = vsel %vm977, %v1538, %v1539
        %v1541 = vrot.slane %v1477, 2
        %v1542 = vrot.slane %v1478, 2
        %v1543 = vsel %vm977, %v1541, %v1542
        %v1544 = vrot.slane %v1479, 2
        %v1545 = vrot.slane %v1480, 2
        %v1546 = vsel %vm977, %v1544, %v1545
        %v1547 = vrot.slane %v1481, 2
        %v1548 = vrot.slane %v1482, 2
        %v1549 = vsel %vm977, %v1547, %v1548
        %v1550 = vrot.slane %v1483, 2
        %v1551 = vrot.slane %v1484, 2
        %v1552 = vsel %vm977, %v1550, %v1551
        %v1553 = vrot.slane %v1485, 2
        %v1554 = vrot.slane %v1486, 2
        %v1555 = vsel %vm977, %v1553, %v1554
        %v1556 = vrot.slane %v1487, 2
        %v1557 = vrot.slane %v1488, 2
        %v1558 = vsel %vm977, %v1556, %v1557
        %v1601 = vadd.f32 %v1389, %v1517
        %v1602 = vadd.f32 %v1390, %v1519
        %v1603 = vadd.f32 %v1391, %v1518
        %v1604 = vadd.f32 %v1392, %v1520
        %v1605 = vadd.f32 %v1393, %v1522
        %v1606 = vadd.f32 %v1394, %v1521
        %v1607 = vadd.f32 %v1395, %v1523
        %v1608 = vadd.f32 %v1396, %v1525
        %v1609 = vadd.f32 %v1397, %v1524
        %v1610 = vadd.f32 %v1398, %v1526
        %v1611 = vadd.f32 %v1399, %v1528
        %v1612 = vadd.f32 %v1400, %v1527
        %v1613 = vadd.f32 %v1401, %v1529
        %v1614 = vadd.f32 %v1402, %v1531
        %v1615 = vadd.f32 %v1403, %v1530
        %v1616 = vadd.f32 %v1404, %v1532
        %v1617 = vadd.f32 %v1405, %v1534
        %v1618 = vadd.f32 %v1406, %v1533
        %v1619 = vadd.f32 %v1407, %v1535
        %v1620 = vadd.f32 %v1408, %v1537
        %v1621 = vadd.f32 %v1409, %v1536
        %v1622 = vadd.f32 %v1410, %v1538
        %v1623 = vadd.f32 %v1411, %v1540
        %v1624 = vadd.f32 %v1412, %v1539
        %v1625 = vadd.f32 %v1413, %v1541
        %v1626 = vadd.f32 %v1414, %v1543
        %v1627 = vadd.f32 %v1415, %v1542
        %v1628 = vadd.f32 %v1416, %v1544
        %v1629 = vadd.f32 %v1417, %v1546
        %v1630 = vadd.f32 %v1418, %v1545
        %v1631 = vadd.f32 %v1419, %v1547
        %v1632 = vadd.f32 %v1420, %v1549
        %v1633 = vadd.f32 %v1421, %v1548
        %v1634 = vadd.f32 %v1422, %v1550
        %v1635 = vadd.f32 %v1423, %v1552
        %v1636 = vadd.f32 %v1424, %v1551
        %v1637 = vadd.f32 %v1425, %v1553
        %v1638 = vadd.f32 %v1426, %v1555
        %v1639 = vadd.f32 %v1427, %v1554
        %v1640 = vadd.f32 %v1428, %v1556
        %v1641 = vadd.f32 %v1429, %v1558
        %v1642 = vadd.f32 %v1430, %v1557
        %s1643 = scalar_lea.vmem [#allocation2], 144
        %v1644 = vld [vmem:[%s1643] sm:$0x80]
        %v1645 = vld [vmem:[%s1643 + $0x18] sm:$0xff]
        %v1646 = vld [vmem:[%s1643 + $0x30] sm:$0x1f]
        %v1647 = vld [vmem:[%s1643 + $0x48] sm:$0x80]
        %v1648 = vld [vmem:[%s1643 + $0x60] sm:$0xff]
        %v1649 = vld [vmem:[%s1643 + $0x78] sm:$0x1f]
        %v1650 = vld [vmem:[%s1643 + $0x90] sm:$0x80]
        %v1651 = vld [vmem:[%s1643 + $0xa8] sm:$0xff]
        %v1652 = vld [vmem:[%s1643 + $0xc0] sm:$0x1f]
        %v1653 = vld [vmem:[%s1643 + $0xd8] sm:$0x80]
        %v1654 = vld [vmem:[%s1643 + $0xf0] sm:$0xff]
        %v1655 = vld [vmem:[%s1643 + $0x108] sm:$0x1f]
        %v1656 = vld [vmem:[%s1643 + $0x120] sm:$0x80]
        %v1657 = vld [vmem:[%s1643 + $0x138] sm:$0xff]
        %v1658 = vld [vmem:[%s1643 + $0x150] sm:$0x1f]
        %v1659 = vld [vmem:[%s1643 + $0x168] sm:$0x80]
        %v1660 = vld [vmem:[%s1643 + $0x180] sm:$0xff]
        %v1661 = vld [vmem:[%s1643 + $0x198] sm:$0x1f]
        %v1662 = vld [vmem:[%s1643 + $0x1b0] sm:$0x80]
        %v1663 = vld [vmem:[%s1643 + $0x1c8] sm:$0xff]
        %v1664 = vld [vmem:[%s1643 + $0x1e0] sm:$0x1f]
        %v1665 = vld [vmem:[%s1643 + $0x1f8] sm:$0x80]
        %v1666 = vld [vmem:[%s1643 + $0x210] sm:$0xff]
        %v1667 = vld [vmem:[%s1643 + $0x228] sm:$0x1f]
        %v1668 = vld [vmem:[%s1643 + $0x240] sm:$0x80]
        %v1669 = vld [vmem:[%s1643 + $0x258] sm:$0xff]
        %v1670 = vld [vmem:[%s1643 + $0x270] sm:$0x1f]
        %v1671 = vld [vmem:[%s1643 + $0x288] sm:$0x80]
        %v1672 = vld [vmem:[%s1643 + $0x2a0] sm:$0xff]
        %v1673 = vld [vmem:[%s1643 + $0x2b8] sm:$0x1f]
        %v1674 = vld [vmem:[%s1643 + $0x2d0] sm:$0x80]
        %v1675 = vld [vmem:[%s1643 + $0x2e8] sm:$0xff]
        %v1676 = vld [vmem:[%s1643 + $0x300] sm:$0x1f]
        %v1677 = vld [vmem:[%s1643 + $0x318] sm:$0x80]
        %v1678 = vld [vmem:[%s1643 + $0x330] sm:$0xff]
        %v1679 = vld [vmem:[%s1643 + $0x348] sm:$0x1f]
        %v1680 = vld [vmem:[%s1643 + $0x360] sm:$0x80]
        %v1681 = vld [vmem:[%s1643 + $0x378] sm:$0xff]
        %v1682 = vld [vmem:[%s1643 + $0x390] sm:$0x1f]
        %v1683 = vld [vmem:[%s1643 + $0x3a8] sm:$0x80]
        %v1684 = vld [vmem:[%s1643 + $0x3c0] sm:$0xff]
        %v1685 = vld [vmem:[%s1643 + $0x3d8] sm:$0x1f]
        %s1686 = scalar_lea.vmem %s380, 24 [#allocation4]
        %v1687 = vld [vmem:[%s1686] sm:$0x1]
        %v1688 = vperm.slane %v1687, 0
        %v1689 = vmul.f32 %v1644, %v1688
        %v1690 = vmul.f32 %v1645, %v1688
        %v1691 = vmul.f32 %v1646, %v1688
        %v1692 = vmul.f32 %v1647, %v1688
        %v1693 = vmul.f32 %v1648, %v1688
        %v1694 = vmul.f32 %v1649, %v1688
        %v1695 = vmul.f32 %v1650, %v1688
        %v1696 = vmul.f32 %v1651, %v1688
        %v1697 = vmul.f32 %v1652, %v1688
        %v1698 = vmul.f32 %v1653, %v1688
        %v1699 = vmul.f32 %v1654, %v1688
        %v1700 = vmul.f32 %v1655, %v1688
        %v1701 = vmul.f32 %v1656, %v1688
        %v1702 = vmul.f32 %v1657, %v1688
        %v1703 = vmul.f32 %v1658, %v1688
        %v1704 = vmul.f32 %v1659, %v1688
        %v1705 = vmul.f32 %v1660, %v1688
        %v1706 = vmul.f32 %v1661, %v1688
        %v1707 = vmul.f32 %v1662, %v1688
        %v1708 = vmul.f32 %v1663, %v1688
        %v1709 = vmul.f32 %v1664, %v1688
        %v1710 = vmul.f32 %v1665, %v1688
        %v1711 = vmul.f32 %v1666, %v1688
        %v1712 = vmul.f32 %v1667, %v1688
        %v1713 = vmul.f32 %v1668, %v1688
        %v1714 = vmul.f32 %v1669, %v1688
        %v1715 = vmul.f32 %v1670, %v1688
        %v1716 = vmul.f32 %v1671, %v1688
        %v1717 = vmul.f32 %v1672, %v1688
        %v1718 = vmul.f32 %v1673, %v1688
        %v1719 = vmul.f32 %v1674, %v1688
        %v1720 = vmul.f32 %v1675, %v1688
        %v1721 = vmul.f32 %v1676, %v1688
        %v1722 = vmul.f32 %v1677, %v1688
        %v1723 = vmul.f32 %v1678, %v1688
        %v1724 = vmul.f32 %v1679, %v1688
        %v1725 = vmul.f32 %v1680, %v1688
        %v1726 = vmul.f32 %v1681, %v1688
        %v1727 = vmul.f32 %v1682, %v1688
        %v1728 = vmul.f32 %v1683, %v1688
        %v1729 = vmul.f32 %v1684, %v1688
        %v1730 = vmul.f32 %v1685, %v1688
        %v1731 = vadd.f32 %v1601, %v1689
        %v1732 = vadd.f32 %v1602, %v1690
        %v1733 = vadd.f32 %v1603, %v1691
        %v1734 = vadd.f32 %v1604, %v1692
        %v1735 = vadd.f32 %v1605, %v1693
        %v1736 = vadd.f32 %v1606, %v1694
        %v1737 = vadd.f32 %v1607, %v1695
        %v1738 = vadd.f32 %v1608, %v1696
        %v1739 = vadd.f32 %v1609, %v1697
        %v1740 = vadd.f32 %v1610, %v1698
        %v1741 = vadd.f32 %v1611, %v1699
        %v1742 = vadd.f32 %v1612, %v1700
        %v1743 = vadd.f32 %v1613, %v1701
        %v1744 = vadd.f32 %v1614, %v1702
        %v1745 = vadd.f32 %v1615, %v1703
        %v1746 = vadd.f32 %v1616, %v1704
        %v1747 = vadd.f32 %v1617, %v1705
        %v1748 = vadd.f32 %v1618, %v1706
        %v1749 = vadd.f32 %v1619, %v1707
        %v1750 = vadd.f32 %v1620, %v1708
        %v1751 = vadd.f32 %v1621, %v1709
        %v1752 = vadd.f32 %v1622, %v1710
        %v1753 = vadd.f32 %v1623, %v1711
        %v1754 = vadd.f32 %v1624, %v1712
        %v1755 = vadd.f32 %v1625, %v1713
        %v1756 = vadd.f32 %v1626, %v1714
        %v1757 = vadd.f32 %v1627, %v1715
        %v1758 = vadd.f32 %v1628, %v1716
        %v1759 = vadd.f32 %v1629, %v1717
        %v1760 = vadd.f32 %v1630, %v1718
        %v1761 = vadd.f32 %v1631, %v1719
        %v1762 = vadd.f32 %v1632, %v1720
        %v1763 = vadd.f32 %v1633, %v1721
        %v1764 = vadd.f32 %v1634, %v1722
        %v1765 = vadd.f32 %v1635, %v1723
        %v1766 = vadd.f32 %v1636, %v1724
        %v1767 = vadd.f32 %v1637, %v1725
        %v1768 = vadd.f32 %v1638, %v1726
        %v1769 = vadd.f32 %v1639, %v1727
        %v1770 = vadd.f32 %v1640, %v1728
        %v1771 = vadd.f32 %v1641, %v1729
        %v1772 = vadd.f32 %v1642, %v1730
        %v1773 = vld [vmem:[%s1643 + $0x30] sm:$0x3f]
        %v1774 = vld [vmem:[%s1643 + $0x78] sm:$0x3f]
        %v1775 = vld [vmem:[%s1643 + $0xc0] sm:$0x3f]
        %v1776 = vld [vmem:[%s1643 + $0x108] sm:$0x3f]
        %v1777 = vld [vmem:[%s1643 + $0x150] sm:$0x3f]
        %v1778 = vld [vmem:[%s1643 + $0x198] sm:$0x3f]
        %v1779 = vld [vmem:[%s1643 + $0x1e0] sm:$0x3f]
        %v1780 = vld [vmem:[%s1643 + $0x228] sm:$0x3f]
        %v1781 = vld [vmem:[%s1643 + $0x270] sm:$0x3f]
        %v1782 = vld [vmem:[%s1643 + $0x2b8] sm:$0x3f]
        %v1783 = vld [vmem:[%s1643 + $0x300] sm:$0x3f]
        %v1784 = vld [vmem:[%s1643 + $0x348] sm:$0x3f]
        %v1785 = vld [vmem:[%s1643 + $0x390] sm:$0x3f]
        %v1786 = vld [vmem:[%s1643 + $0x3d8] sm:$0x3f]
        %v1787 = vld [vmem:[%s1686 + $0x1] sm:$0x1]
        %v1788 = vperm.slane %v1787, 0
        %v1789 = vmul.f32 %v1645, %v1788
        %v1790 = vmul.f32 %v1773, %v1788
        %v1791 = vmul.f32 %v1648, %v1788
        %v1792 = vmul.f32 %v1774, %v1788
        %v1793 = vmul.f32 %v1651, %v1788
        %v1794 = vmul.f32 %v1775, %v1788
        %v1795 = vmul.f32 %v1654, %v1788
        %v1796 = vmul.f32 %v1776, %v1788
        %v1797 = vmul.f32 %v1657, %v1788
        %v1798 = vmul.f32 %v1777, %v1788
        %v1799 = vmul.f32 %v1660, %v1788
        %v1800 = vmul.f32 %v1778, %v1788
        %v1801 = vmul.f32 %v1663, %v1788
        %v1802 = vmul.f32 %v1779, %v1788
        %v1803 = vmul.f32 %v1666, %v1788
        %v1804 = vmul.f32 %v1780, %v1788
        %v1805 = vmul.f32 %v1669, %v1788
        %v1806 = vmul.f32 %v1781, %v1788
        %v1807 = vmul.f32 %v1672, %v1788
        %v1808 = vmul.f32 %v1782, %v1788
        %v1809 = vmul.f32 %v1675, %v1788
        %v1810 = vmul.f32 %v1783, %v1788
        %v1811 = vmul.f32 %v1678, %v1788
        %v1812 = vmul.f32 %v1784, %v1788
        %v1813 = vmul.f32 %v1681, %v1788
        %v1814 = vmul.f32 %v1785, %v1788
        %v1815 = vmul.f32 %v1684, %v1788
        %v1816 = vmul.f32 %v1786, %v1788
        %v1845 = vrot.slane %v1789, 1
        %v1846 = vrot.slane %v1790, 1
        %v1847 = vsel %vm764, %v1845, %v1846
        %v1848 = vrot.slane %v1791, 1
        %v1849 = vrot.slane %v1792, 1
        %v1850 = vsel %vm764, %v1848, %v1849
        %v1851 = vrot.slane %v1793, 1
        %v1852 = vrot.slane %v1794, 1
        %v1853 = vsel %vm764, %v1851, %v1852
        %v1854 = vrot.slane %v1795, 1
        %v1855 = vrot.slane %v1796, 1
        %v1856 = vsel %vm764, %v1854, %v1855
        %v1857 = vrot.slane %v1797, 1
        %v1858 = vrot.slane %v1798, 1
        %v1859 = vsel %vm764, %v1857, %v1858
        %v1860 = vrot.slane %v1799, 1
        %v1861 = vrot.slane %v1800, 1
        %v1862 = vsel %vm764, %v1860, %v1861
        %v1863 = vrot.slane %v1801, 1
        %v1864 = vrot.slane %v1802, 1
        %v1865 = vsel %vm764, %v1863, %v1864
        %v1866 = vrot.slane %v1803, 1
        %v1867 = vrot.slane %v1804, 1
        %v1868 = vsel %vm764, %v1866, %v1867
        %v1869 = vrot.slane %v1805, 1
        %v1870 = vrot.slane %v1806, 1
        %v1871 = vsel %vm764, %v1869, %v1870
        %v1872 = vrot.slane %v1807, 1
        %v1873 = vrot.slane %v1808, 1
        %v1874 = vsel %vm764, %v1872, %v1873
        %v1875 = vrot.slane %v1809, 1
        %v1876 = vrot.slane %v1810, 1
        %v1877 = vsel %vm764, %v1875, %v1876
        %v1878 = vrot.slane %v1811, 1
        %v1879 = vrot.slane %v1812, 1
        %v1880 = vsel %vm764, %v1878, %v1879
        %v1881 = vrot.slane %v1813, 1
        %v1882 = vrot.slane %v1814, 1
        %v1883 = vsel %vm764, %v1881, %v1882
        %v1884 = vrot.slane %v1815, 1
        %v1885 = vrot.slane %v1816, 1
        %v1886 = vsel %vm764, %v1884, %v1885
        %v1929 = vadd.f32 %v1731, %v1845
        %v1930 = vadd.f32 %v1732, %v1847
        %v1931 = vadd.f32 %v1733, %v1846
        %v1932 = vadd.f32 %v1734, %v1848
        %v1933 = vadd.f32 %v1735, %v1850
        %v1934 = vadd.f32 %v1736, %v1849
        %v1935 = vadd.f32 %v1737, %v1851
        %v1936 = vadd.f32 %v1738, %v1853
        %v1937 = vadd.f32 %v1739, %v1852
        %v1938 = vadd.f32 %v1740, %v1854
        %v1939 = vadd.f32 %v1741, %v1856
        %v1940 = vadd.f32 %v1742, %v1855
        %v1941 = vadd.f32 %v1743, %v1857
        %v1942 = vadd.f32 %v1744, %v1859
        %v1943 = vadd.f32 %v1745, %v1858
        %v1944 = vadd.f32 %v1746, %v1860
        %v1945 = vadd.f32 %v1747, %v1862
        %v1946 = vadd.f32 %v1748, %v1861
        %v1947 = vadd.f32 %v1749, %v1863
        %v1948 = vadd.f32 %v1750, %v1865
        %v1949 = vadd.f32 %v1751, %v1864
        %v1950 = vadd.f32 %v1752, %v1866
        %v1951 = vadd.f32 %v1753, %v1868
        %v1952 = vadd.f32 %v1754, %v1867
        %v1953 = vadd.f32 %v1755, %v1869
        %v1954 = vadd.f32 %v1756, %v1871
        %v1955 = vadd.f32 %v1757, %v1870
        %v1956 = vadd.f32 %v1758, %v1872
        %v1957 = vadd.f32 %v1759, %v1874
        %v1958 = vadd.f32 %v1760, %v1873
        %v1959 = vadd.f32 %v1761, %v1875
        %v1960 = vadd.f32 %v1762, %v1877
        %v1961 = vadd.f32 %v1763, %v1876
        %v1962 = vadd.f32 %v1764, %v1878
        %v1963 = vadd.f32 %v1765, %v1880
        %v1964 = vadd.f32 %v1766, %v1879
        %v1965 = vadd.f32 %v1767, %v1881
        %v1966 = vadd.f32 %v1768, %v1883
        %v1967 = vadd.f32 %v1769, %v1882
        %v1968 = vadd.f32 %v1770, %v1884
        %v1969 = vadd.f32 %v1771, %v1886
        %v1970 = vadd.f32 %v1772, %v1885
        %v1971 = vld [vmem:[%s1643 + $0x18] sm:$0xfe]
        %v1972 = vld [vmem:[%s1643 + $0x30] sm:$0x7f]
        %v1973 = vld [vmem:[%s1643 + $0x60] sm:$0xfe]
        %v1974 = vld [vmem:[%s1643 + $0x78] sm:$0x7f]
        %v1975 = vld [vmem:[%s1643 + $0xa8] sm:$0xfe]
        %v1976 = vld [vmem:[%s1643 + $0xc0] sm:$0x7f]
        %v1977 = vld [vmem:[%s1643 + $0xf0] sm:$0xfe]
        %v1978 = vld [vmem:[%s1643 + $0x108] sm:$0x7f]
        %v1979 = vld [vmem:[%s1643 + $0x138] sm:$0xfe]
        %v1980 = vld [vmem:[%s1643 + $0x150] sm:$0x7f]
        %v1981 = vld [vmem:[%s1643 + $0x180] sm:$0xfe]
        %v1982 = vld [vmem:[%s1643 + $0x198] sm:$0x7f]
        %v1983 = vld [vmem:[%s1643 + $0x1c8] sm:$0xfe]
        %v1984 = vld [vmem:[%s1643 + $0x1e0] sm:$0x7f]
        %v1985 = vld [vmem:[%s1643 + $0x210] sm:$0xfe]
        %v1986 = vld [vmem:[%s1643 + $0x228] sm:$0x7f]
        %v1987 = vld [vmem:[%s1643 + $0x258] sm:$0xfe]
        %v1988 = vld [vmem:[%s1643 + $0x270] sm:$0x7f]
        %v1989 = vld [vmem:[%s1643 + $0x2a0] sm:$0xfe]
        %v1990 = vld [vmem:[%s1643 + $0x2b8] sm:$0x7f]
        %v1991 = vld [vmem:[%s1643 + $0x2e8] sm:$0xfe]
        %v1992 = vld [vmem:[%s1643 + $0x300] sm:$0x7f]
        %v1993 = vld [vmem:[%s1643 + $0x330] sm:$0xfe]
        %v1994 = vld [vmem:[%s1643 + $0x348] sm:$0x7f]
        %v1995 = vld [vmem:[%s1643 + $0x378] sm:$0xfe]
        %v1996 = vld [vmem:[%s1643 + $0x390] sm:$0x7f]
        %v1997 = vld [vmem:[%s1643 + $0x3c0] sm:$0xfe]
        %v1998 = vld [vmem:[%s1643 + $0x3d8] sm:$0x7f]
        %v1999 = vld [vmem:[%s1686 + $0x2] sm:$0x1]
        %v2000 = vperm.slane %v1999, 0
        %v2001 = vmul.f32 %v1971, %v2000
        %v2002 = vmul.f32 %v1972, %v2000
        %v2003 = vmul.f32 %v1973, %v2000
        %v2004 = vmul.f32 %v1974, %v2000
        %v2005 = vmul.f32 %v1975, %v2000
        %v2006 = vmul.f32 %v1976, %v2000
        %v2007 = vmul.f32 %v1977, %v2000
        %v2008 = vmul.f32 %v1978, %v2000
        %v2009 = vmul.f32 %v1979, %v2000
        %v2010 = vmul.f32 %v1980, %v2000
        %v2011 = vmul.f32 %v1981, %v2000
        %v2012 = vmul.f32 %v1982, %v2000
        %v2013 = vmul.f32 %v1983, %v2000
        %v2014 = vmul.f32 %v1984, %v2000
        %v2015 = vmul.f32 %v1985, %v2000
        %v2016 = vmul.f32 %v1986, %v2000
        %v2017 = vmul.f32 %v1987, %v2000
        %v2018 = vmul.f32 %v1988, %v2000
        %v2019 = vmul.f32 %v1989, %v2000
        %v2020 = vmul.f32 %v1990, %v2000
        %v2021 = vmul.f32 %v1991, %v2000
        %v2022 = vmul.f32 %v1992, %v2000
        %v2023 = vmul.f32 %v1993, %v2000
        %v2024 = vmul.f32 %v1994, %v2000
        %v2025 = vmul.f32 %v1995, %v2000
        %v2026 = vmul.f32 %v1996, %v2000
        %v2027 = vmul.f32 %v1997, %v2000
        %v2028 = vmul.f32 %v1998, %v2000
        %v2057 = vrot.slane %v2001, 2
        %v2058 = vrot.slane %v2002, 2
        %v2059 = vsel %vm977, %v2057, %v2058
        %v2060 = vrot.slane %v2003, 2
        %v2061 = vrot.slane %v2004, 2
        %v2062 = vsel %vm977, %v2060, %v2061
        %v2063 = vrot.slane %v2005, 2
        %v2064 = vrot.slane %v2006, 2
        %v2065 = vsel %vm977, %v2063, %v2064
        %v2066 = vrot.slane %v2007, 2
        %v2067 = vrot.slane %v2008, 2
        %v2068 = vsel %vm977, %v2066, %v2067
        %v2069 = vrot.slane %v2009, 2
        %v2070 = vrot.slane %v2010, 2
        %v2071 = vsel %vm977, %v2069, %v2070
        %v2072 = vrot.slane %v2011, 2
        %v2073 = vrot.slane %v2012, 2
        %v2074 = vsel %vm977, %v2072, %v2073
        %v2075 = vrot.slane %v2013, 2
        %v2076 = vrot.slane %v2014, 2
        %v2077 = vsel %vm977, %v2075, %v2076
        %v2078 = vrot.slane %v2015, 2
        %v2079 = vrot.slane %v2016, 2
        %v2080 = vsel %vm977, %v2078, %v2079
        %v2081 = vrot.slane %v2017, 2
        %v2082 = vrot.slane %v2018, 2
        %v2083 = vsel %vm977, %v2081, %v2082
        %v2084 = vrot.slane %v2019, 2
        %v2085 = vrot.slane %v2020, 2
        %v2086 = vsel %vm977, %v2084, %v2085
        %v2087 = vrot.slane %v2021, 2
        %v2088 = vrot.slane %v2022, 2
        %v2089 = vsel %vm977, %v2087, %v2088
        %v2090 = vrot.slane %v2023, 2
        %v2091 = vrot.slane %v2024, 2
        %v2092 = vsel %vm977, %v2090, %v2091
        %v2093 = vrot.slane %v2025, 2
        %v2094 = vrot.slane %v2026, 2
        %v2095 = vsel %vm977, %v2093, %v2094
        %v2096 = vrot.slane %v2027, 2
        %v2097 = vrot.slane %v2028, 2
        %v2098 = vsel %vm977, %v2096, %v2097
        %v2141 = vadd.f32 %v1929, %v2057
        %v2142 = vadd.f32 %v1930, %v2059
        %v2143 = vadd.f32 %v1931, %v2058
        %v2144 = vadd.f32 %v1932, %v2060
        %v2145 = vadd.f32 %v1933, %v2062
        %v2146 = vadd.f32 %v1934, %v2061
        %v2147 = vadd.f32 %v1935, %v2063
        %v2148 = vadd.f32 %v1936, %v2065
        %v2149 = vadd.f32 %v1937, %v2064
        %v2150 = vadd.f32 %v1938, %v2066
        %v2151 = vadd.f32 %v1939, %v2068
        %v2152 = vadd.f32 %v1940, %v2067
        %v2153 = vadd.f32 %v1941, %v2069
        %v2154 = vadd.f32 %v1942, %v2071
        %v2155 = vadd.f32 %v1943, %v2070
        %v2156 = vadd.f32 %v1944, %v2072
        %v2157 = vadd.f32 %v1945, %v2074
        %v2158 = vadd.f32 %v1946, %v2073
        %v2159 = vadd.f32 %v1947, %v2075
        %v2160 = vadd.f32 %v1948, %v2077
        %v2161 = vadd.f32 %v1949, %v2076
        %v2162 = vadd.f32 %v1950, %v2078
        %v2163 = vadd.f32 %v1951, %v2080
        %v2164 = vadd.f32 %v1952, %v2079
        %v2165 = vadd.f32 %v1953, %v2081
        %v2166 = vadd.f32 %v1954, %v2083
        %v2167 = vadd.f32 %v1955, %v2082
        %v2168 = vadd.f32 %v1956, %v2084
        %v2169 = vadd.f32 %v1957, %v2086
        %v2170 = vadd.f32 %v1958, %v2085
        %v2171 = vadd.f32 %v1959, %v2087
        %v2172 = vadd.f32 %v1960, %v2089
        %v2173 = vadd.f32 %v1961, %v2088
        %v2174 = vadd.f32 %v1962, %v2090
        %v2175 = vadd.f32 %v1963, %v2092
        %v2176 = vadd.f32 %v1964, %v2091
        %v2177 = vadd.f32 %v1965, %v2093
        %v2178 = vadd.f32 %v1966, %v2095
        %v2179 = vadd.f32 %v1967, %v2094
        %v2180 = vadd.f32 %v1968, %v2096
        %v2181 = vadd.f32 %v1969, %v2098
        %v2182 = vadd.f32 %v1970, %v2097
        %vm2225 = vcmask 1040384
        %v2226 = vrot.slane %v2141, 7
        %v2227 = vrot.slane %v2142, 7
        %v2228 = vsel %vm2225, %v2226, %v2227
        %v2229 = vrot.slane %v2143, 7
        %v2230 = vsel %vm2225, %v2227, %v2229
        %v2231 = vrot.slane %v2144, 7
        %v2232 = vrot.slane %v2145, 7
        %v2233 = vsel %vm2225, %v2231, %v2232
        %v2234 = vrot.slane %v2146, 7
        %v2235 = vsel %vm2225, %v2232, %v2234
        %v2236 = vrot.slane %v2147, 7
        %v2237 = vrot.slane %v2148, 7
        %v2238 = vsel %vm2225, %v2236, %v2237
        %v2239 = vrot.slane %v2149, 7
        %v2240 = vsel %vm2225, %v2237, %v2239
        %v2241 = vrot.slane %v2150, 7
        %v2242 = vrot.slane %v2151, 7
        %v2243 = vsel %vm2225, %v2241, %v2242
        %v2244 = vrot.slane %v2152, 7
        %v2245 = vsel %vm2225, %v2242, %v2244
        %v2246 = vrot.slane %v2153, 7
        %v2247 = vrot.slane %v2154, 7
        %v2248 = vsel %vm2225, %v2246, %v2247
        %v2249 = vrot.slane %v2155, 7
        %v2250 = vsel %vm2225, %v2247, %v2249
        %v2251 = vrot.slane %v2156, 7
        %v2252 = vrot.slane %v2157, 7
        %v2253 = vsel %vm2225, %v2251, %v2252
        %v2254 = vrot.slane %v2158, 7
        %v2255 = vsel %vm2225, %v2252, %v2254
        %v2256 = vrot.slane %v2159, 7
        %v2257 = vrot.slane %v2160, 7
        %v2258 = vsel %vm2225, %v2256, %v2257
        %v2259 = vrot.slane %v2161, 7
        %v2260 = vsel %vm2225, %v2257, %v2259
        %v2261 = vrot.slane %v2162, 7
        %v2262 = vrot.slane %v2163, 7
        %v2263 = vsel %vm2225, %v2261, %v2262
        %v2264 = vrot.slane %v2164, 7
        %v2265 = vsel %vm2225, %v2262, %v2264
        %v2266 = vrot.slane %v2165, 7
        %v2267 = vrot.slane %v2166, 7
        %v2268 = vsel %vm2225, %v2266, %v2267
        %v2269 = vrot.slane %v2167, 7
        %v2270 = vsel %vm2225, %v2267, %v2269
        %v2271 = vrot.slane %v2168, 7
        %v2272 = vrot.slane %v2169, 7
        %v2273 = vsel %vm2225, %v2271, %v2272
        %v2274 = vrot.slane %v2170, 7
        %v2275 = vsel %vm2225, %v2272, %v2274
        %v2276 = vrot.slane %v2171, 7
        %v2277 = vrot.slane %v2172, 7
        %v2278 = vsel %vm2225, %v2276, %v2277
        %v2279 = vrot.slane %v2173, 7
        %v2280 = vsel %vm2225, %v2277, %v2279
        %v2281 = vrot.slane %v2174, 7
        %v2282 = vrot.slane %v2175, 7
        %v2283 = vsel %vm2225, %v2281, %v2282
        %v2284 = vrot.slane %v2176, 7
        %v2285 = vsel %vm2225, %v2282, %v2284
        %v2286 = vrot.slane %v2177, 7
        %v2287 = vrot.slane %v2178, 7
        %v2288 = vsel %vm2225, %v2286, %v2287
        %v2289 = vrot.slane %v2179, 7
        %v2290 = vsel %vm2225, %v2287, %v2289
        %v2291 = vrot.slane %v2180, 7
        %v2292 = vrot.slane %v2181, 7
        %v2293 = vsel %vm2225, %v2291, %v2292
        %v2294 = vrot.slane %v2182, 7
        %v2295 = vsel %vm2225, %v2292, %v2294
        %2324 = vst [vmem:[%s401] sm:$0xff] %v2228
        %2325 = vst [vmem:[%s401 + $0x18] sm:$0x3f] %v2230
        %2326 = vst [vmem:[%s401 + $0x30] sm:$0xff] %v2233
        %2327 = vst [vmem:[%s401 + $0x48] sm:$0x3f] %v2235
        %2328 = vst [vmem:[%s401 + $0x60] sm:$0xff] %v2238
        %2329 = vst [vmem:[%s401 + $0x78] sm:$0x3f] %v2240
        %2330 = vst [vmem:[%s401 + $0x90] sm:$0xff] %v2243
        %2331 = vst [vmem:[%s401 + $0xa8] sm:$0x3f] %v2245
        %2332 = vst [vmem:[%s401 + $0xc0] sm:$0xff] %v2248
        %2333 = vst [vmem:[%s401 + $0xd8] sm:$0x3f] %v2250
        %2334 = vst [vmem:[%s401 + $0xf0] sm:$0xff] %v2253
        %2335 = vst [vmem:[%s401 + $0x108] sm:$0x3f] %v2255
        %2336 = vst [vmem:[%s401 + $0x120] sm:$0xff] %v2258
        %2337 = vst [vmem:[%s401 + $0x138] sm:$0x3f] %v2260
        %2338 = vst [vmem:[%s401 + $0x150] sm:$0xff] %v2263
        %2339 = vst [vmem:[%s401 + $0x168] sm:$0x3f] %v2265
        %2340 = vst [vmem:[%s401 + $0x180] sm:$0xff] %v2268
        %2341 = vst [vmem:[%s401 + $0x198] sm:$0x3f] %v2270
        %2342 = vst [vmem:[%s401 + $0x1b0] sm:$0xff] %v2273
        %2343 = vst [vmem:[%s401 + $0x1c8] sm:$0x3f] %v2275
        %2344 = vst [vmem:[%s401 + $0x1e0] sm:$0xff] %v2278
        %2345 = vst [vmem:[%s401 + $0x1f8] sm:$0x3f] %v2280
        %2346 = vst [vmem:[%s401 + $0x210] sm:$0xff] %v2283
        %2347 = vst [vmem:[%s401 + $0x228] sm:$0x3f] %v2285
        %2348 = vst [vmem:[%s401 + $0x240] sm:$0xff] %v2288
        %2349 = vst [vmem:[%s401 + $0x258] sm:$0x3f] %v2290
        %2350 = vst [vmem:[%s401 + $0x270] sm:$0xff] %v2293
        %2351 = vst [vmem:[%s401 + $0x288] sm:$0x3f] %v2295
        %v2352 = vld [vmem:[%s373 + $0x8] sm:$0xff]
        %v2353 = vld [vmem:[%s373 + $0x20] sm:$0x3f]
        %v2354 = vld [vmem:[%s373 + $0x38] sm:$0xff]
        %v2355 = vld [vmem:[%s373 + $0x50] sm:$0x3f]
        %v2356 = vld [vmem:[%s373 + $0x68] sm:$0xff]
        %v2357 = vld [vmem:[%s373 + $0x80] sm:$0x3f]
        %v2358 = vld [vmem:[%s373 + $0x98] sm:$0xff]
        %v2359 = vld [vmem:[%s373 + $0xb0] sm:$0x3f]
        %v2360 = vld [vmem:[%s373 + $0xc8] sm:$0xff]
        %v2361 = vld [vmem:[%s373 + $0xe0] sm:$0x3f]
        %v2362 = vld [vmem:[%s373 + $0xf8] sm:$0xff]
        %v2363 = vld [vmem:[%s373 + $0x110] sm:$0x3f]
        %v2364 = vld [vmem:[%s373 + $0x128] sm:$0xff]
        %v2365 = vld [vmem:[%s373 + $0x140] sm:$0x3f]
        %v2366 = vld [vmem:[%s373 + $0x158] sm:$0xff]
        %v2367 = vld [vmem:[%s373 + $0x170] sm:$0x3f]
        %v2368 = vld [vmem:[%s373 + $0x188] sm:$0xff]
        %v2369 = vld [vmem:[%s373 + $0x1a0] sm:$0x3f]
        %v2370 = vld [vmem:[%s373 + $0x1b8] sm:$0xff]
        %v2371 = vld [vmem:[%s373 + $0x1d0] sm:$0x3f]
        %v2372 = vld [vmem:[%s373 + $0x1e8] sm:$0xff]
        %v2373 = vld [vmem:[%s373 + $0x200] sm:$0x3f]
        %v2374 = vld [vmem:[%s373 + $0x218] sm:$0xff]
        %v2375 = vld [vmem:[%s373 + $0x230] sm:$0x3f]
        %v2376 = vld [vmem:[%s373 + $0x248] sm:$0xff]
        %v2377 = vld [vmem:[%s373 + $0x260] sm:$0x3f]
        %v2378 = vld [vmem:[%s373 + $0x278] sm:$0xff]
        %v2379 = vld [vmem:[%s373 + $0x290] sm:$0x3f]
        %2380 = vst [vmem:[%s577 + $0x20] sm:$0xff] %v2352
        %2381 = vst [vmem:[%s577 + $0x38] sm:$0x3f] %v2353
        %2382 = vst [vmem:[%s577 + $0x68] sm:$0xff] %v2354
        %2383 = vst [vmem:[%s577 + $0x80] sm:$0x3f] %v2355
        %2384 = vst [vmem:[%s577 + $0xb0] sm:$0xff] %v2356
        %2385 = vst [vmem:[%s577 + $0xc8] sm:$0x3f] %v2357
        %2386 = vst [vmem:[%s577 + $0xf8] sm:$0xff] %v2358
        %2387 = vst [vmem:[%s577 + $0x110] sm:$0x3f] %v2359
        %2388 = vst [vmem:[%s577 + $0x140] sm:$0xff] %v2360
        %2389 = vst [vmem:[%s577 + $0x158] sm:$0x3f] %v2361
        %2390 = vst [vmem:[%s577 + $0x188] sm:$0xff] %v2362
        %2391 = vst [vmem:[%s577 + $0x1a0] sm:$0x3f] %v2363
        %2392 = vst [vmem:[%s577 + $0x1d0] sm:$0xff] %v2364
        %2393 = vst [vmem:[%s577 + $0x1e8] sm:$0x3f] %v2365
        %2394 = vst [vmem:[%s577 + $0x218] sm:$0xff] %v2366
        %2395 = vst [vmem:[%s577 + $0x230] sm:$0x3f] %v2367
        %2396 = vst [vmem:[%s577 + $0x260] sm:$0xff] %v2368
        %2397 = vst [vmem:[%s577 + $0x278] sm:$0x3f] %v2369
        %2398 = vst [vmem:[%s577 + $0x2a8] sm:$0xff] %v2370
        %2399 = vst [vmem:[%s577 + $0x2c0] sm:$0x3f] %v2371
        %2400 = vst [vmem:[%s577 + $0x2f0] sm:$0xff] %v2372
        %2401 = vst [vmem:[%s577 + $0x308] sm:$0x3f] %v2373
        %2402 = vst [vmem:[%s577 + $0x338] sm:$0xff] %v2374
        %2403 = vst [vmem:[%s577 + $0x350] sm:$0x3f] %v2375
        %2404 = vst [vmem:[%s577 + $0x380] sm:$0xff] %v2376
        %2405 = vst [vmem:[%s577 + $0x398] sm:$0x3f] %v2377
        %2406 = vst [vmem:[%s577 + $0x3c8] sm:$0xff] %v2378
        %2407 = vst [vmem:[%s577 + $0x3e0] sm:$0x3f] %v2379
        %v2408 = vld [vmem:[#allocation2 + $0x8] sm:$0x80]
        %v2409 = vld [vmem:[#allocation2 + $0x20] sm:$0xff]
        %v2410 = vld [vmem:[#allocation2 + $0x38] sm:$0x1f]
        %v2411 = vld [vmem:[#allocation2 + $0x50] sm:$0x80]
        %v2412 = vld [vmem:[#allocation2 + $0x68] sm:$0xff]
        %v2413 = vld [vmem:[#allocation2 + $0x80] sm:$0x1f]
        %v2414 = vld [vmem:[#allocation2 + $0x98] sm:$0x80]
        %v2415 = vld [vmem:[#allocation2 + $0xb0] sm:$0xff]
        %v2416 = vld [vmem:[#allocation2 + $0xc8] sm:$0x1f]
        %v2417 = vld [vmem:[#allocation2 + $0xe0] sm:$0x80]
        %v2418 = vld [vmem:[#allocation2 + $0xf8] sm:$0xff]
        %v2419 = vld [vmem:[#allocation2 + $0x110] sm:$0x1f]
        %v2420 = vld [vmem:[#allocation2 + $0x128] sm:$0x80]
        %v2421 = vld [vmem:[#allocation2 + $0x140] sm:$0xff]
        %v2422 = vld [vmem:[#allocation2 + $0x158] sm:$0x1f]
        %v2423 = vld [vmem:[#allocation2 + $0x170] sm:$0x80]
        %v2424 = vld [vmem:[#allocation2 + $0x188] sm:$0xff]
        %v2425 = vld [vmem:[#allocation2 + $0x1a0] sm:$0x1f]
        %v2426 = vld [vmem:[#allocation2 + $0x1b8] sm:$0x80]
        %v2427 = vld [vmem:[#allocation2 + $0x1d0] sm:$0xff]
        %v2428 = vld [vmem:[#allocation2 + $0x1e8] sm:$0x1f]
        %v2429 = vld [vmem:[#allocation2 + $0x200] sm:$0x80]
        %v2430 = vld [vmem:[#allocation2 + $0x218] sm:$0xff]
        %v2431 = vld [vmem:[#allocation2 + $0x230] sm:$0x1f]
        %v2432 = vld [vmem:[#allocation2 + $0x248] sm:$0x80]
        %v2433 = vld [vmem:[#allocation2 + $0x260] sm:$0xff]
        %v2434 = vld [vmem:[#allocation2 + $0x278] sm:$0x1f]
        %v2435 = vld [vmem:[#allocation2 + $0x290] sm:$0x80]
        %v2436 = vld [vmem:[#allocation2 + $0x2a8] sm:$0xff]
        %v2437 = vld [vmem:[#allocation2 + $0x2c0] sm:$0x1f]
        %v2438 = vld [vmem:[#allocation2 + $0x2d8] sm:$0x80]
        %v2439 = vld [vmem:[#allocation2 + $0x2f0] sm:$0xff]
        %v2440 = vld [vmem:[#allocation2 + $0x308] sm:$0x1f]
        %v2441 = vld [vmem:[#allocation2 + $0x320] sm:$0x80]
        %v2442 = vld [vmem:[#allocation2 + $0x338] sm:$0xff]
        %v2443 = vld [vmem:[#allocation2 + $0x350] sm:$0x1f]
        %v2444 = vld [vmem:[#allocation2 + $0x368] sm:$0x80]
        %v2445 = vld [vmem:[#allocation2 + $0x380] sm:$0xff]
        %v2446 = vld [vmem:[#allocation2 + $0x398] sm:$0x1f]
        %v2447 = vld [vmem:[#allocation2 + $0x3b0] sm:$0x80]
        %v2448 = vld [vmem:[#allocation2 + $0x3c8] sm:$0xff]
        %v2449 = vld [vmem:[#allocation2 + $0x3e0] sm:$0x1f]
        %v2450 = vld [vmem:[%s380 + $0x4] sm:$0x1]
        %v2451 = vperm.slane %v2450, 0
        %v2452 = vmul.f32 %v2408, %v2451
        %v2453 = vmul.f32 %v2409, %v2451
        %v2454 = vmul.f32 %v2410, %v2451
        %v2455 = vmul.f32 %v2411, %v2451
        %v2456 = vmul.f32 %v2412, %v2451
        %v2457 = vmul.f32 %v2413, %v2451
        %v2458 = vmul.f32 %v2414, %v2451
        %v2459 = vmul.f32 %v2415, %v2451
        %v2460 = vmul.f32 %v2416, %v2451
        %v2461 = vmul.f32 %v2417, %v2451
        %v2462 = vmul.f32 %v2418, %v2451
        %v2463 = vmul.f32 %v2419, %v2451
        %v2464 = vmul.f32 %v2420, %v2451
        %v2465 = vmul.f32 %v2421, %v2451
        %v2466 = vmul.f32 %v2422, %v2451
        %v2467 = vmul.f32 %v2423, %v2451
        %v2468 = vmul.f32 %v2424, %v2451
        %v2469 = vmul.f32 %v2425, %v2451
        %v2470 = vmul.f32 %v2426, %v2451
        %v2471 = vmul.f32 %v2427, %v2451
        %v2472 = vmul.f32 %v2428, %v2451
        %v2473 = vmul.f32 %v2429, %v2451
        %v2474 = vmul.f32 %v2430, %v2451
        %v2475 = vmul.f32 %v2431, %v2451
        %v2476 = vmul.f32 %v2432, %v2451
        %v2477 = vmul.f32 %v2433, %v2451
        %v2478 = vmul.f32 %v2434, %v2451
        %v2479 = vmul.f32 %v2435, %v2451
        %v2480 = vmul.f32 %v2436, %v2451
        %v2481 = vmul.f32 %v2437, %v2451
        %v2482 = vmul.f32 %v2438, %v2451
        %v2483 = vmul.f32 %v2439, %v2451
        %v2484 = vmul.f32 %v2440, %v2451
        %v2485 = vmul.f32 %v2441, %v2451
        %v2486 = vmul.f32 %v2442, %v2451
        %v2487 = vmul.f32 %v2443, %v2451
        %v2488 = vmul.f32 %v2444, %v2451
        %v2489 = vmul.f32 %v2445, %v2451
        %v2490 = vmul.f32 %v2446, %v2451
        %v2491 = vmul.f32 %v2447, %v2451
        %v2492 = vmul.f32 %v2448, %v2451
        %v2493 = vmul.f32 %v2449, %v2451
        %v2494 = vld [vmem:[#allocation2 + $0x38] sm:$0x3f]
        %v2495 = vld [vmem:[#allocation2 + $0x80] sm:$0x3f]
        %v2496 = vld [vmem:[#allocation2 + $0xc8] sm:$0x3f]
        %v2497 = vld [vmem:[#allocation2 + $0x110] sm:$0x3f]
        %v2498 = vld [vmem:[#allocation2 + $0x158] sm:$0x3f]
        %v2499 = vld [vmem:[#allocation2 + $0x1a0] sm:$0x3f]
        %v2500 = vld [vmem:[#allocation2 + $0x1e8] sm:$0x3f]
        %v2501 = vld [vmem:[#allocation2 + $0x230] sm:$0x3f]
        %v2502 = vld [vmem:[#allocation2 + $0x278] sm:$0x3f]
        %v2503 = vld [vmem:[#allocation2 + $0x2c0] sm:$0x3f]
        %v2504 = vld [vmem:[#allocation2 + $0x308] sm:$0x3f]
        %v2505 = vld [vmem:[#allocation2 + $0x350] sm:$0x3f]
        %v2506 = vld [vmem:[#allocation2 + $0x398] sm:$0x3f]
        %v2507 = vld [vmem:[#allocation2 + $0x3e0] sm:$0x3f]
        %v2508 = vld [vmem:[%s380 + $0x5] sm:$0x1]
        %v2509 = vperm.slane %v2508, 0
        %v2510 = vmul.f32 %v2409, %v2509
        %v2511 = vmul.f32 %v2494, %v2509
        %v2512 = vmul.f32 %v2412, %v2509
        %v2513 = vmul.f32 %v2495, %v2509
        %v2514 = vmul.f32 %v2415, %v2509
        %v2515 = vmul.f32 %v2496, %v2509
        %v2516 = vmul.f32 %v2418, %v2509
        %v2517 = vmul.f32 %v2497, %v2509
        %v2518 = vmul.f32 %v2421, %v2509
        %v2519 = vmul.f32 %v2498, %v2509
        %v2520 = vmul.f32 %v2424, %v2509
        %v2521 = vmul.f32 %v2499, %v2509
        %v2522 = vmul.f32 %v2427, %v2509
        %v2523 = vmul.f32 %v2500, %v2509
        %v2524 = vmul.f32 %v2430, %v2509
        %v2525 = vmul.f32 %v2501, %v2509
        %v2526 = vmul.f32 %v2433, %v2509
        %v2527 = vmul.f32 %v2502, %v2509
        %v2528 = vmul.f32 %v2436, %v2509
        %v2529 = vmul.f32 %v2503, %v2509
        %v2530 = vmul.f32 %v2439, %v2509
        %v2531 = vmul.f32 %v2504, %v2509
        %v2532 = vmul.f32 %v2442, %v2509
        %v2533 = vmul.f32 %v2505, %v2509
        %v2534 = vmul.f32 %v2445, %v2509
        %v2535 = vmul.f32 %v2506, %v2509
        %v2536 = vmul.f32 %v2448, %v2509
        %v2537 = vmul.f32 %v2507, %v2509
        %v2566 = vrot.slane %v2510, 1
        %v2567 = vrot.slane %v2511, 1
        %v2568 = vsel %vm764, %v2566, %v2567
        %v2569 = vrot.slane %v2512, 1
        %v2570 = vrot.slane %v2513, 1
        %v2571 = vsel %vm764, %v2569, %v2570
        %v2572 = vrot.slane %v2514, 1
        %v2573 = vrot.slane %v2515, 1
        %v2574 = vsel %vm764, %v2572, %v2573
        %v2575 = vrot.slane %v2516, 1
        %v2576 = vrot.slane %v2517, 1
        %v2577 = vsel %vm764, %v2575, %v2576
        %v2578 = vrot.slane %v2518, 1
        %v2579 = vrot.slane %v2519, 1
        %v2580 = vsel %vm764, %v2578, %v2579
        %v2581 = vrot.slane %v2520, 1
        %v2582 = vrot.slane %v2521, 1
        %v2583 = vsel %vm764, %v2581, %v2582
        %v2584 = vrot.slane %v2522, 1
        %v2585 = vrot.slane %v2523, 1
        %v2586 = vsel %vm764, %v2584, %v2585
        %v2587 = vrot.slane %v2524, 1
        %v2588 = vrot.slane %v2525, 1
        %v2589 = vsel %vm764, %v2587, %v2588
        %v2590 = vrot.slane %v2526, 1
        %v2591 = vrot.slane %v2527, 1
        %v2592 = vsel %vm764, %v2590, %v2591
        %v2593 = vrot.slane %v2528, 1
        %v2594 = vrot.slane %v2529, 1
        %v2595 = vsel %vm764, %v2593, %v2594
        %v2596 = vrot.slane %v2530, 1
        %v2597 = vrot.slane %v2531, 1
        %v2598 = vsel %vm764, %v2596, %v2597
        %v2599 = vrot.slane %v2532, 1
        %v2600 = vrot.slane %v2533, 1
        %v2601 = vsel %vm764, %v2599, %v2600
        %v2602 = vrot.slane %v2534, 1
        %v2603 = vrot.slane %v2535, 1
        %v2604 = vsel %vm764, %v2602, %v2603
        %v2605 = vrot.slane %v2536, 1
        %v2606 = vrot.slane %v2537, 1
        %v2607 = vsel %vm764, %v2605, %v2606
        %v2650 = vadd.f32 %v2452, %v2566
        %v2651 = vadd.f32 %v2453, %v2568
        %v2652 = vadd.f32 %v2454, %v2567
        %v2653 = vadd.f32 %v2455, %v2569
        %v2654 = vadd.f32 %v2456, %v2571
        %v2655 = vadd.f32 %v2457, %v2570
        %v2656 = vadd.f32 %v2458, %v2572
        %v2657 = vadd.f32 %v2459, %v2574
        %v2658 = vadd.f32 %v2460, %v2573
        %v2659 = vadd.f32 %v2461, %v2575
        %v2660 = vadd.f32 %v2462, %v2577
        %v2661 = vadd.f32 %v2463, %v2576
        %v2662 = vadd.f32 %v2464, %v2578
        %v2663 = vadd.f32 %v2465, %v2580
        %v2664 = vadd.f32 %v2466, %v2579
        %v2665 = vadd.f32 %v2467, %v2581
        %v2666 = vadd.f32 %v2468, %v2583
        %v2667 = vadd.f32 %v2469, %v2582
        %v2668 = vadd.f32 %v2470, %v2584
        %v2669 = vadd.f32 %v2471, %v2586
        %v2670 = vadd.f32 %v2472, %v2585
        %v2671 = vadd.f32 %v2473, %v2587
        %v2672 = vadd.f32 %v2474, %v2589
        %v2673 = vadd.f32 %v2475, %v2588
        %v2674 = vadd.f32 %v2476, %v2590
        %v2675 = vadd.f32 %v2477, %v2592
        %v2676 = vadd.f32 %v2478, %v2591
        %v2677 = vadd.f32 %v2479, %v2593
        %v2678 = vadd.f32 %v2480, %v2595
        %v2679 = vadd.f32 %v2481, %v2594
        %v2680 = vadd.f32 %v2482, %v2596
        %v2681 = vadd.f32 %v2483, %v2598
        %v2682 = vadd.f32 %v2484, %v2597
        %v2683 = vadd.f32 %v2485, %v2599
        %v2684 = vadd.f32 %v2486, %v2601
        %v2685 = vadd.f32 %v2487, %v2600
        %v2686 = vadd.f32 %v2488, %v2602
        %v2687 = vadd.f32 %v2489, %v2604
        %v2688 = vadd.f32 %v2490, %v2603
        %v2689 = vadd.f32 %v2491, %v2605
        %v2690 = vadd.f32 %v2492, %v2607
        %v2691 = vadd.f32 %v2493, %v2606
        %v2692 = vld [vmem:[#allocation2 + $0x20] sm:$0xfe]
        %v2693 = vld [vmem:[#allocation2 + $0x38] sm:$0x7f]
        %v2694 = vld [vmem:[#allocation2 + $0x68] sm:$0xfe]
        %v2695 = vld [vmem:[#allocation2 + $0x80] sm:$0x7f]
        %v2696 = vld [vmem:[#allocation2 + $0xb0] sm:$0xfe]
        %v2697 = vld [vmem:[#allocation2 + $0xc8] sm:$0x7f]
        %v2698 = vld [vmem:[#allocation2 + $0xf8] sm:$0xfe]
        %v2699 = vld [vmem:[#allocation2 + $0x110] sm:$0x7f]
        %v2700 = vld [vmem:[#allocation2 + $0x140] sm:$0xfe]
        %v2701 = vld [vmem:[#allocation2 + $0x158] sm:$0x7f]
        %v2702 = vld [vmem:[#allocation2 + $0x188] sm:$0xfe]
        %v2703 = vld [vmem:[#allocation2 + $0x1a0] sm:$0x7f]
        %v2704 = vld [vmem:[#allocation2 + $0x1d0] sm:$0xfe]
        %v2705 = vld [vmem:[#allocation2 + $0x1e8] sm:$0x7f]
        %v2706 = vld [vmem:[#allocation2 + $0x218] sm:$0xfe]
        %v2707 = vld [vmem:[#allocation2 + $0x230] sm:$0x7f]
        %v2708 = vld [vmem:[#allocation2 + $0x260] sm:$0xfe]
        %v2709 = vld [vmem:[#allocation2 + $0x278] sm:$0x7f]
        %v2710 = vld [vmem:[#allocation2 + $0x2a8] sm:$0xfe]
        %v2711 = vld [vmem:[#allocation2 + $0x2c0] sm:$0x7f]
        %v2712 = vld [vmem:[#allocation2 + $0x2f0] sm:$0xfe]
        %v2713 = vld [vmem:[#allocation2 + $0x308] sm:$0x7f]
        %v2714 = vld [vmem:[#allocation2 + $0x338] sm:$0xfe]
        %v2715 = vld [vmem:[#allocation2 + $0x350] sm:$0x7f]
        %v2716 = vld [vmem:[#allocation2 + $0x380] sm:$0xfe]
        %v2717 = vld [vmem:[#allocation2 + $0x398] sm:$0x7f]
        %v2718 = vld [vmem:[#allocation2 + $0x3c8] sm:$0xfe]
        %v2719 = vld [vmem:[#allocation2 + $0x3e0] sm:$0x7f]
        %v2720 = vld [vmem:[%s380 + $0x6] sm:$0x1]
        %v2721 = vperm.slane %v2720, 0
        %v2722 = vmul.f32 %v2692, %v2721
        %v2723 = vmul.f32 %v2693, %v2721
        %v2724 = vmul.f32 %v2694, %v2721
        %v2725 = vmul.f32 %v2695, %v2721
        %v2726 = vmul.f32 %v2696, %v2721
        %v2727 = vmul.f32 %v2697, %v2721
        %v2728 = vmul.f32 %v2698, %v2721
        %v2729 = vmul.f32 %v2699, %v2721
        %v2730 = vmul.f32 %v2700, %v2721
        %v2731 = vmul.f32 %v2701, %v2721
        %v2732 = vmul.f32 %v2702, %v2721
        %v2733 = vmul.f32 %v2703, %v2721
        %v2734 = vmul.f32 %v2704, %v2721
        %v2735 = vmul.f32 %v2705, %v2721
        %v2736 = vmul.f32 %v2706, %v2721
        %v2737 = vmul.f32 %v2707, %v2721
        %v2738 = vmul.f32 %v2708, %v2721
        %v2739 = vmul.f32 %v2709, %v2721
        %v2740 = vmul.f32 %v2710, %v2721
        %v2741 = vmul.f32 %v2711, %v2721
        %v2742 = vmul.f32 %v2712, %v2721
        %v2743 = vmul.f32 %v2713, %v2721
        %v2744 = vmul.f32 %v2714, %v2721
        %v2745 = vmul.f32 %v2715, %v2721
        %v2746 = vmul.f32 %v2716, %v2721
        %v2747 = vmul.f32 %v2717, %v2721
        %v2748 = vmul.f32 %v2718, %v2721
        %v2749 = vmul.f32 %v2719, %v2721
        %v2778 = vrot.slane %v2722, 2
        %v2779 = vrot.slane %v2723, 2
        %v2780 = vsel %vm977, %v2778, %v2779
        %v2781 = vrot.slane %v2724, 2
        %v2782 = vrot.slane %v2725, 2
        %v2783 = vsel %vm977, %v2781, %v2782
        %v2784 = vrot.slane %v2726, 2
        %v2785 = vrot.slane %v2727, 2
        %v2786 = vsel %vm977, %v2784, %v2785
        %v2787 = vrot.slane %v2728, 2
        %v2788 = vrot.slane %v2729, 2
        %v2789 = vsel %vm977, %v2787, %v2788
        %v2790 = vrot.slane %v2730, 2
        %v2791 = vrot.slane %v2731, 2
        %v2792 = vsel %vm977, %v2790, %v2791
        %v2793 = vrot.slane %v2732, 2
        %v2794 = vrot.slane %v2733, 2
        %v2795 = vsel %vm977, %v2793, %v2794
        %v2796 = vrot.slane %v2734, 2
        %v2797 = vrot.slane %v2735, 2
        %v2798 = vsel %vm977, %v2796, %v2797
        %v2799 = vrot.slane %v2736, 2
        %v2800 = vrot.slane %v2737, 2
        %v2801 = vsel %vm977, %v2799, %v2800
        %v2802 = vrot.slane %v2738, 2
        %v2803 = vrot.slane %v2739, 2
        %v2804 = vsel %vm977, %v2802, %v2803
        %v2805 = vrot.slane %v2740, 2
        %v2806 = vrot.slane %v2741, 2
        %v2807 = vsel %vm977, %v2805, %v2806
        %v2808 = vrot.slane %v2742, 2
        %v2809 = vrot.slane %v2743, 2
        %v2810 = vsel %vm977, %v2808, %v2809
        %v2811 = vrot.slane %v2744, 2
        %v2812 = vrot.slane %v2745, 2
        %v2813 = vsel %vm977, %v2811, %v2812
        %v2814 = vrot.slane %v2746, 2
        %v2815 = vrot.slane %v2747, 2
        %v2816 = vsel %vm977, %v2814, %v2815
        %v2817 = vrot.slane %v2748, 2
        %v2818 = vrot.slane %v2749, 2
        %v2819 = vsel %vm977, %v2817, %v2818
        %v2862 = vadd.f32 %v2650, %v2778
        %v2863 = vadd.f32 %v2651, %v2780
        %v2864 = vadd.f32 %v2652, %v2779
        %v2865 = vadd.f32 %v2653, %v2781
        %v2866 = vadd.f32 %v2654, %v2783
        %v2867 = vadd.f32 %v2655, %v2782
        %v2868 = vadd.f32 %v2656, %v2784
        %v2869 = vadd.f32 %v2657, %v2786
        %v2870 = vadd.f32 %v2658, %v2785
        %v2871 = vadd.f32 %v2659, %v2787
        %v2872 = vadd.f32 %v2660, %v2789
        %v2873 = vadd.f32 %v2661, %v2788
        %v2874 = vadd.f32 %v2662, %v2790
        %v2875 = vadd.f32 %v2663, %v2792
        %v2876 = vadd.f32 %v2664, %v2791
        %v2877 = vadd.f32 %v2665, %v2793
        %v2878 = vadd.f32 %v2666, %v2795
        %v2879 = vadd.f32 %v2667, %v2794
        %v2880 = vadd.f32 %v2668, %v2796
        %v2881 = vadd.f32 %v2669, %v2798
        %v2882 = vadd.f32 %v2670, %v2797
        %v2883 = vadd.f32 %v2671, %v2799
        %v2884 = vadd.f32 %v2672, %v2801
        %v2885 = vadd.f32 %v2673, %v2800
        %v2886 = vadd.f32 %v2674, %v2802
        %v2887 = vadd.f32 %v2675, %v2804
        %v2888 = vadd.f32 %v2676, %v2803
        %v2889 = vadd.f32 %v2677, %v2805
        %v2890 = vadd.f32 %v2678, %v2807
        %v2891 = vadd.f32 %v2679, %v2806
        %v2892 = vadd.f32 %v2680, %v2808
        %v2893 = vadd.f32 %v2681, %v2810
        %v2894 = vadd.f32 %v2682, %v2809
        %v2895 = vadd.f32 %v2683, %v2811
        %v2896 = vadd.f32 %v2684, %v2813
        %v2897 = vadd.f32 %v2685, %v2812
        %v2898 = vadd.f32 %v2686, %v2814
        %v2899 = vadd.f32 %v2687, %v2816
        %v2900 = vadd.f32 %v2688, %v2815
        %v2901 = vadd.f32 %v2689, %v2817
        %v2902 = vadd.f32 %v2690, %v2819
        %v2903 = vadd.f32 %v2691, %v2818
        %v2904 = vld [vmem:[%s577 + $0x8] sm:$0x80]
        %v2905 = vld [vmem:[%s577 + $0x20] sm:$0xff]
        %v2906 = vld [vmem:[%s577 + $0x38] sm:$0x1f]
        %v2907 = vld [vmem:[%s577 + $0x50] sm:$0x80]
        %v2908 = vld [vmem:[%s577 + $0x68] sm:$0xff]
        %v2909 = vld [vmem:[%s577 + $0x80] sm:$0x1f]
        %v2910 = vld [vmem:[%s577 + $0x98] sm:$0x80]
        %v2911 = vld [vmem:[%s577 + $0xb0] sm:$0xff]
        %v2912 = vld [vmem:[%s577 + $0xc8] sm:$0x1f]
        %v2913 = vld [vmem:[%s577 + $0xe0] sm:$0x80]
        %v2914 = vld [vmem:[%s577 + $0xf8] sm:$0xff]
        %v2915 = vld [vmem:[%s577 + $0x110] sm:$0x1f]
        %v2916 = vld [vmem:[%s577 + $0x128] sm:$0x80]
        %v2917 = vld [vmem:[%s577 + $0x140] sm:$0xff]
        %v2918 = vld [vmem:[%s577 + $0x158] sm:$0x1f]
        %v2919 = vld [vmem:[%s577 + $0x170] sm:$0x80]
        %v2920 = vld [vmem:[%s577 + $0x188] sm:$0xff]
        %v2921 = vld [vmem:[%s577 + $0x1a0] sm:$0x1f]
        %v2922 = vld [vmem:[%s577 + $0x1b8] sm:$0x80]
        %v2923 = vld [vmem:[%s577 + $0x1d0] sm:$0xff]
        %v2924 = vld [vmem:[%s577 + $0x1e8] sm:$0x1f]
        %v2925 = vld [vmem:[%s577 + $0x200] sm:$0x80]
        %v2926 = vld [vmem:[%s577 + $0x218] sm:$0xff]
        %v2927 = vld [vmem:[%s577 + $0x230] sm:$0x1f]
        %v2928 = vld [vmem:[%s577 + $0x248] sm:$0x80]
        %v2929 = vld [vmem:[%s577 + $0x260] sm:$0xff]
        %v2930 = vld [vmem:[%s577 + $0x278] sm:$0x1f]
        %v2931 = vld [vmem:[%s577 + $0x290] sm:$0x80]
        %v2932 = vld [vmem:[%s577 + $0x2a8] sm:$0xff]
        %v2933 = vld [vmem:[%s577 + $0x2c0] sm:$0x1f]
        %v2934 = vld [vmem:[%s577 + $0x2d8] sm:$0x80]
        %v2935 = vld [vmem:[%s577 + $0x2f0] sm:$0xff]
        %v2936 = vld [vmem:[%s577 + $0x308] sm:$0x1f]
        %v2937 = vld [vmem:[%s577 + $0x320] sm:$0x80]
        %v2938 = vld [vmem:[%s577 + $0x338] sm:$0xff]
        %v2939 = vld [vmem:[%s577 + $0x350] sm:$0x1f]
        %v2940 = vld [vmem:[%s577 + $0x368] sm:$0x80]
        %v2941 = vld [vmem:[%s577 + $0x380] sm:$0xff]
        %v2942 = vld [vmem:[%s577 + $0x398] sm:$0x1f]
        %v2943 = vld [vmem:[%s577 + $0x3b0] sm:$0x80]
        %v2944 = vld [vmem:[%s577 + $0x3c8] sm:$0xff]
        %v2945 = vld [vmem:[%s577 + $0x3e0] sm:$0x1f]
        %v2946 = vld [vmem:[%s1146 + $0x4] sm:$0x1]
        %v2947 = vperm.slane %v2946, 0
        %v2948 = vmul.f32 %v2904, %v2947
        %v2949 = vmul.f32 %v2905, %v2947
        %v2950 = vmul.f32 %v2906, %v2947
        %v2951 = vmul.f32 %v2907, %v2947
        %v2952 = vmul.f32 %v2908, %v2947
        %v2953 = vmul.f32 %v2909, %v2947
        %v2954 = vmul.f32 %v2910, %v2947
        %v2955 = vmul.f32 %v2911, %v2947
        %v2956 = vmul.f32 %v2912, %v2947
        %v2957 = vmul.f32 %v2913, %v2947
        %v2958 = vmul.f32 %v2914, %v2947
        %v2959 = vmul.f32 %v2915, %v2947
        %v2960 = vmul.f32 %v2916, %v2947
        %v2961 = vmul.f32 %v2917, %v2947
        %v2962 = vmul.f32 %v2918, %v2947
        %v2963 = vmul.f32 %v2919, %v2947
        %v2964 = vmul.f32 %v2920, %v2947
        %v2965 = vmul.f32 %v2921, %v2947
        %v2966 = vmul.f32 %v2922, %v2947
        %v2967 = vmul.f32 %v2923, %v2947
        %v2968 = vmul.f32 %v2924, %v2947
        %v2969 = vmul.f32 %v2925, %v2947
        %v2970 = vmul.f32 %v2926, %v2947
        %v2971 = vmul.f32 %v2927, %v2947
        %v2972 = vmul.f32 %v2928, %v2947
        %v2973 = vmul.f32 %v2929, %v2947
        %v2974 = vmul.f32 %v2930, %v2947
        %v2975 = vmul.f32 %v2931, %v2947
        %v2976 = vmul.f32 %v2932, %v2947
        %v2977 = vmul.f32 %v2933, %v2947
        %v2978 = vmul.f32 %v2934, %v2947
        %v2979 = vmul.f32 %v2935, %v2947
        %v2980 = vmul.f32 %v2936, %v2947
        %v2981 = vmul.f32 %v2937, %v2947
        %v2982 = vmul.f32 %v2938, %v2947
        %v2983 = vmul.f32 %v2939, %v2947
        %v2984 = vmul.f32 %v2940, %v2947
        %v2985 = vmul.f32 %v2941, %v2947
        %v2986 = vmul.f32 %v2942, %v2947
        %v2987 = vmul.f32 %v2943, %v2947
        %v2988 = vmul.f32 %v2944, %v2947
        %v2989 = vmul.f32 %v2945, %v2947
        %v2990 = vadd.f32 %v2862, %v2948
        %v2991 = vadd.f32 %v2863, %v2949
        %v2992 = vadd.f32 %v2864, %v2950
        %v2993 = vadd.f32 %v2865, %v2951
        %v2994 = vadd.f32 %v2866, %v2952
        %v2995 = vadd.f32 %v2867, %v2953
        %v2996 = vadd.f32 %v2868, %v2954
        %v2997 = vadd.f32 %v2869, %v2955
        %v2998 = vadd.f32 %v2870, %v2956
        %v2999 = vadd.f32 %v2871, %v2957
        %v3000 = vadd.f32 %v2872, %v2958
        %v3001 = vadd.f32 %v2873, %v2959
        %v3002 = vadd.f32 %v2874, %v2960
        %v3003 = vadd.f32 %v2875, %v2961
        %v3004 = vadd.f32 %v2876, %v2962
        %v3005 = vadd.f32 %v2877, %v2963
        %v3006 = vadd.f32 %v2878, %v2964
        %v3007 = vadd.f32 %v2879, %v2965
        %v3008 = vadd.f32 %v2880, %v2966
        %v3009 = vadd.f32 %v2881, %v2967
        %v3010 = vadd.f32 %v2882, %v2968
        %v3011 = vadd.f32 %v2883, %v2969
        %v3012 = vadd.f32 %v2884, %v2970
        %v3013 = vadd.f32 %v2885, %v2971
        %v3014 = vadd.f32 %v2886, %v2972
        %v3015 = vadd.f32 %v2887, %v2973
        %v3016 = vadd.f32 %v2888, %v2974
        %v3017 = vadd.f32 %v2889, %v2975
        %v3018 = vadd.f32 %v2890, %v2976
        %v3019 = vadd.f32 %v2891, %v2977
        %v3020 = vadd.f32 %v2892, %v2978
        %v3021 = vadd.f32 %v2893, %v2979
        %v3022 = vadd.f32 %v2894, %v2980
        %v3023 = vadd.f32 %v2895, %v2981
        %v3024 = vadd.f32 %v2896, %v2982
        %v3025 = vadd.f32 %v2897, %v2983
        %v3026 = vadd.f32 %v2898, %v2984
        %v3027 = vadd.f32 %v2899, %v2985
        %v3028 = vadd.f32 %v2900, %v2986
        %v3029 = vadd.f32 %v2901, %v2987
        %v3030 = vadd.f32 %v2902, %v2988
        %v3031 = vadd.f32 %v2903, %v2989
        %v3032 = vld [vmem:[%s577 + $0x38] sm:$0x3f]
        %v3033 = vld [vmem:[%s577 + $0x80] sm:$0x3f]
        %v3034 = vld [vmem:[%s577 + $0xc8] sm:$0x3f]
        %v3035 = vld [vmem:[%s577 + $0x110] sm:$0x3f]
        %v3036 = vld [vmem:[%s577 + $0x158] sm:$0x3f]
        %v3037 = vld [vmem:[%s577 + $0x1a0] sm:$0x3f]
        %v3038 = vld [vmem:[%s577 + $0x1e8] sm:$0x3f]
        %v3039 = vld [vmem:[%s577 + $0x230] sm:$0x3f]
        %v3040 = vld [vmem:[%s577 + $0x278] sm:$0x3f]
        %v3041 = vld [vmem:[%s577 + $0x2c0] sm:$0x3f]
        %v3042 = vld [vmem:[%s577 + $0x308] sm:$0x3f]
        %v3043 = vld [vmem:[%s577 + $0x350] sm:$0x3f]
        %v3044 = vld [vmem:[%s577 + $0x398] sm:$0x3f]
        %v3045 = vld [vmem:[%s577 + $0x3e0] sm:$0x3f]
        %v3046 = vld [vmem:[%s1146 + $0x5] sm:$0x1]
        %v3047 = vperm.slane %v3046, 0
        %v3048 = vmul.f32 %v2905, %v3047
        %v3049 = vmul.f32 %v3032, %v3047
        %v3050 = vmul.f32 %v2908, %v3047
        %v3051 = vmul.f32 %v3033, %v3047
        %v3052 = vmul.f32 %v2911, %v3047
        %v3053 = vmul.f32 %v3034, %v3047
        %v3054 = vmul.f32 %v2914, %v3047
        %v3055 = vmul.f32 %v3035, %v3047
        %v3056 = vmul.f32 %v2917, %v3047
        %v3057 = vmul.f32 %v3036, %v3047
        %v3058 = vmul.f32 %v2920, %v3047
        %v3059 = vmul.f32 %v3037, %v3047
        %v3060 = vmul.f32 %v2923, %v3047
        %v3061 = vmul.f32 %v3038, %v3047
        %v3062 = vmul.f32 %v2926, %v3047
        %v3063 = vmul.f32 %v3039, %v3047
        %v3064 = vmul.f32 %v2929, %v3047
        %v3065 = vmul.f32 %v3040, %v3047
        %v3066 = vmul.f32 %v2932, %v3047
        %v3067 = vmul.f32 %v3041, %v3047
        %v3068 = vmul.f32 %v2935, %v3047
        %v3069 = vmul.f32 %v3042, %v3047
        %v3070 = vmul.f32 %v2938, %v3047
        %v3071 = vmul.f32 %v3043, %v3047
        %v3072 = vmul.f32 %v2941, %v3047
        %v3073 = vmul.f32 %v3044, %v3047
        %v3074 = vmul.f32 %v2944, %v3047
        %v3075 = vmul.f32 %v3045, %v3047
        %v3104 = vrot.slane %v3048, 1
        %v3105 = vrot.slane %v3049, 1
        %v3106 = vsel %vm764, %v3104, %v3105
        %v3107 = vrot.slane %v3050, 1
        %v3108 = vrot.slane %v3051, 1
        %v3109 = vsel %vm764, %v3107, %v3108
        %v3110 = vrot.slane %v3052, 1
        %v3111 = vrot.slane %v3053, 1
        %v3112 = vsel %vm764, %v3110, %v3111
        %v3113 = vrot.slane %v3054, 1
        %v3114 = vrot.slane %v3055, 1
        %v3115 = vsel %vm764, %v3113, %v3114
        %v3116 = vrot.slane %v3056, 1
        %v3117 = vrot.slane %v3057, 1
        %v3118 = vsel %vm764, %v3116, %v3117
        %v3119 = vrot.slane %v3058, 1
        %v3120 = vrot.slane %v3059, 1
        %v3121 = vsel %vm764, %v3119, %v3120
        %v3122 = vrot.slane %v3060, 1
        %v3123 = vrot.slane %v3061, 1
        %v3124 = vsel %vm764, %v3122, %v3123
        %v3125 = vrot.slane %v3062, 1
        %v3126 = vrot.slane %v3063, 1
        %v3127 = vsel %vm764, %v3125, %v3126
        %v3128 = vrot.slane %v3064, 1
        %v3129 = vrot.slane %v3065, 1
        %v3130 = vsel %vm764, %v3128, %v3129
        %v3131 = vrot.slane %v3066, 1
        %v3132 = vrot.slane %v3067, 1
        %v3133 = vsel %vm764, %v3131, %v3132
        %v3134 = vrot.slane %v3068, 1
        %v3135 = vrot.slane %v3069, 1
        %v3136 = vsel %vm764, %v3134, %v3135
        %v3137 = vrot.slane %v3070, 1
        %v3138 = vrot.slane %v3071, 1
        %v3139 = vsel %vm764, %v3137, %v3138
        %v3140 = vrot.slane %v3072, 1
        %v3141 = vrot.slane %v3073, 1
        %v3142 = vsel %vm764, %v3140, %v3141
        %v3143 = vrot.slane %v3074, 1
        %v3144 = vrot.slane %v3075, 1
        %v3145 = vsel %vm764, %v3143, %v3144
        %v3188 = vadd.f32 %v2990, %v3104
        %v3189 = vadd.f32 %v2991, %v3106
        %v3190 = vadd.f32 %v2992, %v3105
        %v3191 = vadd.f32 %v2993, %v3107
        %v3192 = vadd.f32 %v2994, %v3109
        %v3193 = vadd.f32 %v2995, %v3108
        %v3194 = vadd.f32 %v2996, %v3110
        %v3195 = vadd.f32 %v2997, %v3112
        %v3196 = vadd.f32 %v2998, %v3111
        %v3197 = vadd.f32 %v2999, %v3113
        %v3198 = vadd.f32 %v3000, %v3115
        %v3199 = vadd.f32 %v3001, %v3114
        %v3200 = vadd.f32 %v3002, %v3116
        %v3201 = vadd.f32 %v3003, %v3118
        %v3202 = vadd.f32 %v3004, %v3117
        %v3203 = vadd.f32 %v3005, %v3119
        %v3204 = vadd.f32 %v3006, %v3121
        %v3205 = vadd.f32 %v3007, %v3120
        %v3206 = vadd.f32 %v3008, %v3122
        %v3207 = vadd.f32 %v3009, %v3124
        %v3208 = vadd.f32 %v3010, %v3123
        %v3209 = vadd.f32 %v3011, %v3125
        %v3210 = vadd.f32 %v3012, %v3127
        %v3211 = vadd.f32 %v3013, %v3126
        %v3212 = vadd.f32 %v3014, %v3128
        %v3213 = vadd.f32 %v3015, %v3130
        %v3214 = vadd.f32 %v3016, %v3129
        %v3215 = vadd.f32 %v3017, %v3131
        %v3216 = vadd.f32 %v3018, %v3133
        %v3217 = vadd.f32 %v3019, %v3132
        %v3218 = vadd.f32 %v3020, %v3134
        %v3219 = vadd.f32 %v3021, %v3136
        %v3220 = vadd.f32 %v3022, %v3135
        %v3221 = vadd.f32 %v3023, %v3137
        %v3222 = vadd.f32 %v3024, %v3139
        %v3223 = vadd.f32 %v3025, %v3138
        %v3224 = vadd.f32 %v3026, %v3140
        %v3225 = vadd.f32 %v3027, %v3142
        %v3226 = vadd.f32 %v3028, %v3141
        %v3227 = vadd.f32 %v3029, %v3143
        %v3228 = vadd.f32 %v3030, %v3145
        %v3229 = vadd.f32 %v3031, %v3144
        %v3230 = vld [vmem:[%s577 + $0x20] sm:$0xfe]
        %v3231 = vld [vmem:[%s577 + $0x38] sm:$0x7f]
        %v3232 = vld [vmem:[%s577 + $0x68] sm:$0xfe]
        %v3233 = vld [vmem:[%s577 + $0x80] sm:$0x7f]
        %v3234 = vld [vmem:[%s577 + $0xb0] sm:$0xfe]
        %v3235 = vld [vmem:[%s577 + $0xc8] sm:$0x7f]
        %v3236 = vld [vmem:[%s577 + $0xf8] sm:$0xfe]
        %v3237 = vld [vmem:[%s577 + $0x110] sm:$0x7f]
        %v3238 = vld [vmem:[%s577 + $0x140] sm:$0xfe]
        %v3239 = vld [vmem:[%s577 + $0x158] sm:$0x7f]
        %v3240 = vld [vmem:[%s577 + $0x188] sm:$0xfe]
        %v3241 = vld [vmem:[%s577 + $0x1a0] sm:$0x7f]
        %v3242 = vld [vmem:[%s577 + $0x1d0] sm:$0xfe]
        %v3243 = vld [vmem:[%s577 + $0x1e8] sm:$0x7f]
        %v3244 = vld [vmem:[%s577 + $0x218] sm:$0xfe]
        %v3245 = vld [vmem:[%s577 + $0x230] sm:$0x7f]
        %v3246 = vld [vmem:[%s577 + $0x260] sm:$0xfe]
        %v3247 = vld [vmem:[%s577 + $0x278] sm:$0x7f]
        %v3248 = vld [vmem:[%s577 + $0x2a8] sm:$0xfe]
        %v3249 = vld [vmem:[%s577 + $0x2c0] sm:$0x7f]
        %v3250 = vld [vmem:[%s577 + $0x2f0] sm:$0xfe]
        %v3251 = vld [vmem:[%s577 + $0x308] sm:$0x7f]
        %v3252 = vld [vmem:[%s577 + $0x338] sm:$0xfe]
        %v3253 = vld [vmem:[%s577 + $0x350] sm:$0x7f]
        %v3254 = vld [vmem:[%s577 + $0x380] sm:$0xfe]
        %v3255 = vld [vmem:[%s577 + $0x398] sm:$0x7f]
        %v3256 = vld [vmem:[%s577 + $0x3c8] sm:$0xfe]
        %v3257 = vld [vmem:[%s577 + $0x3e0] sm:$0x7f]
        %v3258 = vld [vmem:[%s1146 + $0x6] sm:$0x1]
        %v3259 = vperm.slane %v3258, 0
        %v3260 = vmul.f32 %v3230, %v3259
        %v3261 = vmul.f32 %v3231, %v3259
        %v3262 = vmul.f32 %v3232, %v3259
        %v3263 = vmul.f32 %v3233, %v3259
        %v3264 = vmul.f32 %v3234, %v3259
        %v3265 = vmul.f32 %v3235, %v3259
        %v3266 = vmul.f32 %v3236, %v3259
        %v3267 = vmul.f32 %v3237, %v3259
        %v3268 = vmul.f32 %v3238, %v3259
        %v3269 = vmul.f32 %v3239, %v3259
        %v3270 = vmul.f32 %v3240, %v3259
        %v3271 = vmul.f32 %v3241, %v3259
        %v3272 = vmul.f32 %v3242, %v3259
        %v3273 = vmul.f32 %v3243, %v3259
        %v3274 = vmul.f32 %v3244, %v3259
        %v3275 = vmul.f32 %v3245, %v3259
        %v3276 = vmul.f32 %v3246, %v3259
        %v3277 = vmul.f32 %v3247, %v3259
        %v3278 = vmul.f32 %v3248, %v3259
        %v3279 = vmul.f32 %v3249, %v3259
        %v3280 = vmul.f32 %v3250, %v3259
        %v3281 = vmul.f32 %v3251, %v3259
        %v3282 = vmul.f32 %v3252, %v3259
        %v3283 = vmul.f32 %v3253, %v3259
        %v3284 = vmul.f32 %v3254, %v3259
        %v3285 = vmul.f32 %v3255, %v3259
        %v3286 = vmul.f32 %v3256, %v3259
        %v3287 = vmul.f32 %v3257, %v3259
        %v3316 = vrot.slane %v3260, 2
        %v3317 = vrot.slane %v3261, 2
        %v3318 = vsel %vm977, %v3316, %v3317
        %v3319 = vrot.slane %v3262, 2
        %v3320 = vrot.slane %v3263, 2
        %v3321 = vsel %vm977, %v3319, %v3320
        %v3322 = vrot.slane %v3264, 2
        %v3323 = vrot.slane %v3265, 2
        %v3324 = vsel %vm977, %v3322, %v3323
        %v3325 = vrot.slane %v3266, 2
        %v3326 = vrot.slane %v3267, 2
        %v3327 = vsel %vm977, %v3325, %v3326
        %v3328 = vrot.slane %v3268, 2
        %v3329 = vrot.slane %v3269, 2
        %v3330 = vsel %vm977, %v3328, %v3329
        %v3331 = vrot.slane %v3270, 2
        %v3332 = vrot.slane %v3271, 2
        %v3333 = vsel %vm977, %v3331, %v3332
        %v3334 = vrot.slane %v3272, 2
        %v3335 = vrot.slane %v3273, 2
        %v3336 = vsel %vm977, %v3334, %v3335
        %v3337 = vrot.slane %v3274, 2
        %v3338 = vrot.slane %v3275, 2
        %v3339 = vsel %vm977, %v3337, %v3338
        %v3340 = vrot.slane %v3276, 2
        %v3341 = vrot.slane %v3277, 2
        %v3342 = vsel %vm977, %v3340, %v3341
        %v3343 = vrot.slane %v3278, 2
        %v3344 = vrot.slane %v3279, 2
        %v3345 = vsel %vm977, %v3343, %v3344
        %v3346 = vrot.slane %v3280, 2
        %v3347 = vrot.slane %v3281, 2
        %v3348 = vsel %vm977, %v3346, %v3347
        %v3349 = vrot.slane %v3282, 2
        %v3350 = vrot.slane %v3283, 2
        %v3351 = vsel %vm977, %v3349, %v3350
        %v3352 = vrot.slane %v3284, 2
        %v3353 = vrot.slane %v3285, 2
        %v3354 = vsel %vm977, %v3352, %v3353
        %v3355 = vrot.slane %v3286, 2
        %v3356 = vrot.slane %v3287, 2
        %v3357 = vsel %vm977, %v3355, %v3356
        %v3400 = vadd.f32 %v3188, %v3316
        %v3401 = vadd.f32 %v3189, %v3318
        %v3402 = vadd.f32 %v3190, %v3317
        %v3403 = vadd.f32 %v3191, %v3319
        %v3404 = vadd.f32 %v3192, %v3321
        %v3405 = vadd.f32 %v3193, %v3320
        %v3406 = vadd.f32 %v3194, %v3322
        %v3407 = vadd.f32 %v3195, %v3324
        %v3408 = vadd.f32 %v3196, %v3323
        %v3409 = vadd.f32 %v3197, %v3325
        %v3410 = vadd.f32 %v3198, %v3327
        %v3411 = vadd.f32 %v3199, %v3326
        %v3412 = vadd.f32 %v3200, %v3328
        %v3413 = vadd.f32 %v3201, %v3330
        %v3414 = vadd.f32 %v3202, %v3329
        %v3415 = vadd.f32 %v3203, %v3331
        %v3416 = vadd.f32 %v3204, %v3333
        %v3417 = vadd.f32 %v3205, %v3332
        %v3418 = vadd.f32 %v3206, %v3334
        %v3419 = vadd.f32 %v3207, %v3336
        %v3420 = vadd.f32 %v3208, %v3335
        %v3421 = vadd.f32 %v3209, %v3337
        %v3422 = vadd.f32 %v3210, %v3339
        %v3423 = vadd.f32 %v3211, %v3338
        %v3424 = vadd.f32 %v3212, %v3340
        %v3425 = vadd.f32 %v3213, %v3342
        %v3426 = vadd.f32 %v3214, %v3341
        %v3427 = vadd.f32 %v3215, %v3343
        %v3428 = vadd.f32 %v3216, %v3345
        %v3429 = vadd.f32 %v3217, %v3344
        %v3430 = vadd.f32 %v3218, %v3346
        %v3431 = vadd.f32 %v3219, %v3348
        %v3432 = vadd.f32 %v3220, %v3347
        %v3433 = vadd.f32 %v3221, %v3349
        %v3434 = vadd.f32 %v3222, %v3351
        %v3435 = vadd.f32 %v3223, %v3350
        %v3436 = vadd.f32 %v3224, %v3352
        %v3437 = vadd.f32 %v3225, %v3354
        %v3438 = vadd.f32 %v3226, %v3353
        %v3439 = vadd.f32 %v3227, %v3355
        %v3440 = vadd.f32 %v3228, %v3357
        %v3441 = vadd.f32 %v3229, %v3356
        %v3442 = vld [vmem:[%s1643 + $0x8] sm:$0x80]
        %v3443 = vld [vmem:[%s1643 + $0x20] sm:$0xff]
        %v3444 = vld [vmem:[%s1643 + $0x38] sm:$0x1f]
        %v3445 = vld [vmem:[%s1643 + $0x50] sm:$0x80]
        %v3446 = vld [vmem:[%s1643 + $0x68] sm:$0xff]
        %v3447 = vld [vmem:[%s1643 + $0x80] sm:$0x1f]
        %v3448 = vld [vmem:[%s1643 + $0x98] sm:$0x80]
        %v3449 = vld [vmem:[%s1643 + $0xb0] sm:$0xff]
        %v3450 = vld [vmem:[%s1643 + $0xc8] sm:$0x1f]
        %v3451 = vld [vmem:[%s1643 + $0xe0] sm:$0x80]
        %v3452 = vld [vmem:[%s1643 + $0xf8] sm:$0xff]
        %v3453 = vld [vmem:[%s1643 + $0x110] sm:$0x1f]
        %v3454 = vld [vmem:[%s1643 + $0x128] sm:$0x80]
        %v3455 = vld [vmem:[%s1643 + $0x140] sm:$0xff]
        %v3456 = vld [vmem:[%s1643 + $0x158] sm:$0x1f]
        %v3457 = vld [vmem:[%s1643 + $0x170] sm:$0x80]
        %v3458 = vld [vmem:[%s1643 + $0x188] sm:$0xff]
        %v3459 = vld [vmem:[%s1643 + $0x1a0] sm:$0x1f]
        %v3460 = vld [vmem:[%s1643 + $0x1b8] sm:$0x80]
        %v3461 = vld [vmem:[%s1643 + $0x1d0] sm:$0xff]
        %v3462 = vld [vmem:[%s1643 + $0x1e8] sm:$0x1f]
        %v3463 = vld [vmem:[%s1643 + $0x200] sm:$0x80]
        %v3464 = vld [vmem:[%s1643 + $0x218] sm:$0xff]
        %v3465 = vld [vmem:[%s1643 + $0x230] sm:$0x1f]
        %v3466 = vld [vmem:[%s1643 + $0x248] sm:$0x80]
        %v3467 = vld [vmem:[%s1643 + $0x260] sm:$0xff]
        %v3468 = vld [vmem:[%s1643 + $0x278] sm:$0x1f]
        %v3469 = vld [vmem:[%s1643 + $0x290] sm:$0x80]
        %v3470 = vld [vmem:[%s1643 + $0x2a8] sm:$0xff]
        %v3471 = vld [vmem:[%s1643 + $0x2c0] sm:$0x1f]
        %v3472 = vld [vmem:[%s1643 + $0x2d8] sm:$0x80]
        %v3473 = vld [vmem:[%s1643 + $0x2f0] sm:$0xff]
        %v3474 = vld [vmem:[%s1643 + $0x308] sm:$0x1f]
        %v3475 = vld [vmem:[%s1643 + $0x320] sm:$0x80]
        %v3476 = vld [vmem:[%s1643 + $0x338] sm:$0xff]
        %v3477 = vld [vmem:[%s1643 + $0x350] sm:$0x1f]
        %v3478 = vld [vmem:[%s1643 + $0x368] sm:$0x80]
        %v3479 = vld [vmem:[%s1643 + $0x380] sm:$0xff]
        %v3480 = vld [vmem:[%s1643 + $0x398] sm:$0x1f]
        %v3481 = vld [vmem:[%s1643 + $0x3b0] sm:$0x80]
        %v3482 = vld [vmem:[%s1643 + $0x3c8] sm:$0xff]
        %v3483 = vld [vmem:[%s1643 + $0x3e0] sm:$0x1f]
        %v3484 = vld [vmem:[%s1686 + $0x4] sm:$0x1]
        %v3485 = vperm.slane %v3484, 0
        %v3486 = vmul.f32 %v3442, %v3485
        %v3487 = vmul.f32 %v3443, %v3485
        %v3488 = vmul.f32 %v3444, %v3485
        %v3489 = vmul.f32 %v3445, %v3485
        %v3490 = vmul.f32 %v3446, %v3485
        %v3491 = vmul.f32 %v3447, %v3485
        %v3492 = vmul.f32 %v3448, %v3485
        %v3493 = vmul.f32 %v3449, %v3485
        %v3494 = vmul.f32 %v3450, %v3485
        %v3495 = vmul.f32 %v3451, %v3485
        %v3496 = vmul.f32 %v3452, %v3485
        %v3497 = vmul.f32 %v3453, %v3485
        %v3498 = vmul.f32 %v3454, %v3485
        %v3499 = vmul.f32 %v3455, %v3485
        %v3500 = vmul.f32 %v3456, %v3485
        %v3501 = vmul.f32 %v3457, %v3485
        %v3502 = vmul.f32 %v3458, %v3485
        %v3503 = vmul.f32 %v3459, %v3485
        %v3504 = vmul.f32 %v3460, %v3485
        %v3505 = vmul.f32 %v3461, %v3485
        %v3506 = vmul.f32 %v3462, %v3485
        %v3507 = vmul.f32 %v3463, %v3485
        %v3508 = vmul.f32 %v3464, %v3485
        %v3509 = vmul.f32 %v3465, %v3485
        %v3510 = vmul.f32 %v3466, %v3485
        %v3511 = vmul.f32 %v3467, %v3485
        %v3512 = vmul.f32 %v3468, %v3485
        %v3513 = vmul.f32 %v3469, %v3485
        %v3514 = vmul.f32 %v3470, %v3485
        %v3515 = vmul.f32 %v3471, %v3485
        %v3516 = vmul.f32 %v3472, %v3485
        %v3517 = vmul.f32 %v3473, %v3485
        %v3518 = vmul.f32 %v3474, %v3485
        %v3519 = vmul.f32 %v3475, %v3485
        %v3520 = vmul.f32 %v3476, %v3485
        %v3521 = vmul.f32 %v3477, %v3485
        %v3522 = vmul.f32 %v3478, %v3485
        %v3523 = vmul.f32 %v3479, %v3485
        %v3524 = vmul.f32 %v3480, %v3485
        %v3525 = vmul.f32 %v3481, %v3485
        %v3526 = vmul.f32 %v3482, %v3485
        %v3527 = vmul.f32 %v3483, %v3485
        %v3528 = vadd.f32 %v3400, %v3486
        %v3529 = vadd.f32 %v3401, %v3487
        %v3530 = vadd.f32 %v3402, %v3488
        %v3531 = vadd.f32 %v3403, %v3489
        %v3532 = vadd.f32 %v3404, %v3490
        %v3533 = vadd.f32 %v3405, %v3491
        %v3534 = vadd.f32 %v3406, %v3492
        %v3535 = vadd.f32 %v3407, %v3493
        %v3536 = vadd.f32 %v3408, %v3494
        %v3537 = vadd.f32 %v3409, %v3495
        %v3538 = vadd.f32 %v3410, %v3496
        %v3539 = vadd.f32 %v3411, %v3497
        %v3540 = vadd.f32 %v3412, %v3498
        %v3541 = vadd.f32 %v3413, %v3499
        %v3542 = vadd.f32 %v3414, %v3500
        %v3543 = vadd.f32 %v3415, %v3501
        %v3544 = vadd.f32 %v3416, %v3502
        %v3545 = vadd.f32 %v3417, %v3503
        %v3546 = vadd.f32 %v3418, %v3504
        %v3547 = vadd.f32 %v3419, %v3505
        %v3548 = vadd.f32 %v3420, %v3506
        %v3549 = vadd.f32 %v3421, %v3507
        %v3550 = vadd.f32 %v3422, %v3508
        %v3551 = vadd.f32 %v3423, %v3509
        %v3552 = vadd.f32 %v3424, %v3510
        %v3553 = vadd.f32 %v3425, %v3511
        %v3554 = vadd.f32 %v3426, %v3512
        %v3555 = vadd.f32 %v3427, %v3513
        %v3556 = vadd.f32 %v3428, %v3514
        %v3557 = vadd.f32 %v3429, %v3515
        %v3558 = vadd.f32 %v3430, %v3516
        %v3559 = vadd.f32 %v3431, %v3517
        %v3560 = vadd.f32 %v3432, %v3518
        %v3561 = vadd.f32 %v3433, %v3519
        %v3562 = vadd.f32 %v3434, %v3520
        %v3563 = vadd.f32 %v3435, %v3521
        %v3564 = vadd.f32 %v3436, %v3522
        %v3565 = vadd.f32 %v3437, %v3523
        %v3566 = vadd.f32 %v3438, %v3524
        %v3567 = vadd.f32 %v3439, %v3525
        %v3568 = vadd.f32 %v3440, %v3526
        %v3569 = vadd.f32 %v3441, %v3527
        %v3570 = vld [vmem:[%s1643 + $0x38] sm:$0x3f]
        %v3571 = vld [vmem:[%s1643 + $0x80] sm:$0x3f]
        %v3572 = vld [vmem:[%s1643 + $0xc8] sm:$0x3f]
        %v3573 = vld [vmem:[%s1643 + $0x110] sm:$0x3f]
        %v3574 = vld [vmem:[%s1643 + $0x158] sm:$0x3f]
        %v3575 = vld [vmem:[%s1643 + $0x1a0] sm:$0x3f]
        %v3576 = vld [vmem:[%s1643 + $0x1e8] sm:$0x3f]
        %v3577 = vld [vmem:[%s1643 + $0x230] sm:$0x3f]
        %v3578 = vld [vmem:[%s1643 + $0x278] sm:$0x3f]
        %v3579 = vld [vmem:[%s1643 + $0x2c0] sm:$0x3f]
        %v3580 = vld [vmem:[%s1643 + $0x308] sm:$0x3f]
        %v3581 = vld [vmem:[%s1643 + $0x350] sm:$0x3f]
        %v3582 = vld [vmem:[%s1643 + $0x398] sm:$0x3f]
        %v3583 = vld [vmem:[%s1643 + $0x3e0] sm:$0x3f]
        %v3584 = vld [vmem:[%s1686 + $0x5] sm:$0x1]
        %v3585 = vperm.slane %v3584, 0
        %v3586 = vmul.f32 %v3443, %v3585
        %v3587 = vmul.f32 %v3570, %v3585
        %v3588 = vmul.f32 %v3446, %v3585
        %v3589 = vmul.f32 %v3571, %v3585
        %v3590 = vmul.f32 %v3449, %v3585
        %v3591 = vmul.f32 %v3572, %v3585
        %v3592 = vmul.f32 %v3452, %v3585
        %v3593 = vmul.f32 %v3573, %v3585
        %v3594 = vmul.f32 %v3455, %v3585
        %v3595 = vmul.f32 %v3574, %v3585
        %v3596 = vmul.f32 %v3458, %v3585
        %v3597 = vmul.f32 %v3575, %v3585
        %v3598 = vmul.f32 %v3461, %v3585
        %v3599 = vmul.f32 %v3576, %v3585
        %v3600 = vmul.f32 %v3464, %v3585
        %v3601 = vmul.f32 %v3577, %v3585
        %v3602 = vmul.f32 %v3467, %v3585
        %v3603 = vmul.f32 %v3578, %v3585
        %v3604 = vmul.f32 %v3470, %v3585
        %v3605 = vmul.f32 %v3579, %v3585
        %v3606 = vmul.f32 %v3473, %v3585
        %v3607 = vmul.f32 %v3580, %v3585
        %v3608 = vmul.f32 %v3476, %v3585
        %v3609 = vmul.f32 %v3581, %v3585
        %v3610 = vmul.f32 %v3479, %v3585
        %v3611 = vmul.f32 %v3582, %v3585
        %v3612 = vmul.f32 %v3482, %v3585
        %v3613 = vmul.f32 %v3583, %v3585
        %v3642 = vrot.slane %v3586, 1
        %v3643 = vrot.slane %v3587, 1
        %v3644 = vsel %vm764, %v3642, %v3643
        %v3645 = vrot.slane %v3588, 1
        %v3646 = vrot.slane %v3589, 1
        %v3647 = vsel %vm764, %v3645, %v3646
        %v3648 = vrot.slane %v3590, 1
        %v3649 = vrot.slane %v3591, 1
        %v3650 = vsel %vm764, %v3648, %v3649
        %v3651 = vrot.slane %v3592, 1
        %v3652 = vrot.slane %v3593, 1
        %v3653 = vsel %vm764, %v3651, %v3652
        %v3654 = vrot.slane %v3594, 1
        %v3655 = vrot.slane %v3595, 1
        %v3656 = vsel %vm764, %v3654, %v3655
        %v3657 = vrot.slane %v3596, 1
        %v3658 = vrot.slane %v3597, 1
        %v3659 = vsel %vm764, %v3657, %v3658
        %v3660 = vrot.slane %v3598, 1
        %v3661 = vrot.slane %v3599, 1
        %v3662 = vsel %vm764, %v3660, %v3661
        %v3663 = vrot.slane %v3600, 1
        %v3664 = vrot.slane %v3601, 1
        %v3665 = vsel %vm764, %v3663, %v3664
        %v3666 = vrot.slane %v3602, 1
        %v3667 = vrot.slane %v3603, 1
        %v3668 = vsel %vm764, %v3666, %v3667
        %v3669 = vrot.slane %v3604, 1
        %v3670 = vrot.slane %v3605, 1
        %v3671 = vsel %vm764, %v3669, %v3670
        %v3672 = vrot.slane %v3606, 1
        %v3673 = vrot.slane %v3607, 1
        %v3674 = vsel %vm764, %v3672, %v3673
        %v3675 = vrot.slane %v3608, 1
        %v3676 = vrot.slane %v3609, 1
        %v3677 = vsel %vm764, %v3675, %v3676
        %v3678 = vrot.slane %v3610, 1
        %v3679 = vrot.slane %v3611, 1
        %v3680 = vsel %vm764, %v3678, %v3679
        %v3681 = vrot.slane %v3612, 1
        %v3682 = vrot.slane %v3613, 1
        %v3683 = vsel %vm764, %v3681, %v3682
        %v3726 = vadd.f32 %v3528, %v3642
        %v3727 = vadd.f32 %v3529, %v3644
        %v3728 = vadd.f32 %v3530, %v3643
        %v3729 = vadd.f32 %v3531, %v3645
        %v3730 = vadd.f32 %v3532, %v3647
        %v3731 = vadd.f32 %v3533, %v3646
        %v3732 = vadd.f32 %v3534, %v3648
        %v3733 = vadd.f32 %v3535, %v3650
        %v3734 = vadd.f32 %v3536, %v3649
        %v3735 = vadd.f32 %v3537, %v3651
        %v3736 = vadd.f32 %v3538, %v3653
        %v3737 = vadd.f32 %v3539, %v3652
        %v3738 = vadd.f32 %v3540, %v3654
        %v3739 = vadd.f32 %v3541, %v3656
        %v3740 = vadd.f32 %v3542, %v3655
        %v3741 = vadd.f32 %v3543, %v3657
        %v3742 = vadd.f32 %v3544, %v3659
        %v3743 = vadd.f32 %v3545, %v3658
        %v3744 = vadd.f32 %v3546, %v3660
        %v3745 = vadd.f32 %v3547, %v3662
        %v3746 = vadd.f32 %v3548, %v3661
        %v3747 = vadd.f32 %v3549, %v3663
        %v3748 = vadd.f32 %v3550, %v3665
        %v3749 = vadd.f32 %v3551, %v3664
        %v3750 = vadd.f32 %v3552, %v3666
        %v3751 = vadd.f32 %v3553, %v3668
        %v3752 = vadd.f32 %v3554, %v3667
        %v3753 = vadd.f32 %v3555, %v3669
        %v3754 = vadd.f32 %v3556, %v3671
        %v3755 = vadd.f32 %v3557, %v3670
        %v3756 = vadd.f32 %v3558, %v3672
        %v3757 = vadd.f32 %v3559, %v3674
        %v3758 = vadd.f32 %v3560, %v3673
        %v3759 = vadd.f32 %v3561, %v3675
        %v3760 = vadd.f32 %v3562, %v3677
        %v3761 = vadd.f32 %v3563, %v3676
        %v3762 = vadd.f32 %v3564, %v3678
        %v3763 = vadd.f32 %v3565, %v3680
        %v3764 = vadd.f32 %v3566, %v3679
        %v3765 = vadd.f32 %v3567, %v3681
        %v3766 = vadd.f32 %v3568, %v3683
        %v3767 = vadd.f32 %v3569, %v3682
        %v3768 = vld [vmem:[%s1643 + $0x20] sm:$0xfe]
        %v3769 = vld [vmem:[%s1643 + $0x38] sm:$0x7f]
        %v3770 = vld [vmem:[%s1643 + $0x68] sm:$0xfe]
        %v3771 = vld [vmem:[%s1643 + $0x80] sm:$0x7f]
        %v3772 = vld [vmem:[%s1643 + $0xb0] sm:$0xfe]
        %v3773 = vld [vmem:[%s1643 + $0xc8] sm:$0x7f]
        %v3774 = vld [vmem:[%s1643 + $0xf8] sm:$0xfe]
        %v3775 = vld [vmem:[%s1643 + $0x110] sm:$0x7f]
        %v3776 = vld [vmem:[%s1643 + $0x140] sm:$0xfe]
        %v3777 = vld [vmem:[%s1643 + $0x158] sm:$0x7f]
        %v3778 = vld [vmem:[%s1643 + $0x188] sm:$0xfe]
        %v3779 = vld [vmem:[%s1643 + $0x1a0] sm:$0x7f]
        %v3780 = vld [vmem:[%s1643 + $0x1d0] sm:$0xfe]
        %v3781 = vld [vmem:[%s1643 + $0x1e8] sm:$0x7f]
        %v3782 = vld [vmem:[%s1643 + $0x218] sm:$0xfe]
        %v3783 = vld [vmem:[%s1643 + $0x230] sm:$0x7f]
        %v3784 = vld [vmem:[%s1643 + $0x260] sm:$0xfe]
        %v3785 = vld [vmem:[%s1643 + $0x278] sm:$0x7f]
        %v3786 = vld [vmem:[%s1643 + $0x2a8] sm:$0xfe]
        %v3787 = vld [vmem:[%s1643 + $0x2c0] sm:$0x7f]
        %v3788 = vld [vmem:[%s1643 + $0x2f0] sm:$0xfe]
        %v3789 = vld [vmem:[%s1643 + $0x308] sm:$0x7f]
        %v3790 = vld [vmem:[%s1643 + $0x338] sm:$0xfe]
        %v3791 = vld [vmem:[%s1643 + $0x350] sm:$0x7f]
        %v3792 = vld [vmem:[%s1643 + $0x380] sm:$0xfe]
        %v3793 = vld [vmem:[%s1643 + $0x398] sm:$0x7f]
        %v3794 = vld [vmem:[%s1643 + $0x3c8] sm:$0xfe]
        %v3795 = vld [vmem:[%s1643 + $0x3e0] sm:$0x7f]
        %v3796 = vld [vmem:[%s1686 + $0x6] sm:$0x1]
        %v3797 = vperm.slane %v3796, 0
        %v3798 = vmul.f32 %v3768, %v3797
        %v3799 = vmul.f32 %v3769, %v3797
        %v3800 = vmul.f32 %v3770, %v3797
        %v3801 = vmul.f32 %v3771, %v3797
        %v3802 = vmul.f32 %v3772, %v3797
        %v3803 = vmul.f32 %v3773, %v3797
        %v3804 = vmul.f32 %v3774, %v3797
        %v3805 = vmul.f32 %v3775, %v3797
        %v3806 = vmul.f32 %v3776, %v3797
        %v3807 = vmul.f32 %v3777, %v3797
        %v3808 = vmul.f32 %v3778, %v3797
        %v3809 = vmul.f32 %v3779, %v3797
        %v3810 = vmul.f32 %v3780, %v3797
        %v3811 = vmul.f32 %v3781, %v3797
        %v3812 = vmul.f32 %v3782, %v3797
        %v3813 = vmul.f32 %v3783, %v3797
        %v3814 = vmul.f32 %v3784, %v3797
        %v3815 = vmul.f32 %v3785, %v3797
        %v3816 = vmul.f32 %v3786, %v3797
        %v3817 = vmul.f32 %v3787, %v3797
        %v3818 = vmul.f32 %v3788, %v3797
        %v3819 = vmul.f32 %v3789, %v3797
        %v3820 = vmul.f32 %v3790, %v3797
        %v3821 = vmul.f32 %v3791, %v3797
        %v3822 = vmul.f32 %v3792, %v3797
        %v3823 = vmul.f32 %v3793, %v3797
        %v3824 = vmul.f32 %v3794, %v3797
        %v3825 = vmul.f32 %v3795, %v3797
        %v3854 = vrot.slane %v3798, 2
        %v3855 = vrot.slane %v3799, 2
        %v3856 = vsel %vm977, %v3854, %v3855
        %v3857 = vrot.slane %v3800, 2
        %v3858 = vrot.slane %v3801, 2
        %v3859 = vsel %vm977, %v3857, %v3858
        %v3860 = vrot.slane %v3802, 2
        %v3861 = vrot.slane %v3803, 2
        %v3862 = vsel %vm977, %v3860, %v3861
        %v3863 = vrot.slane %v3804, 2
        %v3864 = vrot.slane %v3805, 2
        %v3865 = vsel %vm977, %v3863, %v3864
        %v3866 = vrot.slane %v3806, 2
        %v3867 = vrot.slane %v3807, 2
        %v3868 = vsel %vm977, %v3866, %v3867
        %v3869 = vrot.slane %v3808, 2
        %v3870 = vrot.slane %v3809, 2
        %v3871 = vsel %vm977, %v3869, %v3870
        %v3872 = vrot.slane %v3810, 2
        %v3873 = vrot.slane %v3811, 2
        %v3874 = vsel %vm977, %v3872, %v3873
        %v3875 = vrot.slane %v3812, 2
        %v3876 = vrot.slane %v3813, 2
        %v3877 = vsel %vm977, %v3875, %v3876
        %v3878 = vrot.slane %v3814, 2
        %v3879 = vrot.slane %v3815, 2
        %v3880 = vsel %vm977, %v3878, %v3879
        %v3881 = vrot.slane %v3816, 2
        %v3882 = vrot.slane %v3817, 2
        %v3883 = vsel %vm977, %v3881, %v3882
        %v3884 = vrot.slane %v3818, 2
        %v3885 = vrot.slane %v3819, 2
        %v3886 = vsel %vm977, %v3884, %v3885
        %v3887 = vrot.slane %v3820, 2
        %v3888 = vrot.slane %v3821, 2
        %v3889 = vsel %vm977, %v3887, %v3888
        %v3890 = vrot.slane %v3822, 2
        %v3891 = vrot.slane %v3823, 2
        %v3892 = vsel %vm977, %v3890, %v3891
        %v3893 = vrot.slane %v3824, 2
        %v3894 = vrot.slane %v3825, 2
        %v3895 = vsel %vm977, %v3893, %v3894
        %v3938 = vadd.f32 %v3726, %v3854
        %v3939 = vadd.f32 %v3727, %v3856
        %v3940 = vadd.f32 %v3728, %v3855
        %v3941 = vadd.f32 %v3729, %v3857
        %v3942 = vadd.f32 %v3730, %v3859
        %v3943 = vadd.f32 %v3731, %v3858
        %v3944 = vadd.f32 %v3732, %v3860
        %v3945 = vadd.f32 %v3733, %v3862
        %v3946 = vadd.f32 %v3734, %v3861
        %v3947 = vadd.f32 %v3735, %v3863
        %v3948 = vadd.f32 %v3736, %v3865
        %v3949 = vadd.f32 %v3737, %v3864
        %v3950 = vadd.f32 %v3738, %v3866
        %v3951 = vadd.f32 %v3739, %v3868
        %v3952 = vadd.f32 %v3740, %v3867
        %v3953 = vadd.f32 %v3741, %v3869
        %v3954 = vadd.f32 %v3742, %v3871
        %v3955 = vadd.f32 %v3743, %v3870
        %v3956 = vadd.f32 %v3744, %v3872
        %v3957 = vadd.f32 %v3745, %v3874
        %v3958 = vadd.f32 %v3746, %v3873
        %v3959 = vadd.f32 %v3747, %v3875
        %v3960 = vadd.f32 %v3748, %v3877
        %v3961 = vadd.f32 %v3749, %v3876
        %v3962 = vadd.f32 %v3750, %v3878
        %v3963 = vadd.f32 %v3751, %v3880
        %v3964 = vadd.f32 %v3752, %v3879
        %v3965 = vadd.f32 %v3753, %v3881
        %v3966 = vadd.f32 %v3754, %v3883
        %v3967 = vadd.f32 %v3755, %v3882
        %v3968 = vadd.f32 %v3756, %v3884
        %v3969 = vadd.f32 %v3757, %v3886
        %v3970 = vadd.f32 %v3758, %v3885
        %v3971 = vadd.f32 %v3759, %v3887
        %v3972 = vadd.f32 %v3760, %v3889
        %v3973 = vadd.f32 %v3761, %v3888
        %v3974 = vadd.f32 %v3762, %v3890
        %v3975 = vadd.f32 %v3763, %v3892
        %v3976 = vadd.f32 %v3764, %v3891
        %v3977 = vadd.f32 %v3765, %v3893
        %v3978 = vadd.f32 %v3766, %v3895
        %v3979 = vadd.f32 %v3767, %v3894
        %v4022 = vrot.slane %v3938, 7
        %v4023 = vrot.slane %v3939, 7
        %v4024 = vsel %vm2225, %v4022, %v4023
        %v4025 = vrot.slane %v3940, 7
        %v4026 = vsel %vm2225, %v4023, %v4025
        %v4027 = vrot.slane %v3941, 7
        %v4028 = vrot.slane %v3942, 7
        %v4029 = vsel %vm2225, %v4027, %v4028
        %v4030 = vrot.slane %v3943, 7
        %v4031 = vsel %vm2225, %v4028, %v4030
        %v4032 = vrot.slane %v3944, 7
        %v4033 = vrot.slane %v3945, 7
        %v4034 = vsel %vm2225, %v4032, %v4033
        %v4035 = vrot.slane %v3946, 7
        %v4036 = vsel %vm2225, %v4033, %v4035
        %v4037 = vrot.slane %v3947, 7
        %v4038 = vrot.slane %v3948, 7
        %v4039 = vsel %vm2225, %v4037, %v4038
        %v4040 = vrot.slane %v3949, 7
        %v4041 = vsel %vm2225, %v4038, %v4040
        %v4042 = vrot.slane %v3950, 7
        %v4043 = vrot.slane %v3951, 7
        %v4044 = vsel %vm2225, %v4042, %v4043
        %v4045 = vrot.slane %v3952, 7
        %v4046 = vsel %vm2225, %v4043, %v4045
        %v4047 = vrot.slane %v3953, 7
        %v4048 = vrot.slane %v3954, 7
        %v4049 = vsel %vm2225, %v4047, %v4048
        %v4050 = vrot.slane %v3955, 7
        %v4051 = vsel %vm2225, %v4048, %v4050
        %v4052 = vrot.slane %v3956, 7
        %v4053 = vrot.slane %v3957, 7
        %v4054 = vsel %vm2225, %v4052, %v4053
        %v4055 = vrot.slane %v3958, 7
        %v4056 = vsel %vm2225, %v4053, %v4055
        %v4057 = vrot.slane %v3959, 7
        %v4058 = vrot.slane %v3960, 7
        %v4059 = vsel %vm2225, %v4057, %v4058
        %v4060 = vrot.slane %v3961, 7
        %v4061 = vsel %vm2225, %v4058, %v4060
        %v4062 = vrot.slane %v3962, 7
        %v4063 = vrot.slane %v3963, 7
        %v4064 = vsel %vm2225, %v4062, %v4063
        %v4065 = vrot.slane %v3964, 7
        %v4066 = vsel %vm2225, %v4063, %v4065
        %v4067 = vrot.slane %v3965, 7
        %v4068 = vrot.slane %v3966, 7
        %v4069 = vsel %vm2225, %v4067, %v4068
        %v4070 = vrot.slane %v3967, 7
        %v4071 = vsel %vm2225, %v4068, %v4070
        %v4072 = vrot.slane %v3968, 7
        %v4073 = vrot.slane %v3969, 7
        %v4074 = vsel %vm2225, %v4072, %v4073
        %v4075 = vrot.slane %v3970, 7
        %v4076 = vsel %vm2225, %v4073, %v4075
        %v4077 = vrot.slane %v3971, 7
        %v4078 = vrot.slane %v3972, 7
        %v4079 = vsel %vm2225, %v4077, %v4078
        %v4080 = vrot.slane %v3973, 7
        %v4081 = vsel %vm2225, %v4078, %v4080
        %v4082 = vrot.slane %v3974, 7
        %v4083 = vrot.slane %v3975, 7
        %v4084 = vsel %vm2225, %v4082, %v4083
        %v4085 = vrot.slane %v3976, 7
        %v4086 = vsel %vm2225, %v4083, %v4085
        %v4087 = vrot.slane %v3977, 7
        %v4088 = vrot.slane %v3978, 7
        %v4089 = vsel %vm2225, %v4087, %v4088
        %v4090 = vrot.slane %v3979, 7
        %v4091 = vsel %vm2225, %v4088, %v4090
        %4120 = vst [vmem:[%s401 + $0x8] sm:$0xff] %v4024
        %4121 = vst [vmem:[%s401 + $0x20] sm:$0x3f] %v4026
        %4122 = vst [vmem:[%s401 + $0x38] sm:$0xff] %v4029
        %4123 = vst [vmem:[%s401 + $0x50] sm:$0x3f] %v4031
        %4124 = vst [vmem:[%s401 + $0x68] sm:$0xff] %v4034
        %4125 = vst [vmem:[%s401 + $0x80] sm:$0x3f] %v4036
        %4126 = vst [vmem:[%s401 + $0x98] sm:$0xff] %v4039
        %4127 = vst [vmem:[%s401 + $0xb0] sm:$0x3f] %v4041
        %4128 = vst [vmem:[%s401 + $0xc8] sm:$0xff] %v4044
        %4129 = vst [vmem:[%s401 + $0xe0] sm:$0x3f] %v4046
        %4130 = vst [vmem:[%s401 + $0xf8] sm:$0xff] %v4049
        %4131 = vst [vmem:[%s401 + $0x110] sm:$0x3f] %v4051
        %4132 = vst [vmem:[%s401 + $0x128] sm:$0xff] %v4054
        %4133 = vst [vmem:[%s401 + $0x140] sm:$0x3f] %v4056
        %4134 = vst [vmem:[%s401 + $0x158] sm:$0xff] %v4059
        %4135 = vst [vmem:[%s401 + $0x170] sm:$0x3f] %v4061
        %4136 = vst [vmem:[%s401 + $0x188] sm:$0xff] %v4064
        %4137 = vst [vmem:[%s401 + $0x1a0] sm:$0x3f] %v4066
        %4138 = vst [vmem:[%s401 + $0x1b8] sm:$0xff] %v4069
        %4139 = vst [vmem:[%s401 + $0x1d0] sm:$0x3f] %v4071
        %4140 = vst [vmem:[%s401 + $0x1e8] sm:$0xff] %v4074
        %4141 = vst [vmem:[%s401 + $0x200] sm:$0x3f] %v4076
        %4142 = vst [vmem:[%s401 + $0x218] sm:$0xff] %v4079
        %4143 = vst [vmem:[%s401 + $0x230] sm:$0x3f] %v4081
        %4144 = vst [vmem:[%s401 + $0x248] sm:$0xff] %v4084
        %4145 = vst [vmem:[%s401 + $0x260] sm:$0x3f] %v4086
        %4146 = vst [vmem:[%s401 + $0x278] sm:$0xff] %v4089
        %4147 = vst [vmem:[%s401 + $0x290] sm:$0x3f] %v4091
        %v4148 = vld [vmem:[%s373 + $0x10] sm:$0xff]
        %v4149 = vld [vmem:[%s373 + $0x28] sm:$0x3f]
        %v4150 = vld [vmem:[%s373 + $0x40] sm:$0xff]
        %v4151 = vld [vmem:[%s373 + $0x58] sm:$0x3f]
        %v4152 = vld [vmem:[%s373 + $0x70] sm:$0xff]
        %v4153 = vld [vmem:[%s373 + $0x88] sm:$0x3f]
        %v4154 = vld [vmem:[%s373 + $0xa0] sm:$0xff]
        %v4155 = vld [vmem:[%s373 + $0xb8] sm:$0x3f]
        %v4156 = vld [vmem:[%s373 + $0xd0] sm:$0xff]
        %v4157 = vld [vmem:[%s373 + $0xe8] sm:$0x3f]
        %v4158 = vld [vmem:[%s373 + $0x100] sm:$0xff]
        %v4159 = vld [vmem:[%s373 + $0x118] sm:$0x3f]
        %v4160 = vld [vmem:[%s373 + $0x130] sm:$0xff]
        %v4161 = vld [vmem:[%s373 + $0x148] sm:$0x3f]
        %v4162 = vld [vmem:[%s373 + $0x160] sm:$0xff]
        %v4163 = vld [vmem:[%s373 + $0x178] sm:$0x3f]
        %v4164 = vld [vmem:[%s373 + $0x190] sm:$0xff]
        %v4165 = vld [vmem:[%s373 + $0x1a8] sm:$0x3f]
        %v4166 = vld [vmem:[%s373 + $0x1c0] sm:$0xff]
        %v4167 = vld [vmem:[%s373 + $0x1d8] sm:$0x3f]
        %v4168 = vld [vmem:[%s373 + $0x1f0] sm:$0xff]
        %v4169 = vld [vmem:[%s373 + $0x208] sm:$0x3f]
        %v4170 = vld [vmem:[%s373 + $0x220] sm:$0xff]
        %v4171 = vld [vmem:[%s373 + $0x238] sm:$0x3f]
        %v4172 = vld [vmem:[%s373 + $0x250] sm:$0xff]
        %v4173 = vld [vmem:[%s373 + $0x268] sm:$0x3f]
        %v4174 = vld [vmem:[%s373 + $0x280] sm:$0xff]
        %v4175 = vld [vmem:[%s373 + $0x298] sm:$0x3f]
        %4176 = vst [vmem:[%s577 + $0x28] sm:$0xff] %v4148
        %4177 = vst [vmem:[%s577 + $0x40] sm:$0x3f] %v4149
        %4178 = vst [vmem:[%s577 + $0x70] sm:$0xff] %v4150
        %4179 = vst [vmem:[%s577 + $0x88] sm:$0x3f] %v4151
        %4180 = vst [vmem:[%s577 + $0xb8] sm:$0xff] %v4152
        %4181 = vst [vmem:[%s577 + $0xd0] sm:$0x3f] %v4153
        %4182 = vst [vmem:[%s577 + $0x100] sm:$0xff] %v4154
        %4183 = vst [vmem:[%s577 + $0x118] sm:$0x3f] %v4155
        %4184 = vst [vmem:[%s577 + $0x148] sm:$0xff] %v4156
        %4185 = vst [vmem:[%s577 + $0x160] sm:$0x3f] %v4157
        %4186 = vst [vmem:[%s577 + $0x190] sm:$0xff] %v4158
        %4187 = vst [vmem:[%s577 + $0x1a8] sm:$0x3f] %v4159
        %4188 = vst [vmem:[%s577 + $0x1d8] sm:$0xff] %v4160
        %4189 = vst [vmem:[%s577 + $0x1f0] sm:$0x3f] %v4161
        %4190 = vst [vmem:[%s577 + $0x220] sm:$0xff] %v4162
        %4191 = vst [vmem:[%s577 + $0x238] sm:$0x3f] %v4163
        %4192 = vst [vmem:[%s577 + $0x268] sm:$0xff] %v4164
        %4193 = vst [vmem:[%s577 + $0x280] sm:$0x3f] %v4165
        %4194 = vst [vmem:[%s577 + $0x2b0] sm:$0xff] %v4166
        %4195 = vst [vmem:[%s577 + $0x2c8] sm:$0x3f] %v4167
        %4196 = vst [vmem:[%s577 + $0x2f8] sm:$0xff] %v4168
        %4197 = vst [vmem:[%s577 + $0x310] sm:$0x3f] %v4169
        %4198 = vst [vmem:[%s577 + $0x340] sm:$0xff] %v4170
        %4199 = vst [vmem:[%s577 + $0x358] sm:$0x3f] %v4171
        %4200 = vst [vmem:[%s577 + $0x388] sm:$0xff] %v4172
        %4201 = vst [vmem:[%s577 + $0x3a0] sm:$0x3f] %v4173
        %4202 = vst [vmem:[%s577 + $0x3d0] sm:$0xff] %v4174
        %4203 = vst [vmem:[%s577 + $0x3e8] sm:$0x3f] %v4175
        %v4204 = vld [vmem:[#allocation2 + $0x10] sm:$0x80]
        %v4205 = vld [vmem:[#allocation2 + $0x28] sm:$0xff]
        %v4206 = vld [vmem:[#allocation2 + $0x40] sm:$0x1f]
        %v4207 = vld [vmem:[#allocation2 + $0x58] sm:$0x80]
        %v4208 = vld [vmem:[#allocation2 + $0x70] sm:$0xff]
        %v4209 = vld [vmem:[#allocation2 + $0x88] sm:$0x1f]
        %v4210 = vld [vmem:[#allocation2 + $0xa0] sm:$0x80]
        %v4211 = vld [vmem:[#allocation2 + $0xb8] sm:$0xff]
        %v4212 = vld [vmem:[#allocation2 + $0xd0] sm:$0x1f]
        %v4213 = vld [vmem:[#allocation2 + $0xe8] sm:$0x80]
        %v4214 = vld [vmem:[#allocation2 + $0x100] sm:$0xff]
        %v4215 = vld [vmem:[#allocation2 + $0x118] sm:$0x1f]
        %v4216 = vld [vmem:[#allocation2 + $0x130] sm:$0x80]
        %v4217 = vld [vmem:[#allocation2 + $0x148] sm:$0xff]
        %v4218 = vld [vmem:[#allocation2 + $0x160] sm:$0x1f]
        %v4219 = vld [vmem:[#allocation2 + $0x178] sm:$0x80]
        %v4220 = vld [vmem:[#allocation2 + $0x190] sm:$0xff]
        %v4221 = vld [vmem:[#allocation2 + $0x1a8] sm:$0x1f]
        %v4222 = vld [vmem:[#allocation2 + $0x1c0] sm:$0x80]
        %v4223 = vld [vmem:[#allocation2 + $0x1d8] sm:$0xff]
        %v4224 = vld [vmem:[#allocation2 + $0x1f0] sm:$0x1f]
        %v4225 = vld [vmem:[#allocation2 + $0x208] sm:$0x80]
        %v4226 = vld [vmem:[#allocation2 + $0x220] sm:$0xff]
        %v4227 = vld [vmem:[#allocation2 + $0x238] sm:$0x1f]
        %v4228 = vld [vmem:[#allocation2 + $0x250] sm:$0x80]
        %v4229 = vld [vmem:[#allocation2 + $0x268] sm:$0xff]
        %v4230 = vld [vmem:[#allocation2 + $0x280] sm:$0x1f]
        %v4231 = vld [vmem:[#allocation2 + $0x298] sm:$0x80]
        %v4232 = vld [vmem:[#allocation2 + $0x2b0] sm:$0xff]
        %v4233 = vld [vmem:[#allocation2 + $0x2c8] sm:$0x1f]
        %v4234 = vld [vmem:[#allocation2 + $0x2e0] sm:$0x80]
        %v4235 = vld [vmem:[#allocation2 + $0x2f8] sm:$0xff]
        %v4236 = vld [vmem:[#allocation2 + $0x310] sm:$0x1f]
        %v4237 = vld [vmem:[#allocation2 + $0x328] sm:$0x80]
        %v4238 = vld [vmem:[#allocation2 + $0x340] sm:$0xff]
        %v4239 = vld [vmem:[#allocation2 + $0x358] sm:$0x1f]
        %v4240 = vld [vmem:[#allocation2 + $0x370] sm:$0x80]
        %v4241 = vld [vmem:[#allocation2 + $0x388] sm:$0xff]
        %v4242 = vld [vmem:[#allocation2 + $0x3a0] sm:$0x1f]
        %v4243 = vld [vmem:[#allocation2 + $0x3b8] sm:$0x80]
        %v4244 = vld [vmem:[#allocation2 + $0x3d0] sm:$0xff]
        %v4245 = vld [vmem:[#allocation2 + $0x3e8] sm:$0x1f]
        %v4246 = vld [vmem:[%s380 + $0x8] sm:$0x1]
        %v4247 = vperm.slane %v4246, 0
        %v4248 = vmul.f32 %v4204, %v4247
        %v4249 = vmul.f32 %v4205, %v4247
        %v4250 = vmul.f32 %v4206, %v4247
        %v4251 = vmul.f32 %v4207, %v4247
        %v4252 = vmul.f32 %v4208, %v4247
        %v4253 = vmul.f32 %v4209, %v4247
        %v4254 = vmul.f32 %v4210, %v4247
        %v4255 = vmul.f32 %v4211, %v4247
        %v4256 = vmul.f32 %v4212, %v4247
        %v4257 = vmul.f32 %v4213, %v4247
        %v4258 = vmul.f32 %v4214, %v4247
        %v4259 = vmul.f32 %v4215, %v4247
        %v4260 = vmul.f32 %v4216, %v4247
        %v4261 = vmul.f32 %v4217, %v4247
        %v4262 = vmul.f32 %v4218, %v4247
        %v4263 = vmul.f32 %v4219, %v4247
        %v4264 = vmul.f32 %v4220, %v4247
        %v4265 = vmul.f32 %v4221, %v4247
        %v4266 = vmul.f32 %v4222, %v4247
        %v4267 = vmul.f32 %v4223, %v4247
        %v4268 = vmul.f32 %v4224, %v4247
        %v4269 = vmul.f32 %v4225, %v4247
        %v4270 = vmul.f32 %v4226, %v4247
        %v4271 = vmul.f32 %v4227, %v4247
        %v4272 = vmul.f32 %v4228, %v4247
        %v4273 = vmul.f32 %v4229, %v4247
        %v4274 = vmul.f32 %v4230, %v4247
        %v4275 = vmul.f32 %v4231, %v4247
        %v4276 = vmul.f32 %v4232, %v4247
        %v4277 = vmul.f32 %v4233, %v4247
        %v4278 = vmul.f32 %v4234, %v4247
        %v4279 = vmul.f32 %v4235, %v4247
        %v4280 = vmul.f32 %v4236, %v4247
        %v4281 = vmul.f32 %v4237, %v4247
        %v4282 = vmul.f32 %v4238, %v4247
        %v4283 = vmul.f32 %v4239, %v4247
        %v4284 = vmul.f32 %v4240, %v4247
        %v4285 = vmul.f32 %v4241, %v4247
        %v4286 = vmul.f32 %v4242, %v4247
        %v4287 = vmul.f32 %v4243, %v4247
        %v4288 = vmul.f32 %v4244, %v4247
        %v4289 = vmul.f32 %v4245, %v4247
        %v4290 = vld [vmem:[#allocation2 + $0x40] sm:$0x3f]
        %v4291 = vld [vmem:[#allocation2 + $0x88] sm:$0x3f]
        %v4292 = vld [vmem:[#allocation2 + $0xd0] sm:$0x3f]
        %v4293 = vld [vmem:[#allocation2 + $0x118] sm:$0x3f]
        %v4294 = vld [vmem:[#allocation2 + $0x160] sm:$0x3f]
        %v4295 = vld [vmem:[#allocation2 + $0x1a8] sm:$0x3f]
        %v4296 = vld [vmem:[#allocation2 + $0x1f0] sm:$0x3f]
        %v4297 = vld [vmem:[#allocation2 + $0x238] sm:$0x3f]
        %v4298 = vld [vmem:[#allocation2 + $0x280] sm:$0x3f]
        %v4299 = vld [vmem:[#allocation2 + $0x2c8] sm:$0x3f]
        %v4300 = vld [vmem:[#allocation2 + $0x310] sm:$0x3f]
        %v4301 = vld [vmem:[#allocation2 + $0x358] sm:$0x3f]
        %v4302 = vld [vmem:[#allocation2 + $0x3a0] sm:$0x3f]
        %v4303 = vld [vmem:[#allocation2 + $0x3e8] sm:$0x3f]
        %v4304 = vld [vmem:[%s380 + $0x9] sm:$0x1]
        %v4305 = vperm.slane %v4304, 0
        %v4306 = vmul.f32 %v4205, %v4305
        %v4307 = vmul.f32 %v4290, %v4305
        %v4308 = vmul.f32 %v4208, %v4305
        %v4309 = vmul.f32 %v4291, %v4305
        %v4310 = vmul.f32 %v4211, %v4305
        %v4311 = vmul.f32 %v4292, %v4305
        %v4312 = vmul.f32 %v4214, %v4305
        %v4313 = vmul.f32 %v4293, %v4305
        %v4314 = vmul.f32 %v4217, %v4305
        %v4315 = vmul.f32 %v4294, %v4305
        %v4316 = vmul.f32 %v4220, %v4305
        %v4317 = vmul.f32 %v4295, %v4305
        %v4318 = vmul.f32 %v4223, %v4305
        %v4319 = vmul.f32 %v4296, %v4305
        %v4320 = vmul.f32 %v4226, %v4305
        %v4321 = vmul.f32 %v4297, %v4305
        %v4322 = vmul.f32 %v4229, %v4305
        %v4323 = vmul.f32 %v4298, %v4305
        %v4324 = vmul.f32 %v4232, %v4305
        %v4325 = vmul.f32 %v4299, %v4305
        %v4326 = vmul.f32 %v4235, %v4305
        %v4327 = vmul.f32 %v4300, %v4305
        %v4328 = vmul.f32 %v4238, %v4305
        %v4329 = vmul.f32 %v4301, %v4305
        %v4330 = vmul.f32 %v4241, %v4305
        %v4331 = vmul.f32 %v4302, %v4305
        %v4332 = vmul.f32 %v4244, %v4305
        %v4333 = vmul.f32 %v4303, %v4305
        %v4362 = vrot.slane %v4306, 1
        %v4363 = vrot.slane %v4307, 1
        %v4364 = vsel %vm764, %v4362, %v4363
        %v4365 = vrot.slane %v4308, 1
        %v4366 = vrot.slane %v4309, 1
        %v4367 = vsel %vm764, %v4365, %v4366
        %v4368 = vrot.slane %v4310, 1
        %v4369 = vrot.slane %v4311, 1
        %v4370 = vsel %vm764, %v4368, %v4369
        %v4371 = vrot.slane %v4312, 1
        %v4372 = vrot.slane %v4313, 1
        %v4373 = vsel %vm764, %v4371, %v4372
        %v4374 = vrot.slane %v4314, 1
        %v4375 = vrot.slane %v4315, 1
        %v4376 = vsel %vm764, %v4374, %v4375
        %v4377 = vrot.slane %v4316, 1
        %v4378 = vrot.slane %v4317, 1
        %v4379 = vsel %vm764, %v4377, %v4378
        %v4380 = vrot.slane %v4318, 1
        %v4381 = vrot.slane %v4319, 1
        %v4382 = vsel %vm764, %v4380, %v4381
        %v4383 = vrot.slane %v4320, 1
        %v4384 = vrot.slane %v4321, 1
        %v4385 = vsel %vm764, %v4383, %v4384
        %v4386 = vrot.slane %v4322, 1
        %v4387 = vrot.slane %v4323, 1
        %v4388 = vsel %vm764, %v4386, %v4387
        %v4389 = vrot.slane %v4324, 1
        %v4390 = vrot.slane %v4325, 1
        %v4391 = vsel %vm764, %v4389, %v4390
        %v4392 = vrot.slane %v4326, 1
        %v4393 = vrot.slane %v4327, 1
        %v4394 = vsel %vm764, %v4392, %v4393
        %v4395 = vrot.slane %v4328, 1
        %v4396 = vrot.slane %v4329, 1
        %v4397 = vsel %vm764, %v4395, %v4396
        %v4398 = vrot.slane %v4330, 1
        %v4399 = vrot.slane %v4331, 1
        %v4400 = vsel %vm764, %v4398, %v4399
        %v4401 = vrot.slane %v4332, 1
        %v4402 = vrot.slane %v4333, 1
        %v4403 = vsel %vm764, %v4401, %v4402
        %v4446 = vadd.f32 %v4248, %v4362
        %v4447 = vadd.f32 %v4249, %v4364
        %v4448 = vadd.f32 %v4250, %v4363
        %v4449 = vadd.f32 %v4251, %v4365
        %v4450 = vadd.f32 %v4252, %v4367
        %v4451 = vadd.f32 %v4253, %v4366
        %v4452 = vadd.f32 %v4254, %v4368
        %v4453 = vadd.f32 %v4255, %v4370
        %v4454 = vadd.f32 %v4256, %v4369
        %v4455 = vadd.f32 %v4257, %v4371
        %v4456 = vadd.f32 %v4258, %v4373
        %v4457 = vadd.f32 %v4259, %v4372
        %v4458 = vadd.f32 %v4260, %v4374
        %v4459 = vadd.f32 %v4261, %v4376
        %v4460 = vadd.f32 %v4262, %v4375
        %v4461 = vadd.f32 %v4263, %v4377
        %v4462 = vadd.f32 %v4264, %v4379
        %v4463 = vadd.f32 %v4265, %v4378
        %v4464 = vadd.f32 %v4266, %v4380
        %v4465 = vadd.f32 %v4267, %v4382
        %v4466 = vadd.f32 %v4268, %v4381
        %v4467 = vadd.f32 %v4269, %v4383
        %v4468 = vadd.f32 %v4270, %v4385
        %v4469 = vadd.f32 %v4271, %v4384
        %v4470 = vadd.f32 %v4272, %v4386
        %v4471 = vadd.f32 %v4273, %v4388
        %v4472 = vadd.f32 %v4274, %v4387
        %v4473 = vadd.f32 %v4275, %v4389
        %v4474 = vadd.f32 %v4276, %v4391
        %v4475 = vadd.f32 %v4277, %v4390
        %v4476 = vadd.f32 %v4278, %v4392
        %v4477 = vadd.f32 %v4279, %v4394
        %v4478 = vadd.f32 %v4280, %v4393
        %v4479 = vadd.f32 %v4281, %v4395
        %v4480 = vadd.f32 %v4282, %v4397
        %v4481 = vadd.f32 %v4283, %v4396
        %v4482 = vadd.f32 %v4284, %v4398
        %v4483 = vadd.f32 %v4285, %v4400
        %v4484 = vadd.f32 %v4286, %v4399
        %v4485 = vadd.f32 %v4287, %v4401
        %v4486 = vadd.f32 %v4288, %v4403
        %v4487 = vadd.f32 %v4289, %v4402
        %v4488 = vld [vmem:[#allocation2 + $0x28] sm:$0xfe]
        %v4489 = vld [vmem:[#allocation2 + $0x40] sm:$0x7f]
        %v4490 = vld [vmem:[#allocation2 + $0x70] sm:$0xfe]
        %v4491 = vld [vmem:[#allocation2 + $0x88] sm:$0x7f]
        %v4492 = vld [vmem:[#allocation2 + $0xb8] sm:$0xfe]
        %v4493 = vld [vmem:[#allocation2 + $0xd0] sm:$0x7f]
        %v4494 = vld [vmem:[#allocation2 + $0x100] sm:$0xfe]
        %v4495 = vld [vmem:[#allocation2 + $0x118] sm:$0x7f]
        %v4496 = vld [vmem:[#allocation2 + $0x148] sm:$0xfe]
        %v4497 = vld [vmem:[#allocation2 + $0x160] sm:$0x7f]
        %v4498 = vld [vmem:[#allocation2 + $0x190] sm:$0xfe]
        %v4499 = vld [vmem:[#allocation2 + $0x1a8] sm:$0x7f]
        %v4500 = vld [vmem:[#allocation2 + $0x1d8] sm:$0xfe]
        %v4501 = vld [vmem:[#allocation2 + $0x1f0] sm:$0x7f]
        %v4502 = vld [vmem:[#allocation2 + $0x220] sm:$0xfe]
        %v4503 = vld [vmem:[#allocation2 + $0x238] sm:$0x7f]
        %v4504 = vld [vmem:[#allocation2 + $0x268] sm:$0xfe]
        %v4505 = vld [vmem:[#allocation2 + $0x280] sm:$0x7f]
        %v4506 = vld [vmem:[#allocation2 + $0x2b0] sm:$0xfe]
        %v4507 = vld [vmem:[#allocation2 + $0x2c8] sm:$0x7f]
        %v4508 = vld [vmem:[#allocation2 + $0x2f8] sm:$0xfe]
        %v4509 = vld [vmem:[#allocation2 + $0x310] sm:$0x7f]
        %v4510 = vld [vmem:[#allocation2 + $0x340] sm:$0xfe]
        %v4511 = vld [vmem:[#allocation2 + $0x358] sm:$0x7f]
        %v4512 = vld [vmem:[#allocation2 + $0x388] sm:$0xfe]
        %v4513 = vld [vmem:[#allocation2 + $0x3a0] sm:$0x7f]
        %v4514 = vld [vmem:[#allocation2 + $0x3d0] sm:$0xfe]
        %v4515 = vld [vmem:[#allocation2 + $0x3e8] sm:$0x7f]
        %v4516 = vld [vmem:[%s380 + $0xa] sm:$0x1]
        %v4517 = vperm.slane %v4516, 0
        %v4518 = vmul.f32 %v4488, %v4517
        %v4519 = vmul.f32 %v4489, %v4517
        %v4520 = vmul.f32 %v4490, %v4517
        %v4521 = vmul.f32 %v4491, %v4517
        %v4522 = vmul.f32 %v4492, %v4517
        %v4523 = vmul.f32 %v4493, %v4517
        %v4524 = vmul.f32 %v4494, %v4517
        %v4525 = vmul.f32 %v4495, %v4517
        %v4526 = vmul.f32 %v4496, %v4517
        %v4527 = vmul.f32 %v4497, %v4517
        %v4528 = vmul.f32 %v4498, %v4517
        %v4529 = vmul.f32 %v4499, %v4517
        %v4530 = vmul.f32 %v4500, %v4517
        %v4531 = vmul.f32 %v4501, %v4517
        %v4532 = vmul.f32 %v4502, %v4517
        %v4533 = vmul.f32 %v4503, %v4517
        %v4534 = vmul.f32 %v4504, %v4517
        %v4535 = vmul.f32 %v4505, %v4517
        %v4536 = vmul.f32 %v4506, %v4517
        %v4537 = vmul.f32 %v4507, %v4517
        %v4538 = vmul.f32 %v4508, %v4517
        %v4539 = vmul.f32 %v4509, %v4517
        %v4540 = vmul.f32 %v4510, %v4517
        %v4541 = vmul.f32 %v4511, %v4517
        %v4542 = vmul.f32 %v4512, %v4517
        %v4543 = vmul.f32 %v4513, %v4517
        %v4544 = vmul.f32 %v4514, %v4517
        %v4545 = vmul.f32 %v4515, %v4517
        %v4574 = vrot.slane %v4518, 2
        %v4575 = vrot.slane %v4519, 2
        %v4576 = vsel %vm977, %v4574, %v4575
        %v4577 = vrot.slane %v4520, 2
        %v4578 = vrot.slane %v4521, 2
        %v4579 = vsel %vm977, %v4577, %v4578
        %v4580 = vrot.slane %v4522, 2
        %v4581 = vrot.slane %v4523, 2
        %v4582 = vsel %vm977, %v4580, %v4581
        %v4583 = vrot.slane %v4524, 2
        %v4584 = vrot.slane %v4525, 2
        %v4585 = vsel %vm977, %v4583, %v4584
        %v4586 = vrot.slane %v4526, 2
        %v4587 = vrot.slane %v4527, 2
        %v4588 = vsel %vm977, %v4586, %v4587
        %v4589 = vrot.slane %v4528, 2
        %v4590 = vrot.slane %v4529, 2
        %v4591 = vsel %vm977, %v4589, %v4590
        %v4592 = vrot.slane %v4530, 2
        %v4593 = vrot.slane %v4531, 2
        %v4594 = vsel %vm977, %v4592, %v4593
        %v4595 = vrot.slane %v4532, 2
        %v4596 = vrot.slane %v4533, 2
        %v4597 = vsel %vm977, %v4595, %v4596
        %v4598 = vrot.slane %v4534, 2
        %v4599 = vrot.slane %v4535, 2
        %v4600 = vsel %vm977, %v4598, %v4599
        %v4601 = vrot.slane %v4536, 2
        %v4602 = vrot.slane %v4537, 2
        %v4603 = vsel %vm977, %v4601, %v4602
        %v4604 = vrot.slane %v4538, 2
        %v4605 = vrot.slane %v4539, 2
        %v4606 = vsel %vm977, %v4604, %v4605
        %v4607 = vrot.slane %v4540, 2
        %v4608 = vrot.slane %v4541, 2
        %v4609 = vsel %vm977, %v4607, %v4608
        %v4610 = vrot.slane %v4542, 2
        %v4611 = vrot.slane %v4543, 2
        %v4612 = vsel %vm977, %v4610, %v4611
        %v4613 = vrot.slane %v4544, 2
        %v4614 = vrot.slane %v4545, 2
        %v4615 = vsel %vm977, %v4613, %v4614
        %v4658 = vadd.f32 %v4446, %v4574
        %v4659 = vadd.f32 %v4447, %v4576
        %v4660 = vadd.f32 %v4448, %v4575
        %v4661 = vadd.f32 %v4449, %v4577
        %v4662 = vadd.f32 %v4450, %v4579
        %v4663 = vadd.f32 %v4451, %v4578
        %v4664 = vadd.f32 %v4452, %v4580
        %v4665 = vadd.f32 %v4453, %v4582
        %v4666 = vadd.f32 %v4454, %v4581
        %v4667 = vadd.f32 %v4455, %v4583
        %v4668 = vadd.f32 %v4456, %v4585
        %v4669 = vadd.f32 %v4457, %v4584
        %v4670 = vadd.f32 %v4458, %v4586
        %v4671 = vadd.f32 %v4459, %v4588
        %v4672 = vadd.f32 %v4460, %v4587
        %v4673 = vadd.f32 %v4461, %v4589
        %v4674 = vadd.f32 %v4462, %v4591
        %v4675 = vadd.f32 %v4463, %v4590
        %v4676 = vadd.f32 %v4464, %v4592
        %v4677 = vadd.f32 %v4465, %v4594
        %v4678 = vadd.f32 %v4466, %v4593
        %v4679 = vadd.f32 %v4467, %v4595
        %v4680 = vadd.f32 %v4468, %v4597
        %v4681 = vadd.f32 %v4469, %v4596
        %v4682 = vadd.f32 %v4470, %v4598
        %v4683 = vadd.f32 %v4471, %v4600
        %v4684 = vadd.f32 %v4472, %v4599
        %v4685 = vadd.f32 %v4473, %v4601
        %v4686 = vadd.f32 %v4474, %v4603
        %v4687 = vadd.f32 %v4475, %v4602
        %v4688 = vadd.f32 %v4476, %v4604
        %v4689 = vadd.f32 %v4477, %v4606
        %v4690 = vadd.f32 %v4478, %v4605
        %v4691 = vadd.f32 %v4479, %v4607
        %v4692 = vadd.f32 %v4480, %v4609
        %v4693 = vadd.f32 %v4481, %v4608
        %v4694 = vadd.f32 %v4482, %v4610
        %v4695 = vadd.f32 %v4483, %v4612
        %v4696 = vadd.f32 %v4484, %v4611
        %v4697 = vadd.f32 %v4485, %v4613
        %v4698 = vadd.f32 %v4486, %v4615
        %v4699 = vadd.f32 %v4487, %v4614
        %v4700 = vld [vmem:[%s577 + $0x10] sm:$0x80]
        %v4701 = vld [vmem:[%s577 + $0x28] sm:$0xff]
        %v4702 = vld [vmem:[%s577 + $0x40] sm:$0x1f]
        %v4703 = vld [vmem:[%s577 + $0x58] sm:$0x80]
        %v4704 = vld [vmem:[%s577 + $0x70] sm:$0xff]
        %v4705 = vld [vmem:[%s577 + $0x88] sm:$0x1f]
        %v4706 = vld [vmem:[%s577 + $0xa0] sm:$0x80]
        %v4707 = vld [vmem:[%s577 + $0xb8] sm:$0xff]
        %v4708 = vld [vmem:[%s577 + $0xd0] sm:$0x1f]
        %v4709 = vld [vmem:[%s577 + $0xe8] sm:$0x80]
        %v4710 = vld [vmem:[%s577 + $0x100] sm:$0xff]
        %v4711 = vld [vmem:[%s577 + $0x118] sm:$0x1f]
        %v4712 = vld [vmem:[%s577 + $0x130] sm:$0x80]
        %v4713 = vld [vmem:[%s577 + $0x148] sm:$0xff]
        %v4714 = vld [vmem:[%s577 + $0x160] sm:$0x1f]
        %v4715 = vld [vmem:[%s577 + $0x178] sm:$0x80]
        %v4716 = vld [vmem:[%s577 + $0x190] sm:$0xff]
        %v4717 = vld [vmem:[%s577 + $0x1a8] sm:$0x1f]
        %v4718 = vld [vmem:[%s577 + $0x1c0] sm:$0x80]
        %v4719 = vld [vmem:[%s577 + $0x1d8] sm:$0xff]
        %v4720 = vld [vmem:[%s577 + $0x1f0] sm:$0x1f]
        %v4721 = vld [vmem:[%s577 + $0x208] sm:$0x80]
        %v4722 = vld [vmem:[%s577 + $0x220] sm:$0xff]
        %v4723 = vld [vmem:[%s577 + $0x238] sm:$0x1f]
        %v4724 = vld [vmem:[%s577 + $0x250] sm:$0x80]
        %v4725 = vld [vmem:[%s577 + $0x268] sm:$0xff]
        %v4726 = vld [vmem:[%s577 + $0x280] sm:$0x1f]
        %v4727 = vld [vmem:[%s577 + $0x298] sm:$0x80]
        %v4728 = vld [vmem:[%s577 + $0x2b0] sm:$0xff]
        %v4729 = vld [vmem:[%s577 + $0x2c8] sm:$0x1f]
        %v4730 = vld [vmem:[%s577 + $0x2e0] sm:$0x80]
        %v4731 = vld [vmem:[%s577 + $0x2f8] sm:$0xff]
        %v4732 = vld [vmem:[%s577 + $0x310] sm:$0x1f]
        %v4733 = vld [vmem:[%s577 + $0x328] sm:$0x80]
        %v4734 = vld [vmem:[%s577 + $0x340] sm:$0xff]
        %v4735 = vld [vmem:[%s577 + $0x358] sm:$0x1f]
        %v4736 = vld [vmem:[%s577 + $0x370] sm:$0x80]
        %v4737 = vld [vmem:[%s577 + $0x388] sm:$0xff]
        %v4738 = vld [vmem:[%s577 + $0x3a0] sm:$0x1f]
        %v4739 = vld [vmem:[%s577 + $0x3b8] sm:$0x80]
        %v4740 = vld [vmem:[%s577 + $0x3d0] sm:$0xff]
        %v4741 = vld [vmem:[%s577 + $0x3e8] sm:$0x1f]
        %v4742 = vld [vmem:[%s1146 + $0x8] sm:$0x1]
        %v4743 = vperm.slane %v4742, 0
        %v4744 = vmul.f32 %v4700, %v4743
        %v4745 = vmul.f32 %v4701, %v4743
        %v4746 = vmul.f32 %v4702, %v4743
        %v4747 = vmul.f32 %v4703, %v4743
        %v4748 = vmul.f32 %v4704, %v4743
        %v4749 = vmul.f32 %v4705, %v4743
        %v4750 = vmul.f32 %v4706, %v4743
        %v4751 = vmul.f32 %v4707, %v4743
        %v4752 = vmul.f32 %v4708, %v4743
        %v4753 = vmul.f32 %v4709, %v4743
        %v4754 = vmul.f32 %v4710, %v4743
        %v4755 = vmul.f32 %v4711, %v4743
        %v4756 = vmul.f32 %v4712, %v4743
        %v4757 = vmul.f32 %v4713, %v4743
        %v4758 = vmul.f32 %v4714, %v4743
        %v4759 = vmul.f32 %v4715, %v4743
        %v4760 = vmul.f32 %v4716, %v4743
        %v4761 = vmul.f32 %v4717, %v4743
        %v4762 = vmul.f32 %v4718, %v4743
        %v4763 = vmul.f32 %v4719, %v4743
        %v4764 = vmul.f32 %v4720, %v4743
        %v4765 = vmul.f32 %v4721, %v4743
        %v4766 = vmul.f32 %v4722, %v4743
        %v4767 = vmul.f32 %v4723, %v4743
        %v4768 = vmul.f32 %v4724, %v4743
        %v4769 = vmul.f32 %v4725, %v4743
        %v4770 = vmul.f32 %v4726, %v4743
        %v4771 = vmul.f32 %v4727, %v4743
        %v4772 = vmul.f32 %v4728, %v4743
        %v4773 = vmul.f32 %v4729, %v4743
        %v4774 = vmul.f32 %v4730, %v4743
        %v4775 = vmul.f32 %v4731, %v4743
        %v4776 = vmul.f32 %v4732, %v4743
        %v4777 = vmul.f32 %v4733, %v4743
        %v4778 = vmul.f32 %v4734, %v4743
        %v4779 = vmul.f32 %v4735, %v4743
        %v4780 = vmul.f32 %v4736, %v4743
        %v4781 = vmul.f32 %v4737, %v4743
        %v4782 = vmul.f32 %v4738, %v4743
        %v4783 = vmul.f32 %v4739, %v4743
        %v4784 = vmul.f32 %v4740, %v4743
        %v4785 = vmul.f32 %v4741, %v4743
        %v4786 = vadd.f32 %v4658, %v4744
        %v4787 = vadd.f32 %v4659, %v4745
        %v4788 = vadd.f32 %v4660, %v4746
        %v4789 = vadd.f32 %v4661, %v4747
        %v4790 = vadd.f32 %v4662, %v4748
        %v4791 = vadd.f32 %v4663, %v4749
        %v4792 = vadd.f32 %v4664, %v4750
        %v4793 = vadd.f32 %v4665, %v4751
        %v4794 = vadd.f32 %v4666, %v4752
        %v4795 = vadd.f32 %v4667, %v4753
        %v4796 = vadd.f32 %v4668, %v4754
        %v4797 = vadd.f32 %v4669, %v4755
        %v4798 = vadd.f32 %v4670, %v4756
        %v4799 = vadd.f32 %v4671, %v4757
        %v4800 = vadd.f32 %v4672, %v4758
        %v4801 = vadd.f32 %v4673, %v4759
        %v4802 = vadd.f32 %v4674, %v4760
        %v4803 = vadd.f32 %v4675, %v4761
        %v4804 = vadd.f32 %v4676, %v4762
        %v4805 = vadd.f32 %v4677, %v4763
        %v4806 = vadd.f32 %v4678, %v4764
        %v4807 = vadd.f32 %v4679, %v4765
        %v4808 = vadd.f32 %v4680, %v4766
        %v4809 = vadd.f32 %v4681, %v4767
        %v4810 = vadd.f32 %v4682, %v4768
        %v4811 = vadd.f32 %v4683, %v4769
        %v4812 = vadd.f32 %v4684, %v4770
        %v4813 = vadd.f32 %v4685, %v4771
        %v4814 = vadd.f32 %v4686, %v4772
        %v4815 = vadd.f32 %v4687, %v4773
        %v4816 = vadd.f32 %v4688, %v4774
        %v4817 = vadd.f32 %v4689, %v4775
        %v4818 = vadd.f32 %v4690, %v4776
        %v4819 = vadd.f32 %v4691, %v4777
        %v4820 = vadd.f32 %v4692, %v4778
        %v4821 = vadd.f32 %v4693, %v4779
        %v4822 = vadd.f32 %v4694, %v4780
        %v4823 = vadd.f32 %v4695, %v4781
        %v4824 = vadd.f32 %v4696, %v4782
        %v4825 = vadd.f32 %v4697, %v4783
        %v4826 = vadd.f32 %v4698, %v4784
        %v4827 = vadd.f32 %v4699, %v4785
        %v4828 = vld [vmem:[%s577 + $0x40] sm:$0x3f]
        %v4829 = vld [vmem:[%s577 + $0x88] sm:$0x3f]
        %v4830 = vld [vmem:[%s577 + $0xd0] sm:$0x3f]
        %v4831 = vld [vmem:[%s577 + $0x118] sm:$0x3f]
        %v4832 = vld [vmem:[%s577 + $0x160] sm:$0x3f]
        %v4833 = vld [vmem:[%s577 + $0x1a8] sm:$0x3f]
        %v4834 = vld [vmem:[%s577 + $0x1f0] sm:$0x3f]
        %v4835 = vld [vmem:[%s577 + $0x238] sm:$0x3f]
        %v4836 = vld [vmem:[%s577 + $0x280] sm:$0x3f]
        %v4837 = vld [vmem:[%s577 + $0x2c8] sm:$0x3f]
        %v4838 = vld [vmem:[%s577 + $0x310] sm:$0x3f]
        %v4839 = vld [vmem:[%s577 + $0x358] sm:$0x3f]
        %v4840 = vld [vmem:[%s577 + $0x3a0] sm:$0x3f]
        %v4841 = vld [vmem:[%s577 + $0x3e8] sm:$0x3f]
        %v4842 = vld [vmem:[%s1146 + $0x9] sm:$0x1]
        %v4843 = vperm.slane %v4842, 0
        %v4844 = vmul.f32 %v4701, %v4843
        %v4845 = vmul.f32 %v4828, %v4843
        %v4846 = vmul.f32 %v4704, %v4843
        %v4847 = vmul.f32 %v4829, %v4843
        %v4848 = vmul.f32 %v4707, %v4843
        %v4849 = vmul.f32 %v4830, %v4843
        %v4850 = vmul.f32 %v4710, %v4843
        %v4851 = vmul.f32 %v4831, %v4843
        %v4852 = vmul.f32 %v4713, %v4843
        %v4853 = vmul.f32 %v4832, %v4843
        %v4854 = vmul.f32 %v4716, %v4843
        %v4855 = vmul.f32 %v4833, %v4843
        %v4856 = vmul.f32 %v4719, %v4843
        %v4857 = vmul.f32 %v4834, %v4843
        %v4858 = vmul.f32 %v4722, %v4843
        %v4859 = vmul.f32 %v4835, %v4843
        %v4860 = vmul.f32 %v4725, %v4843
        %v4861 = vmul.f32 %v4836, %v4843
        %v4862 = vmul.f32 %v4728, %v4843
        %v4863 = vmul.f32 %v4837, %v4843
        %v4864 = vmul.f32 %v4731, %v4843
        %v4865 = vmul.f32 %v4838, %v4843
        %v4866 = vmul.f32 %v4734, %v4843
        %v4867 = vmul.f32 %v4839, %v4843
        %v4868 = vmul.f32 %v4737, %v4843
        %v4869 = vmul.f32 %v4840, %v4843
        %v4870 = vmul.f32 %v4740, %v4843
        %v4871 = vmul.f32 %v4841, %v4843
        %v4900 = vrot.slane %v4844, 1
        %v4901 = vrot.slane %v4845, 1
        %v4902 = vsel %vm764, %v4900, %v4901
        %v4903 = vrot.slane %v4846, 1
        %v4904 = vrot.slane %v4847, 1
        %v4905 = vsel %vm764, %v4903, %v4904
        %v4906 = vrot.slane %v4848, 1
        %v4907 = vrot.slane %v4849, 1
        %v4908 = vsel %vm764, %v4906, %v4907
        %v4909 = vrot.slane %v4850, 1
        %v4910 = vrot.slane %v4851, 1
        %v4911 = vsel %vm764, %v4909, %v4910
        %v4912 = vrot.slane %v4852, 1
        %v4913 = vrot.slane %v4853, 1
        %v4914 = vsel %vm764, %v4912, %v4913
        %v4915 = vrot.slane %v4854, 1
        %v4916 = vrot.slane %v4855, 1
        %v4917 = vsel %vm764, %v4915, %v4916
        %v4918 = vrot.slane %v4856, 1
        %v4919 = vrot.slane %v4857, 1
        %v4920 = vsel %vm764, %v4918, %v4919
        %v4921 = vrot.slane %v4858, 1
        %v4922 = vrot.slane %v4859, 1
        %v4923 = vsel %vm764, %v4921, %v4922
        %v4924 = vrot.slane %v4860, 1
        %v4925 = vrot.slane %v4861, 1
        %v4926 = vsel %vm764, %v4924, %v4925
        %v4927 = vrot.slane %v4862, 1
        %v4928 = vrot.slane %v4863, 1
        %v4929 = vsel %vm764, %v4927, %v4928
        %v4930 = vrot.slane %v4864, 1
        %v4931 = vrot.slane %v4865, 1
        %v4932 = vsel %vm764, %v4930, %v4931
        %v4933 = vrot.slane %v4866, 1
        %v4934 = vrot.slane %v4867, 1
        %v4935 = vsel %vm764, %v4933, %v4934
        %v4936 = vrot.slane %v4868, 1
        %v4937 = vrot.slane %v4869, 1
        %v4938 = vsel %vm764, %v4936, %v4937
        %v4939 = vrot.slane %v4870, 1
        %v4940 = vrot.slane %v4871, 1
        %v4941 = vsel %vm764, %v4939, %v4940
        %v4984 = vadd.f32 %v4786, %v4900
        %v4985 = vadd.f32 %v4787, %v4902
        %v4986 = vadd.f32 %v4788, %v4901
        %v4987 = vadd.f32 %v4789, %v4903
        %v4988 = vadd.f32 %v4790, %v4905
        %v4989 = vadd.f32 %v4791, %v4904
        %v4990 = vadd.f32 %v4792, %v4906
        %v4991 = vadd.f32 %v4793, %v4908
        %v4992 = vadd.f32 %v4794, %v4907
        %v4993 = vadd.f32 %v4795, %v4909
        %v4994 = vadd.f32 %v4796, %v4911
        %v4995 = vadd.f32 %v4797, %v4910
        %v4996 = vadd.f32 %v4798, %v4912
        %v4997 = vadd.f32 %v4799, %v4914
        %v4998 = vadd.f32 %v4800, %v4913
        %v4999 = vadd.f32 %v4801, %v4915
        %v5000 = vadd.f32 %v4802, %v4917
        %v5001 = vadd.f32 %v4803, %v4916
        %v5002 = vadd.f32 %v4804, %v4918
        %v5003 = vadd.f32 %v4805, %v4920
        %v5004 = vadd.f32 %v4806, %v4919
        %v5005 = vadd.f32 %v4807, %v4921
        %v5006 = vadd.f32 %v4808, %v4923
        %v5007 = vadd.f32 %v4809, %v4922
        %v5008 = vadd.f32 %v4810, %v4924
        %v5009 = vadd.f32 %v4811, %v4926
        %v5010 = vadd.f32 %v4812, %v4925
        %v5011 = vadd.f32 %v4813, %v4927
        %v5012 = vadd.f32 %v4814, %v4929
        %v5013 = vadd.f32 %v4815, %v4928
        %v5014 = vadd.f32 %v4816, %v4930
        %v5015 = vadd.f32 %v4817, %v4932
        %v5016 = vadd.f32 %v4818, %v4931
        %v5017 = vadd.f32 %v4819, %v4933
        %v5018 = vadd.f32 %v4820, %v4935
        %v5019 = vadd.f32 %v4821, %v4934
        %v5020 = vadd.f32 %v4822, %v4936
        %v5021 = vadd.f32 %v4823, %v4938
        %v5022 = vadd.f32 %v4824, %v4937
        %v5023 = vadd.f32 %v4825, %v4939
        %v5024 = vadd.f32 %v4826, %v4941
        %v5025 = vadd.f32 %v4827, %v4940
        %v5026 = vld [vmem:[%s577 + $0x28] sm:$0xfe]
        %v5027 = vld [vmem:[%s577 + $0x40] sm:$0x7f]
        %v5028 = vld [vmem:[%s577 + $0x70] sm:$0xfe]
        %v5029 = vld [vmem:[%s577 + $0x88] sm:$0x7f]
        %v5030 = vld [vmem:[%s577 + $0xb8] sm:$0xfe]
        %v5031 = vld [vmem:[%s577 + $0xd0] sm:$0x7f]
        %v5032 = vld [vmem:[%s577 + $0x100] sm:$0xfe]
        %v5033 = vld [vmem:[%s577 + $0x118] sm:$0x7f]
        %v5034 = vld [vmem:[%s577 + $0x148] sm:$0xfe]
        %v5035 = vld [vmem:[%s577 + $0x160] sm:$0x7f]
        %v5036 = vld [vmem:[%s577 + $0x190] sm:$0xfe]
        %v5037 = vld [vmem:[%s577 + $0x1a8] sm:$0x7f]
        %v5038 = vld [vmem:[%s577 + $0x1d8] sm:$0xfe]
        %v5039 = vld [vmem:[%s577 + $0x1f0] sm:$0x7f]
        %v5040 = vld [vmem:[%s577 + $0x220] sm:$0xfe]
        %v5041 = vld [vmem:[%s577 + $0x238] sm:$0x7f]
        %v5042 = vld [vmem:[%s577 + $0x268] sm:$0xfe]
        %v5043 = vld [vmem:[%s577 + $0x280] sm:$0x7f]
        %v5044 = vld [vmem:[%s577 + $0x2b0] sm:$0xfe]
        %v5045 = vld [vmem:[%s577 + $0x2c8] sm:$0x7f]
        %v5046 = vld [vmem:[%s577 + $0x2f8] sm:$0xfe]
        %v5047 = vld [vmem:[%s577 + $0x310] sm:$0x7f]
        %v5048 = vld [vmem:[%s577 + $0x340] sm:$0xfe]
        %v5049 = vld [vmem:[%s577 + $0x358] sm:$0x7f]
        %v5050 = vld [vmem:[%s577 + $0x388] sm:$0xfe]
        %v5051 = vld [vmem:[%s577 + $0x3a0] sm:$0x7f]
        %v5052 = vld [vmem:[%s577 + $0x3d0] sm:$0xfe]
        %v5053 = vld [vmem:[%s577 + $0x3e8] sm:$0x7f]
        %v5054 = vld [vmem:[%s1146 + $0xa] sm:$0x1]
        %v5055 = vperm.slane %v5054, 0
        %v5056 = vmul.f32 %v5026, %v5055
        %v5057 = vmul.f32 %v5027, %v5055
        %v5058 = vmul.f32 %v5028, %v5055
        %v5059 = vmul.f32 %v5029, %v5055
        %v5060 = vmul.f32 %v5030, %v5055
        %v5061 = vmul.f32 %v5031, %v5055
        %v5062 = vmul.f32 %v5032, %v5055
        %v5063 = vmul.f32 %v5033, %v5055
        %v5064 = vmul.f32 %v5034, %v5055
        %v5065 = vmul.f32 %v5035, %v5055
        %v5066 = vmul.f32 %v5036, %v5055
        %v5067 = vmul.f32 %v5037, %v5055
        %v5068 = vmul.f32 %v5038, %v5055
        %v5069 = vmul.f32 %v5039, %v5055
        %v5070 = vmul.f32 %v5040, %v5055
        %v5071 = vmul.f32 %v5041, %v5055
        %v5072 = vmul.f32 %v5042, %v5055
        %v5073 = vmul.f32 %v5043, %v5055
        %v5074 = vmul.f32 %v5044, %v5055
        %v5075 = vmul.f32 %v5045, %v5055
        %v5076 = vmul.f32 %v5046, %v5055
        %v5077 = vmul.f32 %v5047, %v5055
        %v5078 = vmul.f32 %v5048, %v5055
        %v5079 = vmul.f32 %v5049, %v5055
        %v5080 = vmul.f32 %v5050, %v5055
        %v5081 = vmul.f32 %v5051, %v5055
        %v5082 = vmul.f32 %v5052, %v5055
        %v5083 = vmul.f32 %v5053, %v5055
        %v5112 = vrot.slane %v5056, 2
        %v5113 = vrot.slane %v5057, 2
        %v5114 = vsel %vm977, %v5112, %v5113
        %v5115 = vrot.slane %v5058, 2
        %v5116 = vrot.slane %v5059, 2
        %v5117 = vsel %vm977, %v5115, %v5116
        %v5118 = vrot.slane %v5060, 2
        %v5119 = vrot.slane %v5061, 2
        %v5120 = vsel %vm977, %v5118, %v5119
        %v5121 = vrot.slane %v5062, 2
        %v5122 = vrot.slane %v5063, 2
        %v5123 = vsel %vm977, %v5121, %v5122
        %v5124 = vrot.slane %v5064, 2
        %v5125 = vrot.slane %v5065, 2
        %v5126 = vsel %vm977, %v5124, %v5125
        %v5127 = vrot.slane %v5066, 2
        %v5128 = vrot.slane %v5067, 2
        %v5129 = vsel %vm977, %v5127, %v5128
        %v5130 = vrot.slane %v5068, 2
        %v5131 = vrot.slane %v5069, 2
        %v5132 = vsel %vm977, %v5130, %v5131
        %v5133 = vrot.slane %v5070, 2
        %v5134 = vrot.slane %v5071, 2
        %v5135 = vsel %vm977, %v5133, %v5134
        %v5136 = vrot.slane %v5072, 2
        %v5137 = vrot.slane %v5073, 2
        %v5138 = vsel %vm977, %v5136, %v5137
        %v5139 = vrot.slane %v5074, 2
        %v5140 = vrot.slane %v5075, 2
        %v5141 = vsel %vm977, %v5139, %v5140
        %v5142 = vrot.slane %v5076, 2
        %v5143 = vrot.slane %v5077, 2
        %v5144 = vsel %vm977, %v5142, %v5143
        %v5145 = vrot.slane %v5078, 2
        %v5146 = vrot.slane %v5079, 2
        %v5147 = vsel %vm977, %v5145, %v5146
        %v5148 = vrot.slane %v5080, 2
        %v5149 = vrot.slane %v5081, 2
        %v5150 = vsel %vm977, %v5148, %v5149
        %v5151 = vrot.slane %v5082, 2
        %v5152 = vrot.slane %v5083, 2
        %v5153 = vsel %vm977, %v5151, %v5152
        %v5196 = vadd.f32 %v4984, %v5112
        %v5197 = vadd.f32 %v4985, %v5114
        %v5198 = vadd.f32 %v4986, %v5113
        %v5199 = vadd.f32 %v4987, %v5115
        %v5200 = vadd.f32 %v4988, %v5117
        %v5201 = vadd.f32 %v4989, %v5116
        %v5202 = vadd.f32 %v4990, %v5118
        %v5203 = vadd.f32 %v4991, %v5120
        %v5204 = vadd.f32 %v4992, %v5119
        %v5205 = vadd.f32 %v4993, %v5121
        %v5206 = vadd.f32 %v4994, %v5123
        %v5207 = vadd.f32 %v4995, %v5122
        %v5208 = vadd.f32 %v4996, %v5124
        %v5209 = vadd.f32 %v4997, %v5126
        %v5210 = vadd.f32 %v4998, %v5125
        %v5211 = vadd.f32 %v4999, %v5127
        %v5212 = vadd.f32 %v5000, %v5129
        %v5213 = vadd.f32 %v5001, %v5128
        %v5214 = vadd.f32 %v5002, %v5130
        %v5215 = vadd.f32 %v5003, %v5132
        %v5216 = vadd.f32 %v5004, %v5131
        %v5217 = vadd.f32 %v5005, %v5133
        %v5218 = vadd.f32 %v5006, %v5135
        %v5219 = vadd.f32 %v5007, %v5134
        %v5220 = vadd.f32 %v5008, %v5136
        %v5221 = vadd.f32 %v5009, %v5138
        %v5222 = vadd.f32 %v5010, %v5137
        %v5223 = vadd.f32 %v5011, %v5139
        %v5224 = vadd.f32 %v5012, %v5141
        %v5225 = vadd.f32 %v5013, %v5140
        %v5226 = vadd.f32 %v5014, %v5142
        %v5227 = vadd.f32 %v5015, %v5144
        %v5228 = vadd.f32 %v5016, %v5143
        %v5229 = vadd.f32 %v5017, %v5145
        %v5230 = vadd.f32 %v5018, %v5147
        %v5231 = vadd.f32 %v5019, %v5146
        %v5232 = vadd.f32 %v5020, %v5148
        %v5233 = vadd.f32 %v5021, %v5150
        %v5234 = vadd.f32 %v5022, %v5149
        %v5235 = vadd.f32 %v5023, %v5151
        %v5236 = vadd.f32 %v5024, %v5153
        %v5237 = vadd.f32 %v5025, %v5152
        %v5238 = vld [vmem:[%s1643 + $0x10] sm:$0x80]
        %v5239 = vld [vmem:[%s1643 + $0x28] sm:$0xff]
        %v5240 = vld [vmem:[%s1643 + $0x40] sm:$0x1f]
        %v5241 = vld [vmem:[%s1643 + $0x58] sm:$0x80]
        %v5242 = vld [vmem:[%s1643 + $0x70] sm:$0xff]
        %v5243 = vld [vmem:[%s1643 + $0x88] sm:$0x1f]
        %v5244 = vld [vmem:[%s1643 + $0xa0] sm:$0x80]
        %v5245 = vld [vmem:[%s1643 + $0xb8] sm:$0xff]
        %v5246 = vld [vmem:[%s1643 + $0xd0] sm:$0x1f]
        %v5247 = vld [vmem:[%s1643 + $0xe8] sm:$0x80]
        %v5248 = vld [vmem:[%s1643 + $0x100] sm:$0xff]
        %v5249 = vld [vmem:[%s1643 + $0x118] sm:$0x1f]
        %v5250 = vld [vmem:[%s1643 + $0x130] sm:$0x80]
        %v5251 = vld [vmem:[%s1643 + $0x148] sm:$0xff]
        %v5252 = vld [vmem:[%s1643 + $0x160] sm:$0x1f]
        %v5253 = vld [vmem:[%s1643 + $0x178] sm:$0x80]
        %v5254 = vld [vmem:[%s1643 + $0x190] sm:$0xff]
        %v5255 = vld [vmem:[%s1643 + $0x1a8] sm:$0x1f]
        %v5256 = vld [vmem:[%s1643 + $0x1c0] sm:$0x80]
        %v5257 = vld [vmem:[%s1643 + $0x1d8] sm:$0xff]
        %v5258 = vld [vmem:[%s1643 + $0x1f0] sm:$0x1f]
        %v5259 = vld [vmem:[%s1643 + $0x208] sm:$0x80]
        %v5260 = vld [vmem:[%s1643 + $0x220] sm:$0xff]
        %v5261 = vld [vmem:[%s1643 + $0x238] sm:$0x1f]
        %v5262 = vld [vmem:[%s1643 + $0x250] sm:$0x80]
        %v5263 = vld [vmem:[%s1643 + $0x268] sm:$0xff]
        %v5264 = vld [vmem:[%s1643 + $0x280] sm:$0x1f]
        %v5265 = vld [vmem:[%s1643 + $0x298] sm:$0x80]
        %v5266 = vld [vmem:[%s1643 + $0x2b0] sm:$0xff]
        %v5267 = vld [vmem:[%s1643 + $0x2c8] sm:$0x1f]
        %v5268 = vld [vmem:[%s1643 + $0x2e0] sm:$0x80]
        %v5269 = vld [vmem:[%s1643 + $0x2f8] sm:$0xff]
        %v5270 = vld [vmem:[%s1643 + $0x310] sm:$0x1f]
        %v5271 = vld [vmem:[%s1643 + $0x328] sm:$0x80]
        %v5272 = vld [vmem:[%s1643 + $0x340] sm:$0xff]
        %v5273 = vld [vmem:[%s1643 + $0x358] sm:$0x1f]
        %v5274 = vld [vmem:[%s1643 + $0x370] sm:$0x80]
        %v5275 = vld [vmem:[%s1643 + $0x388] sm:$0xff]
        %v5276 = vld [vmem:[%s1643 + $0x3a0] sm:$0x1f]
        %v5277 = vld [vmem:[%s1643 + $0x3b8] sm:$0x80]
        %v5278 = vld [vmem:[%s1643 + $0x3d0] sm:$0xff]
        %v5279 = vld [vmem:[%s1643 + $0x3e8] sm:$0x1f]
        %v5280 = vld [vmem:[%s1686 + $0x8] sm:$0x1]
        %v5281 = vperm.slane %v5280, 0
        %v5282 = vmul.f32 %v5238, %v5281
        %v5283 = vmul.f32 %v5239, %v5281
        %v5284 = vmul.f32 %v5240, %v5281
        %v5285 = vmul.f32 %v5241, %v5281
        %v5286 = vmul.f32 %v5242, %v5281
        %v5287 = vmul.f32 %v5243, %v5281
        %v5288 = vmul.f32 %v5244, %v5281
        %v5289 = vmul.f32 %v5245, %v5281
        %v5290 = vmul.f32 %v5246, %v5281
        %v5291 = vmul.f32 %v5247, %v5281
        %v5292 = vmul.f32 %v5248, %v5281
        %v5293 = vmul.f32 %v5249, %v5281
        %v5294 = vmul.f32 %v5250, %v5281
        %v5295 = vmul.f32 %v5251, %v5281
        %v5296 = vmul.f32 %v5252, %v5281
        %v5297 = vmul.f32 %v5253, %v5281
        %v5298 = vmul.f32 %v5254, %v5281
        %v5299 = vmul.f32 %v5255, %v5281
        %v5300 = vmul.f32 %v5256, %v5281
        %v5301 = vmul.f32 %v5257, %v5281
        %v5302 = vmul.f32 %v5258, %v5281
        %v5303 = vmul.f32 %v5259, %v5281
        %v5304 = vmul.f32 %v5260, %v5281
        %v5305 = vmul.f32 %v5261, %v5281
        %v5306 = vmul.f32 %v5262, %v5281
        %v5307 = vmul.f32 %v5263, %v5281
        %v5308 = vmul.f32 %v5264, %v5281
        %v5309 = vmul.f32 %v5265, %v5281
        %v5310 = vmul.f32 %v5266, %v5281
        %v5311 = vmul.f32 %v5267, %v5281
        %v5312 = vmul.f32 %v5268, %v5281
        %v5313 = vmul.f32 %v5269, %v5281
        %v5314 = vmul.f32 %v5270, %v5281
        %v5315 = vmul.f32 %v5271, %v5281
        %v5316 = vmul.f32 %v5272, %v5281
        %v5317 = vmul.f32 %v5273, %v5281
        %v5318 = vmul.f32 %v5274, %v5281
        %v5319 = vmul.f32 %v5275, %v5281
        %v5320 = vmul.f32 %v5276, %v5281
        %v5321 = vmul.f32 %v5277, %v5281
        %v5322 = vmul.f32 %v5278, %v5281
        %v5323 = vmul.f32 %v5279, %v5281
        %v5324 = vadd.f32 %v5196, %v5282
        %v5325 = vadd.f32 %v5197, %v5283
        %v5326 = vadd.f32 %v5198, %v5284
        %v5327 = vadd.f32 %v5199, %v5285
        %v5328 = vadd.f32 %v5200, %v5286
        %v5329 = vadd.f32 %v5201, %v5287
        %v5330 = vadd.f32 %v5202, %v5288
        %v5331 = vadd.f32 %v5203, %v5289
        %v5332 = vadd.f32 %v5204, %v5290
        %v5333 = vadd.f32 %v5205, %v5291
        %v5334 = vadd.f32 %v5206, %v5292
        %v5335 = vadd.f32 %v5207, %v5293
        %v5336 = vadd.f32 %v5208, %v5294
        %v5337 = vadd.f32 %v5209, %v5295
        %v5338 = vadd.f32 %v5210, %v5296
        %v5339 = vadd.f32 %v5211, %v5297
        %v5340 = vadd.f32 %v5212, %v5298
        %v5341 = vadd.f32 %v5213, %v5299
        %v5342 = vadd.f32 %v5214, %v5300
        %v5343 = vadd.f32 %v5215, %v5301
        %v5344 = vadd.f32 %v5216, %v5302
        %v5345 = vadd.f32 %v5217, %v5303
        %v5346 = vadd.f32 %v5218, %v5304
        %v5347 = vadd.f32 %v5219, %v5305
        %v5348 = vadd.f32 %v5220, %v5306
        %v5349 = vadd.f32 %v5221, %v5307
        %v5350 = vadd.f32 %v5222, %v5308
        %v5351 = vadd.f32 %v5223, %v5309
        %v5352 = vadd.f32 %v5224, %v5310
        %v5353 = vadd.f32 %v5225, %v5311
        %v5354 = vadd.f32 %v5226, %v5312
        %v5355 = vadd.f32 %v5227, %v5313
        %v5356 = vadd.f32 %v5228, %v5314
        %v5357 = vadd.f32 %v5229, %v5315
        %v5358 = vadd.f32 %v5230, %v5316
        %v5359 = vadd.f32 %v5231, %v5317
        %v5360 = vadd.f32 %v5232, %v5318
        %v5361 = vadd.f32 %v5233, %v5319
        %v5362 = vadd.f32 %v5234, %v5320
        %v5363 = vadd.f32 %v5235, %v5321
        %v5364 = vadd.f32 %v5236, %v5322
        %v5365 = vadd.f32 %v5237, %v5323
        %v5366 = vld [vmem:[%s1643 + $0x40] sm:$0x3f]
        %v5367 = vld [vmem:[%s1643 + $0x88] sm:$0x3f]
        %v5368 = vld [vmem:[%s1643 + $0xd0] sm:$0x3f]
        %v5369 = vld [vmem:[%s1643 + $0x118] sm:$0x3f]
        %v5370 = vld [vmem:[%s1643 + $0x160] sm:$0x3f]
        %v5371 = vld [vmem:[%s1643 + $0x1a8] sm:$0x3f]
        %v5372 = vld [vmem:[%s1643 + $0x1f0] sm:$0x3f]
        %v5373 = vld [vmem:[%s1643 + $0x238] sm:$0x3f]
        %v5374 = vld [vmem:[%s1643 + $0x280] sm:$0x3f]
        %v5375 = vld [vmem:[%s1643 + $0x2c8] sm:$0x3f]
        %v5376 = vld [vmem:[%s1643 + $0x310] sm:$0x3f]
        %v5377 = vld [vmem:[%s1643 + $0x358] sm:$0x3f]
        %v5378 = vld [vmem:[%s1643 + $0x3a0] sm:$0x3f]
        %v5379 = vld [vmem:[%s1643 + $0x3e8] sm:$0x3f]
        %v5380 = vld [vmem:[%s1686 + $0x9] sm:$0x1]
        %v5381 = vperm.slane %v5380, 0
        %v5382 = vmul.f32 %v5239, %v5381
        %v5383 = vmul.f32 %v5366, %v5381
        %v5384 = vmul.f32 %v5242, %v5381
        %v5385 = vmul.f32 %v5367, %v5381
        %v5386 = vmul.f32 %v5245, %v5381
        %v5387 = vmul.f32 %v5368, %v5381
        %v5388 = vmul.f32 %v5248, %v5381
        %v5389 = vmul.f32 %v5369, %v5381
        %v5390 = vmul.f32 %v5251, %v5381
        %v5391 = vmul.f32 %v5370, %v5381
        %v5392 = vmul.f32 %v5254, %v5381
        %v5393 = vmul.f32 %v5371, %v5381
        %v5394 = vmul.f32 %v5257, %v5381
        %v5395 = vmul.f32 %v5372, %v5381
        %v5396 = vmul.f32 %v5260, %v5381
        %v5397 = vmul.f32 %v5373, %v5381
        %v5398 = vmul.f32 %v5263, %v5381
        %v5399 = vmul.f32 %v5374, %v5381
        %v5400 = vmul.f32 %v5266, %v5381
        %v5401 = vmul.f32 %v5375, %v5381
        %v5402 = vmul.f32 %v5269, %v5381
        %v5403 = vmul.f32 %v5376, %v5381
        %v5404 = vmul.f32 %v5272, %v5381
        %v5405 = vmul.f32 %v5377, %v5381
        %v5406 = vmul.f32 %v5275, %v5381
        %v5407 = vmul.f32 %v5378, %v5381
        %v5408 = vmul.f32 %v5278, %v5381
        %v5409 = vmul.f32 %v5379, %v5381
        %v5438 = vrot.slane %v5382, 1
        %v5439 = vrot.slane %v5383, 1
        %v5440 = vsel %vm764, %v5438, %v5439
        %v5441 = vrot.slane %v5384, 1
        %v5442 = vrot.slane %v5385, 1
        %v5443 = vsel %vm764, %v5441, %v5442
        %v5444 = vrot.slane %v5386, 1
        %v5445 = vrot.slane %v5387, 1
        %v5446 = vsel %vm764, %v5444, %v5445
        %v5447 = vrot.slane %v5388, 1
        %v5448 = vrot.slane %v5389, 1
        %v5449 = vsel %vm764, %v5447, %v5448
        %v5450 = vrot.slane %v5390, 1
        %v5451 = vrot.slane %v5391, 1
        %v5452 = vsel %vm764, %v5450, %v5451
        %v5453 = vrot.slane %v5392, 1
        %v5454 = vrot.slane %v5393, 1
        %v5455 = vsel %vm764, %v5453, %v5454
        %v5456 = vrot.slane %v5394, 1
        %v5457 = vrot.slane %v5395, 1
        %v5458 = vsel %vm764, %v5456, %v5457
        %v5459 = vrot.slane %v5396, 1
        %v5460 = vrot.slane %v5397, 1
        %v5461 = vsel %vm764, %v5459, %v5460
        %v5462 = vrot.slane %v5398, 1
        %v5463 = vrot.slane %v5399, 1
        %v5464 = vsel %vm764, %v5462, %v5463
        %v5465 = vrot.slane %v5400, 1
        %v5466 = vrot.slane %v5401, 1
        %v5467 = vsel %vm764, %v5465, %v5466
        %v5468 = vrot.slane %v5402, 1
        %v5469 = vrot.slane %v5403, 1
        %v5470 = vsel %vm764, %v5468, %v5469
        %v5471 = vrot.slane %v5404, 1
        %v5472 = vrot.slane %v5405, 1
        %v5473 = vsel %vm764, %v5471, %v5472
        %v5474 = vrot.slane %v5406, 1
        %v5475 = vrot.slane %v5407, 1
        %v5476 = vsel %vm764, %v5474, %v5475
        %v5477 = vrot.slane %v5408, 1
        %v5478 = vrot.slane %v5409, 1
        %v5479 = vsel %vm764, %v5477, %v5478
        %v5522 = vadd.f32 %v5324, %v5438
        %v5523 = vadd.f32 %v5325, %v5440
        %v5524 = vadd.f32 %v5326, %v5439
        %v5525 = vadd.f32 %v5327, %v5441
        %v5526 = vadd.f32 %v5328, %v5443
        %v5527 = vadd.f32 %v5329, %v5442
        %v5528 = vadd.f32 %v5330, %v5444
        %v5529 = vadd.f32 %v5331, %v5446
        %v5530 = vadd.f32 %v5332, %v5445
        %v5531 = vadd.f32 %v5333, %v5447
        %v5532 = vadd.f32 %v5334, %v5449
        %v5533 = vadd.f32 %v5335, %v5448
        %v5534 = vadd.f32 %v5336, %v5450
        %v5535 = vadd.f32 %v5337, %v5452
        %v5536 = vadd.f32 %v5338, %v5451
        %v5537 = vadd.f32 %v5339, %v5453
        %v5538 = vadd.f32 %v5340, %v5455
        %v5539 = vadd.f32 %v5341, %v5454
        %v5540 = vadd.f32 %v5342, %v5456
        %v5541 = vadd.f32 %v5343, %v5458
        %v5542 = vadd.f32 %v5344, %v5457
        %v5543 = vadd.f32 %v5345, %v5459
        %v5544 = vadd.f32 %v5346, %v5461
        %v5545 = vadd.f32 %v5347, %v5460
        %v5546 = vadd.f32 %v5348, %v5462
        %v5547 = vadd.f32 %v5349, %v5464
        %v5548 = vadd.f32 %v5350, %v5463
        %v5549 = vadd.f32 %v5351, %v5465
        %v5550 = vadd.f32 %v5352, %v5467
        %v5551 = vadd.f32 %v5353, %v5466
        %v5552 = vadd.f32 %v5354, %v5468
        %v5553 = vadd.f32 %v5355, %v5470
        %v5554 = vadd.f32 %v5356, %v5469
        %v5555 = vadd.f32 %v5357, %v5471
        %v5556 = vadd.f32 %v5358, %v5473
        %v5557 = vadd.f32 %v5359, %v5472
        %v5558 = vadd.f32 %v5360, %v5474
        %v5559 = vadd.f32 %v5361, %v5476
        %v5560 = vadd.f32 %v5362, %v5475
        %v5561 = vadd.f32 %v5363, %v5477
        %v5562 = vadd.f32 %v5364, %v5479
        %v5563 = vadd.f32 %v5365, %v5478
        %v5564 = vld [vmem:[%s1643 + $0x28] sm:$0xfe]
        %v5565 = vld [vmem:[%s1643 + $0x40] sm:$0x7f]
        %v5566 = vld [vmem:[%s1643 + $0x70] sm:$0xfe]
        %v5567 = vld [vmem:[%s1643 + $0x88] sm:$0x7f]
        %v5568 = vld [vmem:[%s1643 + $0xb8] sm:$0xfe]
        %v5569 = vld [vmem:[%s1643 + $0xd0] sm:$0x7f]
        %v5570 = vld [vmem:[%s1643 + $0x100] sm:$0xfe]
        %v5571 = vld [vmem:[%s1643 + $0x118] sm:$0x7f]
        %v5572 = vld [vmem:[%s1643 + $0x148] sm:$0xfe]
        %v5573 = vld [vmem:[%s1643 + $0x160] sm:$0x7f]
        %v5574 = vld [vmem:[%s1643 + $0x190] sm:$0xfe]
        %v5575 = vld [vmem:[%s1643 + $0x1a8] sm:$0x7f]
        %v5576 = vld [vmem:[%s1643 + $0x1d8] sm:$0xfe]
        %v5577 = vld [vmem:[%s1643 + $0x1f0] sm:$0x7f]
        %v5578 = vld [vmem:[%s1643 + $0x220] sm:$0xfe]
        %v5579 = vld [vmem:[%s1643 + $0x238] sm:$0x7f]
        %v5580 = vld [vmem:[%s1643 + $0x268] sm:$0xfe]
        %v5581 = vld [vmem:[%s1643 + $0x280] sm:$0x7f]
        %v5582 = vld [vmem:[%s1643 + $0x2b0] sm:$0xfe]
        %v5583 = vld [vmem:[%s1643 + $0x2c8] sm:$0x7f]
        %v5584 = vld [vmem:[%s1643 + $0x2f8] sm:$0xfe]
        %v5585 = vld [vmem:[%s1643 + $0x310] sm:$0x7f]
        %v5586 = vld [vmem:[%s1643 + $0x340] sm:$0xfe]
        %v5587 = vld [vmem:[%s1643 + $0x358] sm:$0x7f]
        %v5588 = vld [vmem:[%s1643 + $0x388] sm:$0xfe]
        %v5589 = vld [vmem:[%s1643 + $0x3a0] sm:$0x7f]
        %v5590 = vld [vmem:[%s1643 + $0x3d0] sm:$0xfe]
        %v5591 = vld [vmem:[%s1643 + $0x3e8] sm:$0x7f]
        %v5592 = vld [vmem:[%s1686 + $0xa] sm:$0x1]
        %v5593 = vperm.slane %v5592, 0
        %v5594 = vmul.f32 %v5564, %v5593
        %v5595 = vmul.f32 %v5565, %v5593
        %v5596 = vmul.f32 %v5566, %v5593
        %v5597 = vmul.f32 %v5567, %v5593
        %v5598 = vmul.f32 %v5568, %v5593
        %v5599 = vmul.f32 %v5569, %v5593
        %v5600 = vmul.f32 %v5570, %v5593
        %v5601 = vmul.f32 %v5571, %v5593
        %v5602 = vmul.f32 %v5572, %v5593
        %v5603 = vmul.f32 %v5573, %v5593
        %v5604 = vmul.f32 %v5574, %v5593
        %v5605 = vmul.f32 %v5575, %v5593
        %v5606 = vmul.f32 %v5576, %v5593
        %v5607 = vmul.f32 %v5577, %v5593
        %v5608 = vmul.f32 %v5578, %v5593
        %v5609 = vmul.f32 %v5579, %v5593
        %v5610 = vmul.f32 %v5580, %v5593
        %v5611 = vmul.f32 %v5581, %v5593
        %v5612 = vmul.f32 %v5582, %v5593
        %v5613 = vmul.f32 %v5583, %v5593
        %v5614 = vmul.f32 %v5584, %v5593
        %v5615 = vmul.f32 %v5585, %v5593
        %v5616 = vmul.f32 %v5586, %v5593
        %v5617 = vmul.f32 %v5587, %v5593
        %v5618 = vmul.f32 %v5588, %v5593
        %v5619 = vmul.f32 %v5589, %v5593
        %v5620 = vmul.f32 %v5590, %v5593
        %v5621 = vmul.f32 %v5591, %v5593
        %v5650 = vrot.slane %v5594, 2
        %v5651 = vrot.slane %v5595, 2
        %v5652 = vsel %vm977, %v5650, %v5651
        %v5653 = vrot.slane %v5596, 2
        %v5654 = vrot.slane %v5597, 2
        %v5655 = vsel %vm977, %v5653, %v5654
        %v5656 = vrot.slane %v5598, 2
        %v5657 = vrot.slane %v5599, 2
        %v5658 = vsel %vm977, %v5656, %v5657
        %v5659 = vrot.slane %v5600, 2
        %v5660 = vrot.slane %v5601, 2
        %v5661 = vsel %vm977, %v5659, %v5660
        %v5662 = vrot.slane %v5602, 2
        %v5663 = vrot.slane %v5603, 2
        %v5664 = vsel %vm977, %v5662, %v5663
        %v5665 = vrot.slane %v5604, 2
        %v5666 = vrot.slane %v5605, 2
        %v5667 = vsel %vm977, %v5665, %v5666
        %v5668 = vrot.slane %v5606, 2
        %v5669 = vrot.slane %v5607, 2
        %v5670 = vsel %vm977, %v5668, %v5669
        %v5671 = vrot.slane %v5608, 2
        %v5672 = vrot.slane %v5609, 2
        %v5673 = vsel %vm977, %v5671, %v5672
        %v5674 = vrot.slane %v5610, 2
        %v5675 = vrot.slane %v5611, 2
        %v5676 = vsel %vm977, %v5674, %v5675
        %v5677 = vrot.slane %v5612, 2
        %v5678 = vrot.slane %v5613, 2
        %v5679 = vsel %vm977, %v5677, %v5678
        %v5680 = vrot.slane %v5614, 2
        %v5681 = vrot.slane %v5615, 2
        %v5682 = vsel %vm977, %v5680, %v5681
        %v5683 = vrot.slane %v5616, 2
        %v5684 = vrot.slane %v5617, 2
        %v5685 = vsel %vm977, %v5683, %v5684
        %v5686 = vrot.slane %v5618, 2
        %v5687 = vrot.slane %v5619, 2
        %v5688 = vsel %vm977, %v5686, %v5687
        %v5689 = vrot.slane %v5620, 2
        %v5690 = vrot.slane %v5621, 2
        %v5691 = vsel %vm977, %v5689, %v5690
        %v5734 = vadd.f32 %v5522, %v5650
        %v5735 = vadd.f32 %v5523, %v5652
        %v5736 = vadd.f32 %v5524, %v5651
        %v5737 = vadd.f32 %v5525, %v5653
        %v5738 = vadd.f32 %v5526, %v5655
        %v5739 = vadd.f32 %v5527, %v5654
        %v5740 = vadd.f32 %v5528, %v5656
        %v5741 = vadd.f32 %v5529, %v5658
        %v5742 = vadd.f32 %v5530, %v5657
        %v5743 = vadd.f32 %v5531, %v5659
        %v5744 = vadd.f32 %v5532, %v5661
        %v5745 = vadd.f32 %v5533, %v5660
        %v5746 = vadd.f32 %v5534, %v5662
        %v5747 = vadd.f32 %v5535, %v5664
        %v5748 = vadd.f32 %v5536, %v5663
        %v5749 = vadd.f32 %v5537, %v5665
        %v5750 = vadd.f32 %v5538, %v5667
        %v5751 = vadd.f32 %v5539, %v5666
        %v5752 = vadd.f32 %v5540, %v5668
        %v5753 = vadd.f32 %v5541, %v5670
        %v5754 = vadd.f32 %v5542, %v5669
        %v5755 = vadd.f32 %v5543, %v5671
        %v5756 = vadd.f32 %v5544, %v5673
        %v5757 = vadd.f32 %v5545, %v5672
        %v5758 = vadd.f32 %v5546, %v5674
        %v5759 = vadd.f32 %v5547, %v5676
        %v5760 = vadd.f32 %v5548, %v5675
        %v5761 = vadd.f32 %v5549, %v5677
        %v5762 = vadd.f32 %v5550, %v5679
        %v5763 = vadd.f32 %v5551, %v5678
        %v5764 = vadd.f32 %v5552, %v5680
        %v5765 = vadd.f32 %v5553, %v5682
        %v5766 = vadd.f32 %v5554, %v5681
        %v5767 = vadd.f32 %v5555, %v5683
        %v5768 = vadd.f32 %v5556, %v5685
        %v5769 = vadd.f32 %v5557, %v5684
        %v5770 = vadd.f32 %v5558, %v5686
        %v5771 = vadd.f32 %v5559, %v5688
        %v5772 = vadd.f32 %v5560, %v5687
        %v5773 = vadd.f32 %v5561, %v5689
        %v5774 = vadd.f32 %v5562, %v5691
        %v5775 = vadd.f32 %v5563, %v5690
        %v5818 = vrot.slane %v5734, 7
        %v5819 = vrot.slane %v5735, 7
        %v5820 = vsel %vm2225, %v5818, %v5819
        %v5821 = vrot.slane %v5736, 7
        %v5822 = vsel %vm2225, %v5819, %v5821
        %v5823 = vrot.slane %v5737, 7
        %v5824 = vrot.slane %v5738, 7
        %v5825 = vsel %vm2225, %v5823, %v5824
        %v5826 = vrot.slane %v5739, 7
        %v5827 = vsel %vm2225, %v5824, %v5826
        %v5828 = vrot.slane %v5740, 7
        %v5829 = vrot.slane %v5741, 7
        %v5830 = vsel %vm2225, %v5828, %v5829
        %v5831 = vrot.slane %v5742, 7
        %v5832 = vsel %vm2225, %v5829, %v5831
        %v5833 = vrot.slane %v5743, 7
        %v5834 = vrot.slane %v5744, 7
        %v5835 = vsel %vm2225, %v5833, %v5834
        %v5836 = vrot.slane %v5745, 7
        %v5837 = vsel %vm2225, %v5834, %v5836
        %v5838 = vrot.slane %v5746, 7
        %v5839 = vrot.slane %v5747, 7
        %v5840 = vsel %vm2225, %v5838, %v5839
        %v5841 = vrot.slane %v5748, 7
        %v5842 = vsel %vm2225, %v5839, %v5841
        %v5843 = vrot.slane %v5749, 7
        %v5844 = vrot.slane %v5750, 7
        %v5845 = vsel %vm2225, %v5843, %v5844
        %v5846 = vrot.slane %v5751, 7
        %v5847 = vsel %vm2225, %v5844, %v5846
        %v5848 = vrot.slane %v5752, 7
        %v5849 = vrot.slane %v5753, 7
        %v5850 = vsel %vm2225, %v5848, %v5849
        %v5851 = vrot.slane %v5754, 7
        %v5852 = vsel %vm2225, %v5849, %v5851
        %v5853 = vrot.slane %v5755, 7
        %v5854 = vrot.slane %v5756, 7
        %v5855 = vsel %vm2225, %v5853, %v5854
        %v5856 = vrot.slane %v5757, 7
        %v5857 = vsel %vm2225, %v5854, %v5856
        %v5858 = vrot.slane %v5758, 7
        %v5859 = vrot.slane %v5759, 7
        %v5860 = vsel %vm2225, %v5858, %v5859
        %v5861 = vrot.slane %v5760, 7
        %v5862 = vsel %vm2225, %v5859, %v5861
        %v5863 = vrot.slane %v5761, 7
        %v5864 = vrot.slane %v5762, 7
        %v5865 = vsel %vm2225, %v5863, %v5864
        %v5866 = vrot.slane %v5763, 7
        %v5867 = vsel %vm2225, %v5864, %v5866
        %v5868 = vrot.slane %v5764, 7
        %v5869 = vrot.slane %v5765, 7
        %v5870 = vsel %vm2225, %v5868, %v5869
        %v5871 = vrot.slane %v5766, 7
        %v5872 = vsel %vm2225, %v5869, %v5871
        %v5873 = vrot.slane %v5767, 7
        %v5874 = vrot.slane %v5768, 7
        %v5875 = vsel %vm2225, %v5873, %v5874
        %v5876 = vrot.slane %v5769, 7
        %v5877 = vsel %vm2225, %v5874, %v5876
        %v5878 = vrot.slane %v5770, 7
        %v5879 = vrot.slane %v5771, 7
        %v5880 = vsel %vm2225, %v5878, %v5879
        %v5881 = vrot.slane %v5772, 7
        %v5882 = vsel %vm2225, %v5879, %v5881
        %v5883 = vrot.slane %v5773, 7
        %v5884 = vrot.slane %v5774, 7
        %v5885 = vsel %vm2225, %v5883, %v5884
        %v5886 = vrot.slane %v5775, 7
        %v5887 = vsel %vm2225, %v5884, %v5886
        %5916 = vst [vmem:[%s401 + $0x10] sm:$0xff] %v5820
        %5917 = vst [vmem:[%s401 + $0x28] sm:$0x3f] %v5822
        %5918 = vst [vmem:[%s401 + $0x40] sm:$0xff] %v5825
        %5919 = vst [vmem:[%s401 + $0x58] sm:$0x3f] %v5827
        %5920 = vst [vmem:[%s401 + $0x70] sm:$0xff] %v5830
        %5921 = vst [vmem:[%s401 + $0x88] sm:$0x3f] %v5832
        %5922 = vst [vmem:[%s401 + $0xa0] sm:$0xff] %v5835
        %5923 = vst [vmem:[%s401 + $0xb8] sm:$0x3f] %v5837
        %5924 = vst [vmem:[%s401 + $0xd0] sm:$0xff] %v5840
        %5925 = vst [vmem:[%s401 + $0xe8] sm:$0x3f] %v5842
        %5926 = vst [vmem:[%s401 + $0x100] sm:$0xff] %v5845
        %5927 = vst [vmem:[%s401 + $0x118] sm:$0x3f] %v5847
        %5928 = vst [vmem:[%s401 + $0x130] sm:$0xff] %v5850
        %5929 = vst [vmem:[%s401 + $0x148] sm:$0x3f] %v5852
        %5930 = vst [vmem:[%s401 + $0x160] sm:$0xff] %v5855
        %5931 = vst [vmem:[%s401 + $0x178] sm:$0x3f] %v5857
        %5932 = vst [vmem:[%s401 + $0x190] sm:$0xff] %v5860
        %5933 = vst [vmem:[%s401 + $0x1a8] sm:$0x3f] %v5862
        %5934 = vst [vmem:[%s401 + $0x1c0] sm:$0xff] %v5865
        %5935 = vst [vmem:[%s401 + $0x1d8] sm:$0x3f] %v5867
        %5936 = vst [vmem:[%s401 + $0x1f0] sm:$0xff] %v5870
        %5937 = vst [vmem:[%s401 + $0x208] sm:$0x3f] %v5872
        %5938 = vst [vmem:[%s401 + $0x220] sm:$0xff] %v5875
        %5939 = vst [vmem:[%s401 + $0x238] sm:$0x3f] %v5877
        %5940 = vst [vmem:[%s401 + $0x250] sm:$0xff] %v5880
        %5941 = vst [vmem:[%s401 + $0x268] sm:$0x3f] %v5882
        %5942 = vst [vmem:[%s401 + $0x280] sm:$0xff] %v5885
        %5943 = vst [vmem:[%s401 + $0x298] sm:$0x3f] %v5887
        %s5944 = sand.u32 %s89, 1
        %s5945 = sand.u32 %s89, 1
        %s5946 = smul.addr %s5945, 672
        %s5947 = scalar_lea.vmem [#allocation5], %s5946
        // Predicated region
        $region78: #{depthwise_conv3x3.1} parent=68 // pred_check
          %p5948 = pneg %p99
        $region79: #{depthwise_conv3x3.1} parent=68 // pred_check_branch
          %5950 = sbr.rel (%p5948) target = $region81
        $region80: #{depthwise_conv3x3.1} parent=68 // pred_region
          %s5951 = smul.u32 3, %s18
          %s5952 = smul.addr %s17, 252
          %s5953 = sadd.s32 %s5951, %s5952
          %s5954 = smul.addr %s5953, 8
          %s5955 = scalar_lea.vmem %s2, %s5954
          // Predicated region
          $region82: #{depthwise_conv3x3.1} parent=80 // pred_check
            _
          $region83: #{depthwise_conv3x3.1} parent=80 // pred_check_branch
            %5957 = sbr.rel (0) target = $region85
          $region84: #{depthwise_conv3x3.1} parent=80 // pred_region
            // Predicated region
            $region86: #{depthwise_conv3x3.1} parent=84 // pred_check
              _
            $region87: #{depthwise_conv3x3.1} parent=84 // pred_check_branch
              %5959 = sbr.rel (0) target = $region89
            $region88: #{depthwise_conv3x3.1} parent=84 // pred_region
              loop: start=0, step=1, limit=1
              $region90: #{depthwise_conv3x3.1} parent=88 // loop_pre_header
                _
              $region91: #{depthwise_conv3x3.1} parent=88 // loop_header
                %s5961 = sphi 0, %s5965
                %p5962 = scmp.ge.s32.totalorder %s5961, 1
                %s5966 = sphi %s5947, %s5947
                %s5967 = sphi %s5955, %s5955
              $region92: #{depthwise_conv3x3.1} parent=88 // loop_header_branch
                %5964 = sbr.rel (%p5962) target = $region96
              $region93: #{depthwise_conv3x3.1} parent=88 // loop_body
                %v5968 = vld [vmem:[%s5966] sm:$0xff]
                %5969 = vst [vmem:[%s5967] sm:$0xff] %v5968
                %v5970 = vld [vmem:[%s5966 + $0x8] sm:$0xff]
                %5971 = vst [vmem:[%s5967 + $0x8] sm:$0xff] %v5970
                %v5972 = vld [vmem:[%s5966 + $0x10] sm:$0xff]
                %5973 = vst [vmem:[%s5967 + $0x10] sm:$0xff] %v5972
                %v5974 = vld [vmem:[%s5966 + $0x18] sm:$0xff]
                %5975 = vst [vmem:[%s5967 + $0x48] sm:$0xff] %v5974
                %v5976 = vld [vmem:[%s5966 + $0x20] sm:$0xff]
                %5977 = vst [vmem:[%s5967 + $0x50] sm:$0xff] %v5976
                %v5978 = vld [vmem:[%s5966 + $0x28] sm:$0xff]
                %5979 = vst [vmem:[%s5967 + $0x58] sm:$0xff] %v5978
                %v5980 = vld [vmem:[%s5966 + $0x30] sm:$0xff]
                %5981 = vst [vmem:[%s5967 + $0x90] sm:$0xff] %v5980
                %v5982 = vld [vmem:[%s5966 + $0x38] sm:$0xff]
                %5983 = vst [vmem:[%s5967 + $0x98] sm:$0xff] %v5982
                %v5984 = vld [vmem:[%s5966 + $0x40] sm:$0xff]
                %5985 = vst [vmem:[%s5967 + $0xa0] sm:$0xff] %v5984
                %v5986 = vld [vmem:[%s5966 + $0x48] sm:$0xff]
                %5987 = vst [vmem:[%s5967 + $0xd8] sm:$0xff] %v5986
                %v5988 = vld [vmem:[%s5966 + $0x50] sm:$0xff]
                %5989 = vst [vmem:[%s5967 + $0xe0] sm:$0xff] %v5988
                %v5990 = vld [vmem:[%s5966 + $0x58] sm:$0xff]
                %5991 = vst [vmem:[%s5967 + $0xe8] sm:$0xff] %v5990
                %v5992 = vld [vmem:[%s5966 + $0x60] sm:$0xff]
                %5993 = vst [vmem:[%s5967 + $0x120] sm:$0xff] %v5992
                %v5994 = vld [vmem:[%s5966 + $0x68] sm:$0xff]
                %5995 = vst [vmem:[%s5967 + $0x128] sm:$0xff] %v5994
                %v5996 = vld [vmem:[%s5966 + $0x70] sm:$0xff]
                %5997 = vst [vmem:[%s5967 + $0x130] sm:$0xff] %v5996
                %v5998 = vld [vmem:[%s5966 + $0x78] sm:$0xff]
                %5999 = vst [vmem:[%s5967 + $0x168] sm:$0xff] %v5998
                %v6000 = vld [vmem:[%s5966 + $0x80] sm:$0xff]
                %6001 = vst [vmem:[%s5967 + $0x170] sm:$0xff] %v6000
                %v6002 = vld [vmem:[%s5966 + $0x88] sm:$0xff]
                %6003 = vst [vmem:[%s5967 + $0x178] sm:$0xff] %v6002
                %v6004 = vld [vmem:[%s5966 + $0x90] sm:$0xff]
                %6005 = vst [vmem:[%s5967 + $0x1b0] sm:$0xff] %v6004
                %v6006 = vld [vmem:[%s5966 + $0x98] sm:$0xff]
                %6007 = vst [vmem:[%s5967 + $0x1b8] sm:$0xff] %v6006
                %v6008 = vld [vmem:[%s5966 + $0xa0] sm:$0xff]
                %6009 = vst [vmem:[%s5967 + $0x1c0] sm:$0xff] %v6008
                %v6010 = vld [vmem:[%s5966 + $0xa8] sm:$0xff]
                %6011 = vst [vmem:[%s5967 + $0x1f8] sm:$0xff] %v6010
                %v6012 = vld [vmem:[%s5966 + $0xb0] sm:$0xff]
                %6013 = vst [vmem:[%s5967 + $0x200] sm:$0xff] %v6012
                %v6014 = vld [vmem:[%s5966 + $0xb8] sm:$0xff]
                %6015 = vst [vmem:[%s5967 + $0x208] sm:$0xff] %v6014
                %v6016 = vld [vmem:[%s5966 + $0xc0] sm:$0xff]
                %6017 = vst [vmem:[%s5967 + $0x240] sm:$0xff] %v6016
                %v6018 = vld [vmem:[%s5966 + $0xc8] sm:$0xff]
                %6019 = vst [vmem:[%s5967 + $0x248] sm:$0xff] %v6018
                %v6020 = vld [vmem:[%s5966 + $0xd0] sm:$0xff]
                %6021 = vst [vmem:[%s5967 + $0x250] sm:$0xff] %v6020
                %v6022 = vld [vmem:[%s5966 + $0xd8] sm:$0xff]
                %6023 = vst [vmem:[%s5967 + $0x288] sm:$0xff] %v6022
                %v6024 = vld [vmem:[%s5966 + $0xe0] sm:$0xff]
                %6025 = vst [vmem:[%s5967 + $0x290] sm:$0xff] %v6024
                %v6026 = vld [vmem:[%s5966 + $0xe8] sm:$0xff]
                %6027 = vst [vmem:[%s5967 + $0x298] sm:$0xff] %v6026
                %v6028 = vld [vmem:[%s5966 + $0xf0] sm:$0xff]
                %6029 = vst [vmem:[%s5967 + $0x2d0] sm:$0xff] %v6028
                %v6030 = vld [vmem:[%s5966 + $0xf8] sm:$0xff]
                %6031 = vst [vmem:[%s5967 + $0x2d8] sm:$0xff] %v6030
                %v6032 = vld [vmem:[%s5966 + $0x100] sm:$0xff]
                %6033 = vst [vmem:[%s5967 + $0x2e0] sm:$0xff] %v6032
                %v6034 = vld [vmem:[%s5966 + $0x108] sm:$0xff]
                %6035 = vst [vmem:[%s5967 + $0x318] sm:$0xff] %v6034
                %v6036 = vld [vmem:[%s5966 + $0x110] sm:$0xff]
                %6037 = vst [vmem:[%s5967 + $0x320] sm:$0xff] %v6036
                %v6038 = vld [vmem:[%s5966 + $0x118] sm:$0xff]
                %6039 = vst [vmem:[%s5967 + $0x328] sm:$0xff] %v6038
                %v6040 = vld [vmem:[%s5966 + $0x120] sm:$0xff]
                %6041 = vst [vmem:[%s5967 + $0x360] sm:$0xff] %v6040
                %v6042 = vld [vmem:[%s5966 + $0x128] sm:$0xff]
                %6043 = vst [vmem:[%s5967 + $0x368] sm:$0xff] %v6042
                %v6044 = vld [vmem:[%s5966 + $0x130] sm:$0xff]
                %6045 = vst [vmem:[%s5967 + $0x370] sm:$0xff] %v6044
                %v6046 = vld [vmem:[%s5966 + $0x138] sm:$0xff]
                %6047 = vst [vmem:[%s5967 + $0x3a8] sm:$0xff] %v6046
                %v6048 = vld [vmem:[%s5966 + $0x140] sm:$0xff]
                %6049 = vst [vmem:[%s5967 + $0x3b0] sm:$0xff] %v6048
                %v6050 = vld [vmem:[%s5966 + $0x148] sm:$0xff]
                %6051 = vst [vmem:[%s5967 + $0x3b8] sm:$0xff] %v6050
                %v6052 = vld [vmem:[%s5966 + $0x150] sm:$0xff]
                %6053 = vst [vmem:[%s5967 + $0x3f0] sm:$0xff] %v6052
                %v6054 = vld [vmem:[%s5966 + $0x158] sm:$0xff]
                %6055 = vst [vmem:[%s5967 + $0x3f8] sm:$0xff] %v6054
                %v6056 = vld [vmem:[%s5966 + $0x160] sm:$0xff]
                %6057 = vst [vmem:[%s5967 + $0x400] sm:$0xff] %v6056
                %v6058 = vld [vmem:[%s5966 + $0x168] sm:$0xff]
                %6059 = vst [vmem:[%s5967 + $0x438] sm:$0xff] %v6058
                %v6060 = vld [vmem:[%s5966 + $0x170] sm:$0xff]
                %6061 = vst [vmem:[%s5967 + $0x440] sm:$0xff] %v6060
                %v6062 = vld [vmem:[%s5966 + $0x178] sm:$0xff]
                %6063 = vst [vmem:[%s5967 + $0x448] sm:$0xff] %v6062
                %v6064 = vld [vmem:[%s5966 + $0x180] sm:$0xff]
                %6065 = vst [vmem:[%s5967 + $0x480] sm:$0xff] %v6064
                %v6066 = vld [vmem:[%s5966 + $0x188] sm:$0xff]
                %6067 = vst [vmem:[%s5967 + $0x488] sm:$0xff] %v6066
                %v6068 = vld [vmem:[%s5966 + $0x190] sm:$0xff]
                %6069 = vst [vmem:[%s5967 + $0x490] sm:$0xff] %v6068
                %v6070 = vld [vmem:[%s5966 + $0x198] sm:$0xff]
                %6071 = vst [vmem:[%s5967 + $0x4c8] sm:$0xff] %v6070
                %v6072 = vld [vmem:[%s5966 + $0x1a0] sm:$0xff]
                %6073 = vst [vmem:[%s5967 + $0x4d0] sm:$0xff] %v6072
                %v6074 = vld [vmem:[%s5966 + $0x1a8] sm:$0xff]
                %6075 = vst [vmem:[%s5967 + $0x4d8] sm:$0xff] %v6074
                %v6076 = vld [vmem:[%s5966 + $0x1b0] sm:$0xff]
                %6077 = vst [vmem:[%s5967 + $0x510] sm:$0xff] %v6076
                %v6078 = vld [vmem:[%s5966 + $0x1b8] sm:$0xff]
                %6079 = vst [vmem:[%s5967 + $0x518] sm:$0xff] %v6078
                %v6080 = vld [vmem:[%s5966 + $0x1c0] sm:$0xff]
                %6081 = vst [vmem:[%s5967 + $0x520] sm:$0xff] %v6080
                %v6082 = vld [vmem:[%s5966 + $0x1c8] sm:$0xff]
                %6083 = vst [vmem:[%s5967 + $0x558] sm:$0xff] %v6082
                %v6084 = vld [vmem:[%s5966 + $0x1d0] sm:$0xff]
                %6085 = vst [vmem:[%s5967 + $0x560] sm:$0xff] %v6084
                %v6086 = vld [vmem:[%s5966 + $0x1d8] sm:$0xff]
                %6087 = vst [vmem:[%s5967 + $0x568] sm:$0xff] %v6086
                %v6088 = vld [vmem:[%s5966 + $0x1e0] sm:$0xff]
                %6089 = vst [vmem:[%s5967 + $0x5a0] sm:$0xff] %v6088
                %v6090 = vld [vmem:[%s5966 + $0x1e8] sm:$0xff]
                %6091 = vst [vmem:[%s5967 + $0x5a8] sm:$0xff] %v6090
                %v6092 = vld [vmem:[%s5966 + $0x1f0] sm:$0xff]
                %6093 = vst [vmem:[%s5967 + $0x5b0] sm:$0xff] %v6092
                %v6094 = vld [vmem:[%s5966 + $0x1f8] sm:$0xff]
                %6095 = vst [vmem:[%s5967 + $0x5e8] sm:$0xff] %v6094
                %v6096 = vld [vmem:[%s5966 + $0x200] sm:$0xff]
                %6097 = vst [vmem:[%s5967 + $0x5f0] sm:$0xff] %v6096
                %v6098 = vld [vmem:[%s5966 + $0x208] sm:$0xff]
                %6099 = vst [vmem:[%s5967 + $0x5f8] sm:$0xff] %v6098
                %v6100 = vld [vmem:[%s5966 + $0x210] sm:$0xff]
                %6101 = vst [vmem:[%s5967 + $0x630] sm:$0xff] %v6100
                %v6102 = vld [vmem:[%s5966 + $0x218] sm:$0xff]
                %6103 = vst [vmem:[%s5967 + $0x638] sm:$0xff] %v6102
                %v6104 = vld [vmem:[%s5966 + $0x220] sm:$0xff]
                %6105 = vst [vmem:[%s5967 + $0x640] sm:$0xff] %v6104
                %v6106 = vld [vmem:[%s5966 + $0x228] sm:$0xff]
                %6107 = vst [vmem:[%s5967 + $0x678] sm:$0xff] %v6106
                %v6108 = vld [vmem:[%s5966 + $0x230] sm:$0xff]
                %6109 = vst [vmem:[%s5967 + $0x680] sm:$0xff] %v6108
                %v6110 = vld [vmem:[%s5966 + $0x238] sm:$0xff]
                %6111 = vst [vmem:[%s5967 + $0x688] sm:$0xff] %v6110
                %v6112 = vld [vmem:[%s5966 + $0x240] sm:$0xff]
                %6113 = vst [vmem:[%s5967 + $0x6c0] sm:$0xff] %v6112
                %v6114 = vld [vmem:[%s5966 + $0x248] sm:$0xff]
                %6115 = vst [vmem:[%s5967 + $0x6c8] sm:$0xff] %v6114
                %v6116 = vld [vmem:[%s5966 + $0x250] sm:$0xff]
                %6117 = vst [vmem:[%s5967 + $0x6d0] sm:$0xff] %v6116
                %v6118 = vld [vmem:[%s5966 + $0x258] sm:$0xff]
                %6119 = vst [vmem:[%s5967 + $0x708] sm:$0xff] %v6118
                %v6120 = vld [vmem:[%s5966 + $0x260] sm:$0xff]
                %6121 = vst [vmem:[%s5967 + $0x710] sm:$0xff] %v6120
                %v6122 = vld [vmem:[%s5966 + $0x268] sm:$0xff]
                %6123 = vst [vmem:[%s5967 + $0x718] sm:$0xff] %v6122
                %v6124 = vld [vmem:[%s5966 + $0x270] sm:$0xff]
                %6125 = vst [vmem:[%s5967 + $0x750] sm:$0xff] %v6124
                %v6126 = vld [vmem:[%s5966 + $0x278] sm:$0xff]
                %6127 = vst [vmem:[%s5967 + $0x758] sm:$0xff] %v6126
                %v6128 = vld [vmem:[%s5966 + $0x280] sm:$0xff]
                %6129 = vst [vmem:[%s5967 + $0x760] sm:$0xff] %v6128
                %v6130 = vld [vmem:[%s5966 + $0x288] sm:$0xff]
                %6131 = vst [vmem:[%s5967 + $0x798] sm:$0xff] %v6130
                %v6132 = vld [vmem:[%s5966 + $0x290] sm:$0xff]
                %6133 = vst [vmem:[%s5967 + $0x7a0] sm:$0xff] %v6132
                %v6134 = vld [vmem:[%s5966 + $0x298] sm:$0xff]
                %6135 = vst [vmem:[%s5967 + $0x7a8] sm:$0xff] %v6134
              $region94: #{depthwise_conv3x3.1} parent=88 // loop_footer
                %s5965 = sadd.s32 1, %s5961
              $region95: #{depthwise_conv3x3.1} parent=88 // loop_footer_branch
                %5960 = sbr.rel target = $region91
              $region96: #{depthwise_conv3x3.1} parent=88 // loop_exit
                _
            $region89: #{depthwise_conv3x3.1} parent=84 // pred_fallthru
              _
            // Predicated region
            $region97: #{depthwise_conv3x3.1} parent=84 // pred_check
              _
            $region98: #{depthwise_conv3x3.1} parent=84 // pred_check_branch
              %6137 = sbr.rel target = $region100
            $region99: #{depthwise_conv3x3.1} parent=84 // pred_region
              _
            $region100: #{depthwise_conv3x3.1} parent=84 // pred_fallthru
              _
          $region85: #{depthwise_conv3x3.1} parent=80 // pred_fallthru
            _
          %6138 = vnop
        $region81: #{depthwise_conv3x3.1} parent=68 // pred_fallthru
          _
      $region69: #{depthwise_conv3x3.1} parent=5 // pred_fallthru
        _
      %p6139 = scmp.le.s32.totalorder 2, %s8
      // Predicated region
      $region101: #{depthwise_conv3x3.1} parent=5 // pred_check
        %p6140 = pneg %p6139
      $region102: #{depthwise_conv3x3.1} parent=5 // pred_check_branch
        %6142 = sbr.rel (%p6140) target = $region104
      $region103: #{depthwise_conv3x3.1} parent=5 // pred_region
        %s6143 = ssub.s32 %s8, 2
        // Predicated region
        $region105: #{depthwise_conv3x3.1} parent=103 // pred_check
          %p6144 = pneg %p105
        $region106: #{depthwise_conv3x3.1} parent=103 // pred_check_branch
          %6146 = sbr.rel (%p6144) target = $region108
        $region107: #{depthwise_conv3x3.1} parent=103 // pred_region
          %s6147 = sand.u32 %s90, 1
          %s6148 = sand.u32 %s90, 1
          %s6149 = smul.addr %s6148, 672
          %s6150 = scalar_lea.vmem [#allocation5], %s6149
        $region108: #{depthwise_conv3x3.1} parent=103 // pred_fallthru
          _
      $region104: #{depthwise_conv3x3.1} parent=5 // pred_fallthru
        _
    $region6: #{depthwise_conv3x3.1} parent=1 // loop_footer
      %s12 = sadd.s32 1, %s8
    $region7: #{depthwise_conv3x3.1} parent=1 // loop_footer_branch
      %7 = sbr.rel target = $region3
    $region8: #{depthwise_conv3x3.1} parent=1 // loop_exit
      _

</llo_original>
